<compile_context>
chip_gen: v7x
topology: tpu7x:2x2x1
jax: 0.10.0
libtpu: 0.0.40
codegen_flags: <defaults>
</compile_context>

<pallas_src>
import functools

import jax
import jax.numpy as jnp
from jax.experimental import pallas as pl
from jax.experimental.pallas import tpu as pltpu

BN_EPS = 1e-5
L2_EPS = 1e-12


def _encoder_kernel(x_ref, w1_ref, b1_ref, w2_ref, b2_ref, w3_ref, b3_ref,
                    w4_ref, b4_ref, o_ref, *, normalize):
    x = x_ref[...]                                                  # [TB, D_in]

    # L1 + ReLU   (BN1 is folded into w2/b2)
    h = jnp.dot(x, w1_ref[...], preferred_element_type=jnp.float32) + b1_ref[...]
    h = jnp.maximum(h, 0.0)                                         # [TB, 1024]

    # (BN1 folded) L2 + ReLU   (BN2 folded into w3/b3)
    h = jnp.dot(h, w2_ref[...], preferred_element_type=jnp.float32) + b2_ref[...]
    h = jnp.maximum(h, 0.0)                                         # [TB, 512]

    # (BN2 folded) L3, no ReLU  (BN3 folded into w4/b4)
    h = jnp.dot(h, w3_ref[...], preferred_element_type=jnp.float32) + b3_ref[...]

    # (BN3 folded) L4
    y = jnp.dot(h, w4_ref[...], preferred_element_type=jnp.float32) + b4_ref[...]

    if normalize:
        # F.normalize(p=2, dim=1): rsqrt on EUP instead of sqrt + full-width div.
        sumsq = jnp.sum(y * y, axis=-1, keepdims=True)
        y = y * jax.lax.rsqrt(jnp.maximum(sumsq, L2_EPS * L2_EPS))

    o_ref[...] = y


def _round_up(n, m):
    return (n + m - 1) // m * m


def _fold_bn_into_next_linear(gamma, beta, mean, var, w_next, b_next):
    """Eval-mode BN(h) followed (Dropout = identity) by BN(h) @ w_next + b_next."""
    s = gamma * jax.lax.rsqrt(var + BN_EPS)            # (1, H)
    w_f = w_next * s.reshape(-1, 1)                    # (H, H_next)
    b_f = b_next + (beta - mean * s) @ w_next          # (1, H_next)
    return w_f, b_f


def micro_encoder_forward(x, params, *, norm_flag=False, block_b=256):
    """Eval-mode forward.  x: [B, D_in] f32; weights pre-transposed to [in, out]."""
    B, D_in = x.shape
    H1 = params["w1"].shape[1]
    H2 = params["w2"].shape[1]
    H3 = params["w3"].shape[1]
    D_out = params["w4"].shape[1]

    # Fold the three eval-mode BatchNorms into the following Linear layers.
    w2f, b2f = _fold_bn_into_next_linear(params["g1"], params["bt1"],
                                         params["m1"], params["v1"],
                                         params["w2"], params["b2"])
    w3f, b3f = _fold_bn_into_next_linear(params["g2"], params["bt2"],
                                         params["m2"], params["v2"],
                                         params["w3"], params["b3"])
    w4f, b4f = _fold_bn_into_next_linear(params["g3"], params["bt3"],
                                         params["m3"], params["v3"],
                                         params["w4"], params["b4"])

    # Batch tiling: TB rows per grid step (multiple of 8); pad B up to a
    # multiple of TB so every block is full, then slice padded rows off.
    TB = min(block_b, max(8, _round_up(B, 8)))
    Bp = _round_up(B, TB)
    if Bp != B:
        x = jnp.pad(x, ((0, Bp - B), (0, 0)))
    grid = (Bp // TB,)

    def batch_spec(cols):                      # streamed, double-buffered
        return pl.BlockSpec((TB, cols), lambda i: (i, 0))

    def resident(shape):                       # DMA'd once, stays in VMEM
        return pl.BlockSpec(shape, lambda i: (0, 0))

    flops = 2 * Bp * (D_in * H1 + H1 * H2 + H2 * H3 + H3 * D_out)
    bytes_accessed = 4 * (Bp * (D_in + D_out)
                          + D_in * H1 + H1 * H2 + H2 * H3 + H3 * D_out
                          + H1 + H2 + H3 + D_out)

    out = pl.pallas_call(
        functools.partial(_encoder_kernel, normalize=norm_flag),
        out_shape=jax.ShapeDtypeStruct((Bp, D_out), jnp.float32),
        grid=grid,
        in_specs=[
            batch_spec(D_in),                       # x
            resident((D_in, H1)), resident((1, H1)),    # L1
            resident((H1, H2)),   resident((1, H2)),    # L2 (BN1 folded)
            resident((H2, H3)),   resident((1, H3)),    # L3 (BN2 folded)
            resident((H3, D_out)), resident((1, D_out)),  # L4 (BN3 folded)
        ],
        out_specs=batch_spec(D_out),
        compiler_params=pltpu.CompilerParams(
            dimension_semantics=("parallel",),        # v7x: shard batch over 2 TCs
            vmem_limit_bytes=48 * 1024 * 1024),
        cost_estimate=pl.CostEstimate(
            flops=flops,
            transcendentals=Bp if norm_flag else 0,
            bytes_accessed=bytes_accessed),
    )(x, params["w1"], params["b1"], w2f, b2f, w3f, b3f, w4f, b4f)

    return out[:B]


def init_params(key, input_dim=1328, out_dim=128):
    """Deterministic synthetic params (PyTorch-Linear-style fan-in init; eval BN)."""
    dims = [input_dim, 1024, 512, 256, out_dim]
    ks = list(jax.random.split(key, 20))
    p = {}
    k = 0
    for li in range(4):
        fan_in, fan_out = dims[li], dims[li + 1]
        bound = 1.0 / float(jnp.sqrt(fan_in))
        p[f"w{li+1}"] = jax.random.uniform(ks[k], (fan_in, fan_out), jnp.float32,
                                           -bound, bound); k += 1
        p[f"b{li+1}"] = jax.random.uniform(ks[k], (1, fan_out), jnp.float32,
                                           -bound, bound); k += 1
    for bi, h in enumerate([1024, 512, 256], start=1):
        p[f"g{bi}"] = 1.0 + 0.1 * jax.random.normal(ks[k], (1, h), jnp.float32); k += 1
        p[f"bt{bi}"] = 0.1 * jax.random.normal(ks[k], (1, h), jnp.float32); k += 1
        p[f"m{bi}"] = 0.1 * jax.random.normal(ks[k], (1, h), jnp.float32); k += 1
        p[f"v{bi}"] = jnp.abs(jax.random.normal(ks[k], (1, h), jnp.float32)) * 0.5 + 0.5; k += 1
    return p


def _reference(x, p, norm_flag):
    hp = jax.lax.Precision.HIGHEST

    def bn(h, g, bt, m, v):
        return (h - m) * jax.lax.rsqrt(v + BN_EPS) * g + bt

    h = jnp.maximum(jnp.dot(x, p["w1"], precision=hp) + p["b1"], 0.0)
    h = bn(h, p["g1"], p["bt1"], p["m1"], p["v1"])
    h = jnp.maximum(jnp.dot(h, p["w2"], precision=hp) + p["b2"], 0.0)
    h = bn(h, p["g2"], p["bt2"], p["m2"], p["v2"])
    h = jnp.dot(h, p["w3"], precision=hp) + p["b3"]
    h = bn(h, p["g3"], p["bt3"], p["m3"], p["v3"])
    y = jnp.dot(h, p["w4"], precision=hp) + p["b4"]
    if norm_flag:
        n = jnp.sqrt(jnp.sum(y * y, axis=1, keepdims=True))
        y = y / jnp.maximum(n, L2_EPS)
    return y


if __name__ == "__main__":
    key = jax.random.PRNGKey(0)
    k_x, k_p = jax.random.split(key)

    B, D_in, D_out = 40, 1328, 128          # small batch; module's default dims
    x = jax.random.normal(k_x, (B, D_in), jnp.float32)
    params = init_params(k_p, input_dim=D_in, out_dim=D_out)

    # Default forward (norm_flag=False, matching the PyTorch defaults).  Small
    # block_b so the test exercises multi-step pipelining and the B % TB != 0
    # padding path (B=40 -> padded to 48, grid of 3 blocks of 16 rows).
    out = jax.block_until_ready(
        micro_encoder_forward(x, params, norm_flag=False, block_b=16))
    ref = _reference(x, params, norm_flag=False)
    assert out.shape == (B, D_out)
    assert jnp.allclose(out, ref, atol=5e-4, rtol=5e-4), \
        float(jnp.max(jnp.abs(out - ref)))

    # norm_flag=True path (F.normalize tail).
    out_n = jax.block_until_ready(
        micro_encoder_forward(x, params, norm_flag=True, block_b=16))
    ref_n = _reference(x, params, norm_flag=True)
    assert jnp.allclose(out_n, ref_n, atol=5e-4, rtol=5e-4), \
        float(jnp.max(jnp.abs(out_n - ref_n)))

    print("KERNEL_OK")
</pallas_src>

<mosaic_0001>
module attributes {stable_mosaic.version = 11 : i64} {
  func.func @_encoder_kernel(%arg0: i32, %arg1: memref<16x1328xf32, #tpu.memory_space<vmem>>, %arg2: memref<1328x1024xf32, #tpu.memory_space<vmem>>, %arg3: memref<1x1024xf32, #tpu.memory_space<vmem>>, %arg4: memref<1024x512xf32, #tpu.memory_space<vmem>>, %arg5: memref<1x512xf32, #tpu.memory_space<vmem>>, %arg6: memref<512x256xf32, #tpu.memory_space<vmem>>, %arg7: memref<1x256xf32, #tpu.memory_space<vmem>>, %arg8: memref<256x128xf32, #tpu.memory_space<vmem>>, %arg9: memref<1x128xf32, #tpu.memory_space<vmem>>, %arg10: memref<16x128xf32, #tpu.memory_space<vmem>>) attributes {dimension_semantics = [#tpu.dimension_semantics<parallel>], iteration_bounds = array<i64: 3>, scalar_prefetch = 0 : i64, scratch_operands = 0 : i64, tpu.core_type = #tpu.core_type<tc>, window_params = [{transform_indices = @transform_0, window_bounds = array<i64: 16, 1328>}, {pipeline_mode = #tpu.pipeline_mode<synchronous>, transform_indices = @transform_1, window_bounds = array<i64: 1328, 1024>}, {pipeline_mode = #tpu.pipeline_mode<synchronous>, transform_indices = @transform_2, window_bounds = array<i64: 1, 1024>}, {pipeline_mode = #tpu.pipeline_mode<synchronous>, transform_indices = @transform_3, window_bounds = array<i64: 1024, 512>}, {pipeline_mode = #tpu.pipeline_mode<synchronous>, transform_indices = @transform_4, window_bounds = array<i64: 1, 512>}, {pipeline_mode = #tpu.pipeline_mode<synchronous>, transform_indices = @transform_5, window_bounds = array<i64: 512, 256>}, {pipeline_mode = #tpu.pipeline_mode<synchronous>, transform_indices = @transform_6, window_bounds = array<i64: 1, 256>}, {pipeline_mode = #tpu.pipeline_mode<synchronous>, transform_indices = @transform_7, window_bounds = array<i64: 256, 128>}, {pipeline_mode = #tpu.pipeline_mode<synchronous>, transform_indices = @transform_8, window_bounds = array<i64: 1, 128>}, {transform_indices = @transform_9, window_bounds = array<i64: 16, 128>}]} {
    %c0 = arith.constant 0 : index
    %c0_0 = arith.constant 0 : index
    %0 = vector.load %arg1[%c0, %c0_0] : memref<16x1328xf32, #tpu.memory_space<vmem>>, vector<16x1328xf32>
    %c0_1 = arith.constant 0 : index
    %c0_2 = arith.constant 0 : index
    %1 = vector.load %arg2[%c0_1, %c0_2] : memref<1328x1024xf32, #tpu.memory_space<vmem>>, vector<1328x1024xf32>
    %cst = arith.constant dense<0.000000e+00> : vector<16x1024xf32>
    %2 = tpu.matmul %0, %1, %cst {dimension_numbers = #tpu.dot_dimension_numbers<[1], [0], [0], [1], [0, 0, 1, 1], [], []>} : vector<16x1328xf32>, vector<1328x1024xf32>, vector<16x1024xf32> -> vector<16x1024xf32>
    %c0_3 = arith.constant 0 : index
    %c0_4 = arith.constant 0 : index
    %3 = vector.load %arg3[%c0_3, %c0_4] : memref<1x1024xf32, #tpu.memory_space<vmem>>, vector<1x1024xf32>
    %4 = vector.broadcast %3 : vector<1x1024xf32> to vector<16x1024xf32>
    %5 = arith.addf %2, %4 : vector<16x1024xf32>
    %cst_5 = arith.constant 0.000000e+00 : f32
    %6 = vector.broadcast %cst_5 : f32 to vector<16x1024xf32>
    %7 = arith.maximumf %5, %6 : vector<16x1024xf32>
    %c0_6 = arith.constant 0 : index
    %c0_7 = arith.constant 0 : index
    %8 = vector.load %arg4[%c0_6, %c0_7] : memref<1024x512xf32, #tpu.memory_space<vmem>>, vector<1024x512xf32>
    %cst_8 = arith.constant dense<0.000000e+00> : vector<16x512xf32>
    %9 = tpu.matmul %7, %8, %cst_8 {dimension_numbers = #tpu.dot_dimension_numbers<[1], [0], [0], [1], [0, 0, 1, 1], [], []>} : vector<16x1024xf32>, vector<1024x512xf32>, vector<16x512xf32> -> vector<16x512xf32>
    %c0_9 = arith.constant 0 : index
    %c0_10 = arith.constant 0 : index
    %10 = vector.load %arg5[%c0_9, %c0_10] : memref<1x512xf32, #tpu.memory_space<vmem>>, vector<1x512xf32>
    %11 = vector.broadcast %10 : vector<1x512xf32> to vector<16x512xf32>
    %12 = arith.addf %9, %11 : vector<16x512xf32>
    %cst_11 = arith.constant 0.000000e+00 : f32
    %13 = vector.broadcast %cst_11 : f32 to vector<16x512xf32>
    %14 = arith.maximumf %12, %13 : vector<16x512xf32>
    %c0_12 = arith.constant 0 : index
    %c0_13 = arith.constant 0 : index
    %15 = vector.load %arg6[%c0_12, %c0_13] : memref<512x256xf32, #tpu.memory_space<vmem>>, vector<512x256xf32>
    %cst_14 = arith.constant dense<0.000000e+00> : vector<16x256xf32>
    %16 = tpu.matmul %14, %15, %cst_14 {dimension_numbers = #tpu.dot_dimension_numbers<[1], [0], [0], [1], [0, 0, 1, 1], [], []>} : vector<16x512xf32>, vector<512x256xf32>, vector<16x256xf32> -> vector<16x256xf32>
    %c0_15 = arith.constant 0 : index
    %c0_16 = arith.constant 0 : index
    %17 = vector.load %arg7[%c0_15, %c0_16] : memref<1x256xf32, #tpu.memory_space<vmem>>, vector<1x256xf32>
    %18 = vector.broadcast %17 : vector<1x256xf32> to vector<16x256xf32>
    %19 = arith.addf %16, %18 : vector<16x256xf32>
    %c0_17 = arith.constant 0 : index
    %c0_18 = arith.constant 0 : index
    %20 = vector.load %arg8[%c0_17, %c0_18] : memref<256x128xf32, #tpu.memory_space<vmem>>, vector<256x128xf32>
    %cst_19 = arith.constant dense<0.000000e+00> : vector<16x128xf32>
    %21 = tpu.matmul %19, %20, %cst_19 {dimension_numbers = #tpu.dot_dimension_numbers<[1], [0], [0], [1], [0, 0, 1, 1], [], []>} : vector<16x256xf32>, vector<256x128xf32>, vector<16x128xf32> -> vector<16x128xf32>
    %c0_20 = arith.constant 0 : index
    %c0_21 = arith.constant 0 : index
    %22 = vector.load %arg9[%c0_20, %c0_21] : memref<1x128xf32, #tpu.memory_space<vmem>>, vector<1x128xf32>
    %23 = vector.broadcast %22 : vector<1x128xf32> to vector<16x128xf32>
    %24 = arith.addf %21, %23 : vector<16x128xf32>
    %c0_22 = arith.constant 0 : index
    %c0_23 = arith.constant 0 : index
    %25 = vector.load %arg10[%c0_22, %c0_23] : memref<16x128xf32, #tpu.memory_space<vmem>>, vector<16x128xf32>
    tpu.vector_store %arg10[%c0_22, %c0_23], %24 {strides = array<i32>} : memref<16x128xf32, #tpu.memory_space<vmem>>, vector<16x128xf32>,
    return
  }
  func.func @transform_0(%arg0: i32) -> (i32, i32) {
    %c0_i32 = arith.constant 0 : i32
    %c0_i32_0 = arith.constant 0 : i32
    return %arg0, %c0_i32 : i32, i32
  }
  func.func @transform_1(%arg0: i32) -> (i32, i32) {
    %c0_i32 = arith.constant 0 : i32
    %c0_i32_0 = arith.constant 0 : i32
    %c0_i32_1 = arith.constant 0 : i32
    return %c0_i32, %c0_i32_0 : i32, i32
  }
  func.func @transform_2(%arg0: i32) -> (i32, i32) {
    %c0_i32 = arith.constant 0 : i32
    %c0_i32_0 = arith.constant 0 : i32
    %c0_i32_1 = arith.constant 0 : i32
    return %c0_i32, %c0_i32_0 : i32, i32
  }
  func.func @transform_3(%arg0: i32) -> (i32, i32) {
    %c0_i32 = arith.constant 0 : i32
    %c0_i32_0 = arith.constant 0 : i32
    %c0_i32_1 = arith.constant 0 : i32
    return %c0_i32, %c0_i32_0 : i32, i32
  }
  func.func @transform_4(%arg0: i32) -> (i32, i32) {
    %c0_i32 = arith.constant 0 : i32
    %c0_i32_0 = arith.constant 0 : i32
    %c0_i32_1 = arith.constant 0 : i32
    return %c0_i32, %c0_i32_0 : i32, i32
  }
  func.func @transform_5(%arg0: i32) -> (i32, i32) {
    %c0_i32 = arith.constant 0 : i32
    %c0_i32_0 = arith.constant 0 : i32
    %c0_i32_1 = arith.constant 0 : i32
    return %c0_i32, %c0_i32_0 : i32, i32
  }
  func.func @transform_6(%arg0: i32) -> (i32, i32) {
    %c0_i32 = arith.constant 0 : i32
    %c0_i32_0 = arith.constant 0 : i32
    %c0_i32_1 = arith.constant 0 : i32
    return %c0_i32, %c0_i32_0 : i32, i32
  }
  func.func @transform_7(%arg0: i32) -> (i32, i32) {
    %c0_i32 = arith.constant 0 : i32
    %c0_i32_0 = arith.constant 0 : i32
    %c0_i32_1 = arith.constant 0 : i32
    return %c0_i32, %c0_i32_0 : i32, i32
  }
  func.func @transform_8(%arg0: i32) -> (i32, i32) {
    %c0_i32 = arith.constant 0 : i32
    %c0_i32_0 = arith.constant 0 : i32
    %c0_i32_1 = arith.constant 0 : i32
    return %c0_i32, %c0_i32_0 : i32, i32
  }
  func.func @transform_9(%arg0: i32) -> (i32, i32) {
    %c0_i32 = arith.constant 0 : i32
    %c0_i32_0 = arith.constant 0 : i32
    return %arg0, %c0_i32 : i32, i32
  }
}

</mosaic_0001>

<llo_original>
// kernel: tpu_custom_call.1
$region0: #{tpu_custom_call.1}
  #allocation0 [shape = 'u32[]', space=smem, size = 0x4, offset = 0x4, fixed_abs, tag = 'smem constant byte address 0x4 - core index']
  #allocation1 [shape = 'u32[144,128]{1,0:T(1,128)}', space=vmem, size = 0x12000, scoped, tag = 'internal scratch']
  %s0 = inlined_call_operand.hbm [shape: f32[48,1328], index: 0, kind: input, shape index: {}]
  %s1 = inlined_call_operand.hbm [shape: f32[1328,1024], index: 1, kind: input, shape index: {}]
  %s2 = inlined_call_operand.hbm [shape: f32[1,1024], index: 2, kind: input, shape index: {}]
  %s3 = inlined_call_operand.hbm [shape: f32[1024,512], index: 3, kind: input, shape index: {}]
  %s4 = inlined_call_operand.hbm [shape: f32[1,512], index: 4, kind: input, shape index: {}]
  %s5 = inlined_call_operand.hbm [shape: f32[512,256], index: 5, kind: input, shape index: {}]
  %s6 = inlined_call_operand.hbm [shape: f32[1,256], index: 6, kind: input, shape index: {}]
  %s7 = inlined_call_operand.hbm [shape: f32[256,128], index: 7, kind: input, shape index: {}]
  %s8 = inlined_call_operand.hbm [shape: f32[1,128], index: 8, kind: input, shape index: {}]
  %s9 = inlined_call_operand.hbm [shape: f32[48,128], index: 9, kind: output, shape index: {}]
  %s10 = sld [smem:[#allocation0]]
  $region105: #{tpu_custom_call.1} parent=0
    _
  %s12 = ssub.s32 1, %s10
  %s13 = scalar_select 0, %s12, %s10
  $region1: #{tpu_custom_call.1} parent=0
    #allocation2 [shape = 'u8[180224]{0}', space=vmem, size = 0x2c000, scoped, tag = 'input window, operand 0']
    #allocation3 [shape = 's32[2]{0}', space=sflag, size = 0x8, scoped, tag = 'scoped memory for tpu_custom_call.1']
    #allocation4 [shape = 's32[2]{0}', space=sflag, size = 0x8, scoped, tag = 'scoped memory for tpu_custom_call.1']
    #allocation5 [shape = 'u8[5439488]{0}', space=vmem, size = 0x530000, scoped, tag = 'input window, operand 1, single buffered']
    #allocation6 [shape = 's32[1]{0}', space=sflag, size = 0x4, scoped, tag = 'scoped memory for tpu_custom_call.1']
    #allocation7 [shape = 'u8[4096]{0}', space=vmem, size = 0x1000, scoped, tag = 'input window, operand 2, single buffered']
    #allocation8 [shape = 'u8[2097152]{0}', space=vmem, size = 0x200000, scoped, tag = 'input window, operand 3, single buffered']
    #allocation9 [shape = 's32[1]{0}', space=sflag, size = 0x4, scoped, tag = 'scoped memory for tpu_custom_call.1']
    #allocation10 [shape = 'u8[2048]{0}', space=vmem, size = 0x800, scoped, tag = 'input window, operand 4, single buffered']
    #allocation11 [shape = 'u8[524288]{0}', space=vmem, size = 0x80000, scoped, tag = 'input window, operand 5, single buffered']
    #allocation12 [shape = 's32[1]{0}', space=sflag, size = 0x4, scoped, tag = 'scoped memory for tpu_custom_call.1']
    #allocation13 [shape = 'u8[1024]{0}', space=vmem, size = 0x400, scoped, tag = 'input window, operand 6, single buffered']
    #allocation14 [shape = 'u8[131072]{0}', space=vmem, size = 0x20000, scoped, tag = 'input window, operand 7, single buffered']
    #allocation15 [shape = 's32[1]{0}', space=sflag, size = 0x4, scoped, tag = 'scoped memory for tpu_custom_call.1']
    #allocation16 [shape = 'u8[512]{0}', space=vmem, size = 0x400, scoped, tag = 'input window, operand 8, single buffered']
    #allocation17 [shape = 'u8[16384]{0}', space=vmem, size = 0x4000, scoped, tag = 'output window, operand 0']
    %14 = vsyncpa [#allocation3], 0
    %s15 = scalar_lea.sflag [#allocation3], 1
    %16 = vsyncpa %s15, 0
    %17 = vsyncpa [#allocation6], 0
    %18 = vsyncpa [#allocation9], 0
    %19 = vsyncpa [#allocation12], 0
    %20 = vsyncpa [#allocation15], 0
    %21 = vsyncpa [#allocation4], 0
    %s22 = scalar_lea.sflag [#allocation4], 1
    %23 = vsyncpa %s22, 0
    loop: start=0, step=1, limit=5
    $region2: #{tpu_custom_call.1} parent=1 // loop_pre_header
      _
    $region3: #{tpu_custom_call.1} parent=1 // loop_header
      %s25 = sphi 0, %s29
      %p26 = scmp.ge.s32.totalorder %s25, 5
      %s35 = sphi 0, %s37
      %s38 = sphi 0, %s35
      %s39 = sphi 0, %s38
      %s55 = sphi 0, %s39
      %s59 = sphi 0, %s59
      %s61 = sphi 0, %s59
      %s62 = sphi 0, %s61
      %s76 = sphi 0, %s62
      %s80 = sphi 0, %s80
      %s82 = sphi 0, %s80
      %s83 = sphi 0, %s82
      %s97 = sphi 0, %s83
      %s101 = sphi 0, %s101
      %s103 = sphi 0, %s101
      %s104 = sphi 0, %s103
      %s118 = sphi 0, %s104
      %s122 = sphi 0, %s122
      %s124 = sphi 0, %s122
      %s125 = sphi 0, %s124
      %s139 = sphi 0, %s125
      %s143 = sphi 0, %s143
      %s145 = sphi 0, %s143
      %s146 = sphi 0, %s145
      %s160 = sphi 0, %s146
      %s164 = sphi 0, %s164
      %s166 = sphi 0, %s164
      %s167 = sphi 0, %s166
      %s181 = sphi 0, %s167
      %s185 = sphi 0, %s185
      %s187 = sphi 0, %s185
      %s188 = sphi 0, %s187
      %s202 = sphi 0, %s188
      %s206 = sphi 0, %s206
      %s208 = sphi 0, %s206
      %s209 = sphi 0, %s208
      %s223 = sphi 0, %s209
      %s229 = sphi 0, %s231
      %s232 = sphi 0, %s229
      %s233 = sphi 0, %s232
      %s249 = sphi 0, %s233
    $region4: #{tpu_custom_call.1} parent=1 // loop_header_branch
      %28 = sbr.rel (%p26) target = $region8
    $region5: #{tpu_custom_call.1} parent=1 // loop_body
      %s30 = ssub.s32 %s25, 1
      %s31 = ssub.s32 %s25, 2
      %s32 = sadd.s32 %s25, 1
      %s33 = ssub.s32 %s25, %s32
      %p34 = scmp.eq.s32.totalorder %s33, 0
      %s36 = sadd.s32 %s35, 1
      %s37 = scalar_select %p34, %s35, %s36
      %p40 = pneg %p34
      %p41 = scmp.eq.s32.totalorder %s25, 2
      %p42 = por %p40, %p41
      %p43 = scmp.ne.s32.totalorder %s35, %s38
      %p44 = scmp.eq.s32.totalorder %s25, 0
      %p45 = por %p43, %p44
      %p46 = scmp.ne.s32.totalorder %s35, %s38
      %p47 = scmp.eq.s32.totalorder %s30, 2
      %p48 = por %p46, %p47
      %p49 = scmp.ne.s32.totalorder %s38, %s39
      %p50 = scmp.eq.s32.totalorder %s30, 0
      %p51 = por %p49, %p50
      %p52 = scmp.ne.s32.totalorder %s38, %s39
      %p53 = scmp.eq.s32.totalorder %s31, 2
      %p54 = por %p52, %p53
      %p56 = scmp.ne.s32.totalorder %s39, %s55
      %p57 = scmp.eq.s32.totalorder %s31, 0
      %p58 = por %p56, %p57
      %s60 = sadd.s32 %s59, 1
      %p63 = scmp.eq.s32.totalorder %s25, 2
      %p64 = scmp.ne.s32.totalorder %s59, %s61
      %p65 = scmp.eq.s32.totalorder %s25, 0
      %p66 = por %p64, %p65
      %p67 = scmp.ne.s32.totalorder %s59, %s61
      %p68 = scmp.eq.s32.totalorder %s30, 2
      %p69 = por %p67, %p68
      %p70 = scmp.ne.s32.totalorder %s61, %s62
      %p71 = scmp.eq.s32.totalorder %s30, 0
      %p72 = por %p70, %p71
      %p73 = scmp.ne.s32.totalorder %s61, %s62
      %p74 = scmp.eq.s32.totalorder %s31, 2
      %p75 = por %p73, %p74
      %p77 = scmp.ne.s32.totalorder %s62, %s76
      %p78 = scmp.eq.s32.totalorder %s31, 0
      %p79 = por %p77, %p78
      %s81 = sadd.s32 %s80, 1
      %p84 = scmp.eq.s32.totalorder %s25, 2
      %p85 = scmp.ne.s32.totalorder %s80, %s82
      %p86 = scmp.eq.s32.totalorder %s25, 0
      %p87 = por %p85, %p86
      %p88 = scmp.ne.s32.totalorder %s80, %s82
      %p89 = scmp.eq.s32.totalorder %s30, 2
      %p90 = por %p88, %p89
      %p91 = scmp.ne.s32.totalorder %s82, %s83
      %p92 = scmp.eq.s32.totalorder %s30, 0
      %p93 = por %p91, %p92
      %p94 = scmp.ne.s32.totalorder %s82, %s83
      %p95 = scmp.eq.s32.totalorder %s31, 2
      %p96 = por %p94, %p95
      %p98 = scmp.ne.s32.totalorder %s83, %s97
      %p99 = scmp.eq.s32.totalorder %s31, 0
      %p100 = por %p98, %p99
      %s102 = sadd.s32 %s101, 1
      %p105 = scmp.eq.s32.totalorder %s25, 2
      %p106 = scmp.ne.s32.totalorder %s101, %s103
      %p107 = scmp.eq.s32.totalorder %s25, 0
      %p108 = por %p106, %p107
      %p109 = scmp.ne.s32.totalorder %s101, %s103
      %p110 = scmp.eq.s32.totalorder %s30, 2
      %p111 = por %p109, %p110
      %p112 = scmp.ne.s32.totalorder %s103, %s104
      %p113 = scmp.eq.s32.totalorder %s30, 0
      %p114 = por %p112, %p113
      %p115 = scmp.ne.s32.totalorder %s103, %s104
      %p116 = scmp.eq.s32.totalorder %s31, 2
      %p117 = por %p115, %p116
      %p119 = scmp.ne.s32.totalorder %s104, %s118
      %p120 = scmp.eq.s32.totalorder %s31, 0
      %p121 = por %p119, %p120
      %s123 = sadd.s32 %s122, 1
      %p126 = scmp.eq.s32.totalorder %s25, 2
      %p127 = scmp.ne.s32.totalorder %s122, %s124
      %p128 = scmp.eq.s32.totalorder %s25, 0
      %p129 = por %p127, %p128
      %p130 = scmp.ne.s32.totalorder %s122, %s124
      %p131 = scmp.eq.s32.totalorder %s30, 2
      %p132 = por %p130, %p131
      %p133 = scmp.ne.s32.totalorder %s124, %s125
      %p134 = scmp.eq.s32.totalorder %s30, 0
      %p135 = por %p133, %p134
      %p136 = scmp.ne.s32.totalorder %s124, %s125
      %p137 = scmp.eq.s32.totalorder %s31, 2
      %p138 = por %p136, %p137
      %p140 = scmp.ne.s32.totalorder %s125, %s139
      %p141 = scmp.eq.s32.totalorder %s31, 0
      %p142 = por %p140, %p141
      %s144 = sadd.s32 %s143, 1
      %p147 = scmp.eq.s32.totalorder %s25, 2
      %p148 = scmp.ne.s32.totalorder %s143, %s145
      %p149 = scmp.eq.s32.totalorder %s25, 0
      %p150 = por %p148, %p149
      %p151 = scmp.ne.s32.totalorder %s143, %s145
      %p152 = scmp.eq.s32.totalorder %s30, 2
      %p153 = por %p151, %p152
      %p154 = scmp.ne.s32.totalorder %s145, %s146
      %p155 = scmp.eq.s32.totalorder %s30, 0
      %p156 = por %p154, %p155
      %p157 = scmp.ne.s32.totalorder %s145, %s146
      %p158 = scmp.eq.s32.totalorder %s31, 2
      %p159 = por %p157, %p158
      %p161 = scmp.ne.s32.totalorder %s146, %s160
      %p162 = scmp.eq.s32.totalorder %s31, 0
      %p163 = por %p161, %p162
      %s165 = sadd.s32 %s164, 1
      %p168 = scmp.eq.s32.totalorder %s25, 2
      %p169 = scmp.ne.s32.totalorder %s164, %s166
      %p170 = scmp.eq.s32.totalorder %s25, 0
      %p171 = por %p169, %p170
      %p172 = scmp.ne.s32.totalorder %s164, %s166
      %p173 = scmp.eq.s32.totalorder %s30, 2
      %p174 = por %p172, %p173
      %p175 = scmp.ne.s32.totalorder %s166, %s167
      %p176 = scmp.eq.s32.totalorder %s30, 0
      %p177 = por %p175, %p176
      %p178 = scmp.ne.s32.totalorder %s166, %s167
      %p179 = scmp.eq.s32.totalorder %s31, 2
      %p180 = por %p178, %p179
      %p182 = scmp.ne.s32.totalorder %s167, %s181
      %p183 = scmp.eq.s32.totalorder %s31, 0
      %p184 = por %p182, %p183
      %s186 = sadd.s32 %s185, 1
      %p189 = scmp.eq.s32.totalorder %s25, 2
      %p190 = scmp.ne.s32.totalorder %s185, %s187
      %p191 = scmp.eq.s32.totalorder %s25, 0
      %p192 = por %p190, %p191
      %p193 = scmp.ne.s32.totalorder %s185, %s187
      %p194 = scmp.eq.s32.totalorder %s30, 2
      %p195 = por %p193, %p194
      %p196 = scmp.ne.s32.totalorder %s187, %s188
      %p197 = scmp.eq.s32.totalorder %s30, 0
      %p198 = por %p196, %p197
      %p199 = scmp.ne.s32.totalorder %s187, %s188
      %p200 = scmp.eq.s32.totalorder %s31, 2
      %p201 = por %p199, %p200
      %p203 = scmp.ne.s32.totalorder %s188, %s202
      %p204 = scmp.eq.s32.totalorder %s31, 0
      %p205 = por %p203, %p204
      %s207 = sadd.s32 %s206, 1
      %p210 = scmp.eq.s32.totalorder %s25, 2
      %p211 = scmp.ne.s32.totalorder %s206, %s208
      %p212 = scmp.eq.s32.totalorder %s25, 0
      %p213 = por %p211, %p212
      %p214 = scmp.ne.s32.totalorder %s206, %s208
      %p215 = scmp.eq.s32.totalorder %s30, 2
      %p216 = por %p214, %p215
      %p217 = scmp.ne.s32.totalorder %s208, %s209
      %p218 = scmp.eq.s32.totalorder %s30, 0
      %p219 = por %p217, %p218
      %p220 = scmp.ne.s32.totalorder %s208, %s209
      %p221 = scmp.eq.s32.totalorder %s31, 2
      %p222 = por %p220, %p221
      %p224 = scmp.ne.s32.totalorder %s209, %s223
      %p225 = scmp.eq.s32.totalorder %s31, 0
      %p226 = por %p224, %p225
      %s227 = ssub.s32 %s25, %s32
      %p228 = scmp.eq.s32.totalorder %s227, 0
      %s230 = sadd.s32 %s229, 1
      %s231 = scalar_select %p228, %s229, %s230
      %p234 = pneg %p228
      %p235 = scmp.eq.s32.totalorder %s25, 2
      %p236 = por %p234, %p235
      %p237 = scmp.ne.s32.totalorder %s229, %s232
      %p238 = scmp.eq.s32.totalorder %s25, 0
      %p239 = por %p237, %p238
      %p240 = scmp.ne.s32.totalorder %s229, %s232
      %p241 = scmp.eq.s32.totalorder %s30, 2
      %p242 = por %p240, %p241
      %p243 = scmp.ne.s32.totalorder %s232, %s233
      %p244 = scmp.eq.s32.totalorder %s30, 0
      %p245 = por %p243, %p244
      %p246 = scmp.ne.s32.totalorder %s232, %s233
      %p247 = scmp.eq.s32.totalorder %s31, 2
      %p248 = por %p246, %p247
      %p250 = scmp.ne.s32.totalorder %s233, %s249
      %p251 = scmp.eq.s32.totalorder %s31, 0
      %p252 = por %p250, %p251
      %p253 = scmp.le.s32.totalorder 1, %s25
      %p254 = scmp.lt.s32.totalorder %s25, 4
      %p255 = pnand %p253, %p254
      %p256 = pneg %p255
      // Predicated region
      $region9: #{tpu_custom_call.1} parent=5 // pred_check
        _
      $region10: #{tpu_custom_call.1} parent=5 // pred_check_branch
        %258 = sbr.rel (%p255) target = $region12
      $region11: #{tpu_custom_call.1} parent=5 // pred_region
        %s259 = ssub.s32 %s25, 1
        // Predicated region
        $region13: #{tpu_custom_call.1} parent=11 // pred_check
          %p260 = pneg %p72
        $region14: #{tpu_custom_call.1} parent=11 // pred_check_branch
          %262 = sbr.rel (%p260) target = $region16
        $region15: #{tpu_custom_call.1} parent=11 // pred_region
          %s264 = ssub.s32 169984, 169984
          %265 = vsyncadd [#allocation6], %s264
          %s266 = sshll.u32 [#allocation5], 4
          %s267 = int_to_ptr.vmem [resolvable:$true] %s266
          %272 = dma.hbm_to_vmem [thread:$0]  %s1, 169984, %s267, [#allocation6], 1024, 1024, 64
        $region16: #{tpu_custom_call.1} parent=11 // pred_fallthru
          _
        // Predicated region
        $region17: #{tpu_custom_call.1} parent=11 // pred_check
          %p273 = pneg %p93
        $region18: #{tpu_custom_call.1} parent=11 // pred_check_branch
          %275 = sbr.rel (%p273) target = $region20
        $region19: #{tpu_custom_call.1} parent=11 // pred_region
          %s277 = ssub.s32 128, 128
          %278 = vsyncadd [#allocation6], %s277
          %s280 = sshll.u32 [#allocation7], 4
          %s281 = int_to_ptr.vmem [resolvable:$true] %s280
          %283 = dma.hbm_to_vmem [thread:$0]  %s2, 128, %s281, [#allocation6]
        $region20: #{tpu_custom_call.1} parent=11 // pred_fallthru
          _
        // Predicated region
        $region21: #{tpu_custom_call.1} parent=11 // pred_check
          %p284 = pneg %p114
        $region22: #{tpu_custom_call.1} parent=11 // pred_check_branch
          %286 = sbr.rel (%p284) target = $region24
        $region23: #{tpu_custom_call.1} parent=11 // pred_region
          %s288 = ssub.s32 65536, 65536
          %289 = vsyncadd [#allocation9], %s288
          %s290 = sshll.u32 [#allocation8], 4
          %s291 = int_to_ptr.vmem [resolvable:$true] %s290
          %296 = dma.hbm_to_vmem [thread:$0]  %s3, 65536, %s291, [#allocation9], 512, 512, 32
        $region24: #{tpu_custom_call.1} parent=11 // pred_fallthru
          _
        // Predicated region
        $region25: #{tpu_custom_call.1} parent=11 // pred_check
          %p297 = pneg %p135
        $region26: #{tpu_custom_call.1} parent=11 // pred_check_branch
          %299 = sbr.rel (%p297) target = $region28
        $region27: #{tpu_custom_call.1} parent=11 // pred_region
          %s301 = ssub.s32 64, 64
          %302 = vsyncadd [#allocation9], %s301
          %s304 = sshll.u32 [#allocation10], 4
          %s305 = int_to_ptr.vmem [resolvable:$true] %s304
          %307 = dma.hbm_to_vmem [thread:$0]  %s4, 64, %s305, [#allocation9]
        $region28: #{tpu_custom_call.1} parent=11 // pred_fallthru
          _
        // Predicated region
        $region29: #{tpu_custom_call.1} parent=11 // pred_check
          %p308 = pneg %p156
        $region30: #{tpu_custom_call.1} parent=11 // pred_check_branch
          %310 = sbr.rel (%p308) target = $region32
        $region31: #{tpu_custom_call.1} parent=11 // pred_region
          %s312 = ssub.s32 16384, 16384
          %313 = vsyncadd [#allocation12], %s312
          %s314 = sshll.u32 [#allocation11], 4
          %s315 = int_to_ptr.vmem [resolvable:$true] %s314
          %320 = dma.hbm_to_vmem [thread:$0]  %s5, 16384, %s315, [#allocation12], 256, 256, 16
        $region32: #{tpu_custom_call.1} parent=11 // pred_fallthru
          _
        // Predicated region
        $region33: #{tpu_custom_call.1} parent=11 // pred_check
          %p321 = pneg %p177
        $region34: #{tpu_custom_call.1} parent=11 // pred_check_branch
          %323 = sbr.rel (%p321) target = $region36
        $region35: #{tpu_custom_call.1} parent=11 // pred_region
          %s325 = ssub.s32 32, 32
          %326 = vsyncadd [#allocation12], %s325
          %s328 = sshll.u32 [#allocation13], 4
          %s329 = int_to_ptr.vmem [resolvable:$true] %s328
          %331 = dma.hbm_to_vmem [thread:$0]  %s6, 32, %s329, [#allocation12]
        $region36: #{tpu_custom_call.1} parent=11 // pred_fallthru
          _
        // Predicated region
        $region37: #{tpu_custom_call.1} parent=11 // pred_check
          %p332 = pneg %p198
        $region38: #{tpu_custom_call.1} parent=11 // pred_check_branch
          %334 = sbr.rel (%p332) target = $region40
        $region39: #{tpu_custom_call.1} parent=11 // pred_region
          %s336 = ssub.s32 4096, 4096
          %337 = vsyncadd [#allocation15], %s336
          %s338 = sshll.u32 [#allocation14], 4
          %s339 = int_to_ptr.vmem [resolvable:$true] %s338
          %344 = dma.hbm_to_vmem [thread:$0]  %s7, 4096, %s339, [#allocation15], 128, 128, 8
        $region40: #{tpu_custom_call.1} parent=11 // pred_fallthru
          _
        // Predicated region
        $region41: #{tpu_custom_call.1} parent=11 // pred_check
          %p345 = pneg %p219
        $region42: #{tpu_custom_call.1} parent=11 // pred_check_branch
          %347 = sbr.rel (%p345) target = $region44
        $region43: #{tpu_custom_call.1} parent=11 // pred_region
          %s349 = ssub.s32 16, 16
          %350 = vsyncadd [#allocation15], %s349
          %s352 = sshll.u32 [#allocation16], 4
          %s353 = int_to_ptr.vmem [resolvable:$true] %s352
          %355 = dma.hbm_to_vmem [thread:$0]  %s8, 16, %s353, [#allocation15]
        $region44: #{tpu_custom_call.1} parent=11 // pred_fallthru
          _
      $region12: #{tpu_custom_call.1} parent=5 // pred_fallthru
        _
      %p356 = scmp.lt.s32.totalorder %s25, 3
      // Predicated region
      $region45: #{tpu_custom_call.1} parent=5 // pred_check
        %p357 = pneg %p356
      $region46: #{tpu_custom_call.1} parent=5 // pred_check_branch
        %359 = sbr.rel (%p357) target = $region48
      $region47: #{tpu_custom_call.1} parent=5 // pred_region
        // Predicated region
        $region49: #{tpu_custom_call.1} parent=47 // pred_check
          %p360 = pneg %p45
        $region50: #{tpu_custom_call.1} parent=47 // pred_check_branch
          %362 = sbr.rel (%p360) target = $region52
        $region51: #{tpu_custom_call.1} parent=47 // pred_region
          %s363 = sand.u32 %s35, 1
          %s364 = scalar_lea.sflag [#allocation3], %s363
          %s365 = sand.u32 %s35, 1
          %s366 = smul.addr %s365, 176
          %s367 = scalar_lea.vmem [#allocation2], %s366
          %s368 = smul.u32 2, %s25
          %s370 = ssub.s32 2816, 2816
          %371 = vsyncadd %s364, %s370
          %s372 = smul.addr %s368, 11
          %s373 = smul.addr %s372, 128
          %s374 = scalar_lea.hbm %s0, %s373
          %s375 = sshll.u32 %s367, 4
          %s376 = int_to_ptr.vmem [resolvable:$true] %s375
          %381 = dma.hbm_to_vmem [thread:$0]  %s374, 2816, %s376, %s364, 1408, 1408, 88
        $region52: #{tpu_custom_call.1} parent=47 // pred_fallthru
          _
      $region48: #{tpu_custom_call.1} parent=5 // pred_fallthru
        _
      %p382 = scmp.le.s32.totalorder 1, %s25
      %p383 = scmp.lt.s32.totalorder %s25, 4
      %p384 = pnand %p382, %p383
      %p385 = pneg %p384
      // Predicated region
      $region53: #{tpu_custom_call.1} parent=5 // pred_check
        _
      $region54: #{tpu_custom_call.1} parent=5 // pred_check_branch
        %387 = sbr.rel (%p384) target = $region56
      $region55: #{tpu_custom_call.1} parent=5 // pred_region
        %s388 = ssub.s32 %s25, 1
        %s389 = sand.u32 %s38, 1
        %s390 = scalar_lea.sflag [#allocation3], %s389
        %s391 = sand.u32 %s38, 1
        %s392 = smul.addr %s391, 176
        %s393 = scalar_lea.vmem [#allocation2], %s392
        // Predicated region
        $region57: #{tpu_custom_call.1} parent=55 // pred_check
          %p394 = pneg %p51
        $region58: #{tpu_custom_call.1} parent=55 // pred_check_branch
          %396 = sbr.rel (%p394) target = $region60
        $region59: #{tpu_custom_call.1} parent=55 // pred_region
          %397 = dma.done %s390, 2816
        $region60: #{tpu_custom_call.1} parent=55 // pred_fallthru
          _
        // Predicated region
        $region61: #{tpu_custom_call.1} parent=55 // pred_check
          %p398 = pneg %p72
        $region62: #{tpu_custom_call.1} parent=55 // pred_check_branch
          %400 = sbr.rel (%p398) target = $region64
        $region63: #{tpu_custom_call.1} parent=55 // pred_region
          %401 = dma.done [#allocation6], 169984
        $region64: #{tpu_custom_call.1} parent=55 // pred_fallthru
          _
        // Predicated region
        $region65: #{tpu_custom_call.1} parent=55 // pred_check
          %p402 = pneg %p93
        $region66: #{tpu_custom_call.1} parent=55 // pred_check_branch
          %404 = sbr.rel (%p402) target = $region68
        $region67: #{tpu_custom_call.1} parent=55 // pred_region
          %405 = dma.done [#allocation6], 128
        $region68: #{tpu_custom_call.1} parent=55 // pred_fallthru
          _
        // Predicated region
        $region69: #{tpu_custom_call.1} parent=55 // pred_check
          %p406 = pneg %p114
        $region70: #{tpu_custom_call.1} parent=55 // pred_check_branch
          %408 = sbr.rel (%p406) target = $region72
        $region71: #{tpu_custom_call.1} parent=55 // pred_region
          %409 = dma.done [#allocation9], 65536
        $region72: #{tpu_custom_call.1} parent=55 // pred_fallthru
          _
        // Predicated region
        $region73: #{tpu_custom_call.1} parent=55 // pred_check
          %p410 = pneg %p135
        $region74: #{tpu_custom_call.1} parent=55 // pred_check_branch
          %412 = sbr.rel (%p410) target = $region76
        $region75: #{tpu_custom_call.1} parent=55 // pred_region
          %413 = dma.done [#allocation9], 64
        $region76: #{tpu_custom_call.1} parent=55 // pred_fallthru
          _
        // Predicated region
        $region77: #{tpu_custom_call.1} parent=55 // pred_check
          %p414 = pneg %p156
        $region78: #{tpu_custom_call.1} parent=55 // pred_check_branch
          %416 = sbr.rel (%p414) target = $region80
        $region79: #{tpu_custom_call.1} parent=55 // pred_region
          %417 = dma.done [#allocation12], 16384
        $region80: #{tpu_custom_call.1} parent=55 // pred_fallthru
          _
        // Predicated region
        $region81: #{tpu_custom_call.1} parent=55 // pred_check
          %p418 = pneg %p177
        $region82: #{tpu_custom_call.1} parent=55 // pred_check_branch
          %420 = sbr.rel (%p418) target = $region84
        $region83: #{tpu_custom_call.1} parent=55 // pred_region
          %421 = dma.done [#allocation12], 32
        $region84: #{tpu_custom_call.1} parent=55 // pred_fallthru
          _
        // Predicated region
        $region85: #{tpu_custom_call.1} parent=55 // pred_check
          %p422 = pneg %p198
        $region86: #{tpu_custom_call.1} parent=55 // pred_check_branch
          %424 = sbr.rel (%p422) target = $region88
        $region87: #{tpu_custom_call.1} parent=55 // pred_region
          %425 = dma.done [#allocation15], 4096
        $region88: #{tpu_custom_call.1} parent=55 // pred_fallthru
          _
        // Predicated region
        $region89: #{tpu_custom_call.1} parent=55 // pred_check
          %p426 = pneg %p219
        $region90: #{tpu_custom_call.1} parent=55 // pred_check_branch
          %428 = sbr.rel (%p426) target = $region92
        $region91: #{tpu_custom_call.1} parent=55 // pred_region
          %429 = dma.done [#allocation15], 16
        $region92: #{tpu_custom_call.1} parent=55 // pred_fallthru
          _
        %s430 = sand.u32 %s38, 1
        %s431 = scalar_lea.sflag [#allocation3], %s430
        %s432 = sand.u32 %s38, 1
        %s433 = smul.addr %s432, 176
        %s434 = scalar_lea.vmem [#allocation2], %s433
        %p435 = pneg %p51
        %p436 = pneg %p48
        %p437 = pneg %p72
        %p438 = pneg %p69
        %p439 = pneg %p93
        %p440 = pneg %p90
        %p441 = pneg %p114
        %p442 = pneg %p111
        %p443 = pneg %p135
        %p444 = pneg %p132
        %p445 = pneg %p156
        %p446 = pneg %p153
        %p447 = pneg %p177
        %p448 = pneg %p174
        %p449 = pneg %p198
        %p450 = pneg %p195
        %p451 = pneg %p219
        %p452 = pneg %p216
        %p453 = pneg %p245
        %p454 = pneg %p242
        %s455 = sand.u32 %s232, 1
        %s456 = scalar_lea.sflag [#allocation4], %s455
        %s457 = sand.u32 %s232, 1
        %s458 = smul.addr %s457, 16
        %s459 = scalar_lea.vmem [#allocation17], %s458
        %s460 = smul.u32 2, %s30
        %s461 = smul.u32 2, %s30
        %v462 = vld [vmem:[%s393] sm:$0xff]
        %v463 = vld [vmem:[%s393 + $0x8] sm:$0xff]
        %v464 = vld [vmem:[%s393 + $0x10] sm:$0xff]
        %v465 = vld [vmem:[%s393 + $0x18] sm:$0xff]
        %v466 = vld [vmem:[%s393 + $0x20] sm:$0xff]
        %v467 = vld [vmem:[%s393 + $0x28] sm:$0xff]
        %v468 = vld [vmem:[%s393 + $0x30] sm:$0xff]
        %v469 = vld [vmem:[%s393 + $0x38] sm:$0xff]
        %v470 = vld [vmem:[%s393 + $0x40] sm:$0xff]
        %v471 = vld [vmem:[%s393 + $0x48] sm:$0xff]
        %v472 = vld [vmem:[%s393 + $0x50] sm:$0xff]
        %v473 = vld [vmem:[%s393 + $0x58] sm:$0xff]
        %v474 = vld [vmem:[%s393 + $0x60] sm:$0xff]
        %v475 = vld [vmem:[%s393 + $0x68] sm:$0xff]
        %v476 = vld [vmem:[%s393 + $0x70] sm:$0xff]
        %v477 = vld [vmem:[%s393 + $0x78] sm:$0xff]
        %v478 = vld [vmem:[%s393 + $0x80] sm:$0xff]
        %v479 = vld [vmem:[%s393 + $0x88] sm:$0xff]
        %v480 = vld [vmem:[%s393 + $0x90] sm:$0xff]
        %v481 = vld [vmem:[%s393 + $0x98] sm:$0xff]
        %v482 = vld [vmem:[%s393 + $0xa0] sm:$0xff]
        %v483 = vld [vmem:[%s393 + $0xa8] sm:$0xff]
        %v484 = vld [vmem:[#allocation5] sm:$0xff]
        %v485 = vld [vmem:[#allocation5 + $0x8] sm:$0xff]
        %v486 = vld [vmem:[#allocation5 + $0x10] sm:$0xff]
        %v487 = vld [vmem:[#allocation5 + $0x18] sm:$0xff]
        %v488 = vld [vmem:[#allocation5 + $0x20] sm:$0xff]
        %v489 = vld [vmem:[#allocation5 + $0x28] sm:$0xff]
        %v490 = vld [vmem:[#allocation5 + $0x30] sm:$0xff]
        %v491 = vld [vmem:[#allocation5 + $0x38] sm:$0xff]
        %v492 = vld [vmem:[#allocation5 + $0x40] sm:$0xff]
        %v493 = vld [vmem:[#allocation5 + $0x48] sm:$0xff]
        %v494 = vld [vmem:[#allocation5 + $0x50] sm:$0xff]
        %v495 = vld [vmem:[#allocation5 + $0x58] sm:$0xff]
        %v496 = vld [vmem:[#allocation5 + $0x60] sm:$0xff]
        %v497 = vld [vmem:[#allocation5 + $0x68] sm:$0xff]
        %v498 = vld [vmem:[#allocation5 + $0x70] sm:$0xff]
        %v499 = vld [vmem:[#allocation5 + $0x78] sm:$0xff]
        %v500 = vld [vmem:[#allocation5 + $0x80] sm:$0xff]
        %v501 = vld [vmem:[#allocation5 + $0x88] sm:$0xff]
        %v502 = vld [vmem:[#allocation5 + $0x90] sm:$0xff]
        %v503 = vld [vmem:[#allocation5 + $0x98] sm:$0xff]
        %v504 = vld [vmem:[#allocation5 + $0xa0] sm:$0xff]
        %v505 = vld [vmem:[#allocation5 + $0xa8] sm:$0xff]
        %v506 = vld [vmem:[#allocation5 + $0xb0] sm:$0xff]
        %v507 = vld [vmem:[#allocation5 + $0xb8] sm:$0xff]
        %v508 = vld [vmem:[#allocation5 + $0xc0] sm:$0xff]
        %v509 = vld [vmem:[#allocation5 + $0xc8] sm:$0xff]
        %v510 = vld [vmem:[#allocation5 + $0xd0] sm:$0xff]
        %v511 = vld [vmem:[#allocation5 + $0xd8] sm:$0xff]
        %v512 = vld [vmem:[#allocation5 + $0xe0] sm:$0xff]
        %v513 = vld [vmem:[#allocation5 + $0xe8] sm:$0xff]
        %v514 = vld [vmem:[#allocation5 + $0xf0] sm:$0xff]
        %v515 = vld [vmem:[#allocation5 + $0xf8] sm:$0xff]
        %v516 = vld [vmem:[#allocation5 + $0x100] sm:$0xff]
        %v517 = vld [vmem:[#allocation5 + $0x108] sm:$0xff]
        %v518 = vld [vmem:[#allocation5 + $0x110] sm:$0xff]
        %v519 = vld [vmem:[#allocation5 + $0x118] sm:$0xff]
        %v520 = vld [vmem:[#allocation5 + $0x120] sm:$0xff]
        %v521 = vld [vmem:[#allocation5 + $0x128] sm:$0xff]
        %v522 = vld [vmem:[#allocation5 + $0x130] sm:$0xff]
        %v523 = vld [vmem:[#allocation5 + $0x138] sm:$0xff]
        %v524 = vld [vmem:[#allocation5 + $0x140] sm:$0xff]
        %v525 = vld [vmem:[#allocation5 + $0x148] sm:$0xff]
        %v526 = vld [vmem:[#allocation5 + $0x150] sm:$0xff]
        %v527 = vld [vmem:[#allocation5 + $0x158] sm:$0xff]
        %v528 = vld [vmem:[#allocation5 + $0x160] sm:$0xff]
        %v529 = vld [vmem:[#allocation5 + $0x168] sm:$0xff]
        %v530 = vld [vmem:[#allocation5 + $0x170] sm:$0xff]
        %v531 = vld [vmem:[#allocation5 + $0x178] sm:$0xff]
        %v532 = vld [vmem:[#allocation5 + $0x180] sm:$0xff]
        %v533 = vld [vmem:[#allocation5 + $0x188] sm:$0xff]
        %v534 = vld [vmem:[#allocation5 + $0x190] sm:$0xff]
        %v535 = vld [vmem:[#allocation5 + $0x198] sm:$0xff]
        %v536 = vld [vmem:[#allocation5 + $0x1a0] sm:$0xff]
        %v537 = vld [vmem:[#allocation5 + $0x1a8] sm:$0xff]
        %v538 = vld [vmem:[#allocation5 + $0x1b0] sm:$0xff]
        %v539 = vld [vmem:[#allocation5 + $0x1b8] sm:$0xff]
        %v540 = vld [vmem:[#allocation5 + $0x1c0] sm:$0xff]
        %v541 = vld [vmem:[#allocation5 + $0x1c8] sm:$0xff]
        %v542 = vld [vmem:[#allocation5 + $0x1d0] sm:$0xff]
        %v543 = vld [vmem:[#allocation5 + $0x1d8] sm:$0xff]
        %v544 = vld [vmem:[#allocation5 + $0x1e0] sm:$0xff]
        %v545 = vld [vmem:[#allocation5 + $0x1e8] sm:$0xff]
        %v546 = vld [vmem:[#allocation5 + $0x1f0] sm:$0xff]
        %v547 = vld [vmem:[#allocation5 + $0x1f8] sm:$0xff]
        %v548 = vld [vmem:[#allocation5 + $0x200] sm:$0xff]
        %v549 = vld [vmem:[#allocation5 + $0x208] sm:$0xff]
        %v550 = vld [vmem:[#allocation5 + $0x210] sm:$0xff]
        %v551 = vld [vmem:[#allocation5 + $0x218] sm:$0xff]
        %v552 = vld [vmem:[#allocation5 + $0x220] sm:$0xff]
        %v553 = vld [vmem:[#allocation5 + $0x228] sm:$0xff]
        %v554 = vld [vmem:[#allocation5 + $0x230] sm:$0xff]
        %v555 = vld [vmem:[#allocation5 + $0x238] sm:$0xff]
        %v556 = vld [vmem:[#allocation5 + $0x240] sm:$0xff]
        %v557 = vld [vmem:[#allocation5 + $0x248] sm:$0xff]
        %v558 = vld [vmem:[#allocation5 + $0x250] sm:$0xff]
        %v559 = vld [vmem:[#allocation5 + $0x258] sm:$0xff]
        %v560 = vld [vmem:[#allocation5 + $0x260] sm:$0xff]
        %v561 = vld [vmem:[#allocation5 + $0x268] sm:$0xff]
        %v562 = vld [vmem:[#allocation5 + $0x270] sm:$0xff]
        %v563 = vld [vmem:[#allocation5 + $0x278] sm:$0xff]
        %v564 = vld [vmem:[#allocation5 + $0x280] sm:$0xff]
        %v565 = vld [vmem:[#allocation5 + $0x288] sm:$0xff]
        %v566 = vld [vmem:[#allocation5 + $0x290] sm:$0xff]
        %v567 = vld [vmem:[#allocation5 + $0x298] sm:$0xff]
        %v568 = vld [vmem:[#allocation5 + $0x2a0] sm:$0xff]
        %v569 = vld [vmem:[#allocation5 + $0x2a8] sm:$0xff]
        %v570 = vld [vmem:[#allocation5 + $0x2b0] sm:$0xff]
        %v571 = vld [vmem:[#allocation5 + $0x2b8] sm:$0xff]
        %v572 = vld [vmem:[#allocation5 + $0x2c0] sm:$0xff]
        %v573 = vld [vmem:[#allocation5 + $0x2c8] sm:$0xff]
        %v574 = vld [vmem:[#allocation5 + $0x2d0] sm:$0xff]
        %v575 = vld [vmem:[#allocation5 + $0x2d8] sm:$0xff]
        %v576 = vld [vmem:[#allocation5 + $0x2e0] sm:$0xff]
        %v577 = vld [vmem:[#allocation5 + $0x2e8] sm:$0xff]
        %v578 = vld [vmem:[#allocation5 + $0x2f0] sm:$0xff]
        %v579 = vld [vmem:[#allocation5 + $0x2f8] sm:$0xff]
        %v580 = vld [vmem:[#allocation5 + $0x300] sm:$0xff]
        %v581 = vld [vmem:[#allocation5 + $0x308] sm:$0xff]
        %v582 = vld [vmem:[#allocation5 + $0x310] sm:$0xff]
        %v583 = vld [vmem:[#allocation5 + $0x318] sm:$0xff]
        %v584 = vld [vmem:[#allocation5 + $0x320] sm:$0xff]
        %v585 = vld [vmem:[#allocation5 + $0x328] sm:$0xff]
        %v586 = vld [vmem:[#allocation5 + $0x330] sm:$0xff]
        %v587 = vld [vmem:[#allocation5 + $0x338] sm:$0xff]
        %v588 = vld [vmem:[#allocation5 + $0x340] sm:$0xff]
        %v589 = vld [vmem:[#allocation5 + $0x348] sm:$0xff]
        %v590 = vld [vmem:[#allocation5 + $0x350] sm:$0xff]
        %v591 = vld [vmem:[#allocation5 + $0x358] sm:$0xff]
        %v592 = vld [vmem:[#allocation5 + $0x360] sm:$0xff]
        %v593 = vld [vmem:[#allocation5 + $0x368] sm:$0xff]
        %v594 = vld [vmem:[#allocation5 + $0x370] sm:$0xff]
        %v595 = vld [vmem:[#allocation5 + $0x378] sm:$0xff]
        %v596 = vld [vmem:[#allocation5 + $0x380] sm:$0xff]
        %v597 = vld [vmem:[#allocation5 + $0x388] sm:$0xff]
        %v598 = vld [vmem:[#allocation5 + $0x390] sm:$0xff]
        %v599 = vld [vmem:[#allocation5 + $0x398] sm:$0xff]
        %v600 = vld [vmem:[#allocation5 + $0x3a0] sm:$0xff]
        %v601 = vld [vmem:[#allocation5 + $0x3a8] sm:$0xff]
        %v602 = vld [vmem:[#allocation5 + $0x3b0] sm:$0xff]
        %v603 = vld [vmem:[#allocation5 + $0x3b8] sm:$0xff]
        %v604 = vld [vmem:[#allocation5 + $0x3c0] sm:$0xff]
        %v605 = vld [vmem:[#allocation5 + $0x3c8] sm:$0xff]
        %v606 = vld [vmem:[#allocation5 + $0x3d0] sm:$0xff]
        %v607 = vld [vmem:[#allocation5 + $0x3d8] sm:$0xff]
        %v608 = vld [vmem:[#allocation5 + $0x3e0] sm:$0xff]
        %v609 = vld [vmem:[#allocation5 + $0x3e8] sm:$0xff]
        %v610 = vld [vmem:[#allocation5 + $0x3f0] sm:$0xff]
        %v611 = vld [vmem:[#allocation5 + $0x3f8] sm:$0xff]
        %v612 = vld [vmem:[#allocation5 + $0x400] sm:$0xff]
        %v613 = vld [vmem:[#allocation5 + $0x408] sm:$0xff]
        %v614 = vld [vmem:[#allocation5 + $0x410] sm:$0xff]
        %v615 = vld [vmem:[#allocation5 + $0x418] sm:$0xff]
        %v616 = vld [vmem:[#allocation5 + $0x420] sm:$0xff]
        %v617 = vld [vmem:[#allocation5 + $0x428] sm:$0xff]
        %v618 = vld [vmem:[#allocation5 + $0x430] sm:$0xff]
        %v619 = vld [vmem:[#allocation5 + $0x438] sm:$0xff]
        %v620 = vld [vmem:[#allocation5 + $0x440] sm:$0xff]
        %v621 = vld [vmem:[#allocation5 + $0x448] sm:$0xff]
        %v622 = vld [vmem:[#allocation5 + $0x450] sm:$0xff]
        %v623 = vld [vmem:[#allocation5 + $0x458] sm:$0xff]
        %v624 = vld [vmem:[#allocation5 + $0x460] sm:$0xff]
        %v625 = vld [vmem:[#allocation5 + $0x468] sm:$0xff]
        %v626 = vld [vmem:[#allocation5 + $0x470] sm:$0xff]
        %v627 = vld [vmem:[#allocation5 + $0x478] sm:$0xff]
        %v628 = vld [vmem:[#allocation5 + $0x480] sm:$0xff]
        %v629 = vld [vmem:[#allocation5 + $0x488] sm:$0xff]
        %v630 = vld [vmem:[#allocation5 + $0x490] sm:$0xff]
        %v631 = vld [vmem:[#allocation5 + $0x498] sm:$0xff]
        %v632 = vld [vmem:[#allocation5 + $0x4a0] sm:$0xff]
        %v633 = vld [vmem:[#allocation5 + $0x4a8] sm:$0xff]
        %v634 = vld [vmem:[#allocation5 + $0x4b0] sm:$0xff]
        %v635 = vld [vmem:[#allocation5 + $0x4b8] sm:$0xff]
        %v636 = vld [vmem:[#allocation5 + $0x4c0] sm:$0xff]
        %v637 = vld [vmem:[#allocation5 + $0x4c8] sm:$0xff]
        %v638 = vld [vmem:[#allocation5 + $0x4d0] sm:$0xff]
        %v639 = vld [vmem:[#allocation5 + $0x4d8] sm:$0xff]
        %v640 = vld [vmem:[#allocation5 + $0x4e0] sm:$0xff]
        %v641 = vld [vmem:[#allocation5 + $0x4e8] sm:$0xff]
        %v642 = vld [vmem:[#allocation5 + $0x4f0] sm:$0xff]
        %v643 = vld [vmem:[#allocation5 + $0x4f8] sm:$0xff]
        %v644 = vld [vmem:[#allocation5 + $0x500] sm:$0xff]
        %v645 = vld [vmem:[#allocation5 + $0x508] sm:$0xff]
        %v646 = vld [vmem:[#allocation5 + $0x510] sm:$0xff]
        %v647 = vld [vmem:[#allocation5 + $0x518] sm:$0xff]
        %v648 = vld [vmem:[#allocation5 + $0x520] sm:$0xff]
        %v649 = vld [vmem:[#allocation5 + $0x528] sm:$0xff]
        %v650 = vld [vmem:[#allocation5 + $0x530] sm:$0xff]
        %v651 = vld [vmem:[#allocation5 + $0x538] sm:$0xff]
        %v652 = vld [vmem:[#allocation5 + $0x540] sm:$0xff]
        %v653 = vld [vmem:[#allocation5 + $0x548] sm:$0xff]
        %v654 = vld [vmem:[#allocation5 + $0x550] sm:$0xff]
        %v655 = vld [vmem:[#allocation5 + $0x558] sm:$0xff]
        %v656 = vld [vmem:[#allocation5 + $0x560] sm:$0xff]
        %v657 = vld [vmem:[#allocation5 + $0x568] sm:$0xff]
        %v658 = vld [vmem:[#allocation5 + $0x570] sm:$0xff]
        %v659 = vld [vmem:[#allocation5 + $0x578] sm:$0xff]
        %v660 = vld [vmem:[#allocation5 + $0x580] sm:$0xff]
        %v661 = vld [vmem:[#allocation5 + $0x588] sm:$0xff]
        %v662 = vld [vmem:[#allocation5 + $0x590] sm:$0xff]
        %v663 = vld [vmem:[#allocation5 + $0x598] sm:$0xff]
        %v664 = vld [vmem:[#allocation5 + $0x5a0] sm:$0xff]
        %v665 = vld [vmem:[#allocation5 + $0x5a8] sm:$0xff]
        %v666 = vld [vmem:[#allocation5 + $0x5b0] sm:$0xff]
        %v667 = vld [vmem:[#allocation5 + $0x5b8] sm:$0xff]
        %v668 = vld [vmem:[#allocation5 + $0x5c0] sm:$0xff]
        %v669 = vld [vmem:[#allocation5 + $0x5c8] sm:$0xff]
        %v670 = vld [vmem:[#allocation5 + $0x5d0] sm:$0xff]
        %v671 = vld [vmem:[#allocation5 + $0x5d8] sm:$0xff]
        %v672 = vld [vmem:[#allocation5 + $0x5e0] sm:$0xff]
        %v673 = vld [vmem:[#allocation5 + $0x5e8] sm:$0xff]
        %v674 = vld [vmem:[#allocation5 + $0x5f0] sm:$0xff]
        %v675 = vld [vmem:[#allocation5 + $0x5f8] sm:$0xff]
        %v676 = vld [vmem:[#allocation5 + $0x600] sm:$0xff]
        %v677 = vld [vmem:[#allocation5 + $0x608] sm:$0xff]
        %v678 = vld [vmem:[#allocation5 + $0x610] sm:$0xff]
        %v679 = vld [vmem:[#allocation5 + $0x618] sm:$0xff]
        %v680 = vld [vmem:[#allocation5 + $0x620] sm:$0xff]
        %v681 = vld [vmem:[#allocation5 + $0x628] sm:$0xff]
        %v682 = vld [vmem:[#allocation5 + $0x630] sm:$0xff]
        %v683 = vld [vmem:[#allocation5 + $0x638] sm:$0xff]
        %v684 = vld [vmem:[#allocation5 + $0x640] sm:$0xff]
        %v685 = vld [vmem:[#allocation5 + $0x648] sm:$0xff]
        %v686 = vld [vmem:[#allocation5 + $0x650] sm:$0xff]
        %v687 = vld [vmem:[#allocation5 + $0x658] sm:$0xff]
        %v688 = vld [vmem:[#allocation5 + $0x660] sm:$0xff]
        %v689 = vld [vmem:[#allocation5 + $0x668] sm:$0xff]
        %v690 = vld [vmem:[#allocation5 + $0x670] sm:$0xff]
        %v691 = vld [vmem:[#allocation5 + $0x678] sm:$0xff]
        %v692 = vld [vmem:[#allocation5 + $0x680] sm:$0xff]
        %v693 = vld [vmem:[#allocation5 + $0x688] sm:$0xff]
        %v694 = vld [vmem:[#allocation5 + $0x690] sm:$0xff]
        %v695 = vld [vmem:[#allocation5 + $0x698] sm:$0xff]
        %v696 = vld [vmem:[#allocation5 + $0x6a0] sm:$0xff]
        %v697 = vld [vmem:[#allocation5 + $0x6a8] sm:$0xff]
        %v698 = vld [vmem:[#allocation5 + $0x6b0] sm:$0xff]
        %v699 = vld [vmem:[#allocation5 + $0x6b8] sm:$0xff]
        %v700 = vld [vmem:[#allocation5 + $0x6c0] sm:$0xff]
        %v701 = vld [vmem:[#allocation5 + $0x6c8] sm:$0xff]
        %v702 = vld [vmem:[#allocation5 + $0x6d0] sm:$0xff]
        %v703 = vld [vmem:[#allocation5 + $0x6d8] sm:$0xff]
        %v704 = vld [vmem:[#allocation5 + $0x6e0] sm:$0xff]
        %v705 = vld [vmem:[#allocation5 + $0x6e8] sm:$0xff]
        %v706 = vld [vmem:[#allocation5 + $0x6f0] sm:$0xff]
        %v707 = vld [vmem:[#allocation5 + $0x6f8] sm:$0xff]
        %v708 = vld [vmem:[#allocation5 + $0x700] sm:$0xff]
        %v709 = vld [vmem:[#allocation5 + $0x708] sm:$0xff]
        %v710 = vld [vmem:[#allocation5 + $0x710] sm:$0xff]
        %v711 = vld [vmem:[#allocation5 + $0x718] sm:$0xff]
        %v712 = vld [vmem:[#allocation5 + $0x720] sm:$0xff]
        %v713 = vld [vmem:[#allocation5 + $0x728] sm:$0xff]
        %v714 = vld [vmem:[#allocation5 + $0x730] sm:$0xff]
        %v715 = vld [vmem:[#allocation5 + $0x738] sm:$0xff]
        %v716 = vld [vmem:[#allocation5 + $0x740] sm:$0xff]
        %v717 = vld [vmem:[#allocation5 + $0x748] sm:$0xff]
        %v718 = vld [vmem:[#allocation5 + $0x750] sm:$0xff]
        %v719 = vld [vmem:[#allocation5 + $0x758] sm:$0xff]
        %v720 = vld [vmem:[#allocation5 + $0x760] sm:$0xff]
        %v721 = vld [vmem:[#allocation5 + $0x768] sm:$0xff]
        %v722 = vld [vmem:[#allocation5 + $0x770] sm:$0xff]
        %v723 = vld [vmem:[#allocation5 + $0x778] sm:$0xff]
        %v724 = vld [vmem:[#allocation5 + $0x780] sm:$0xff]
        %v725 = vld [vmem:[#allocation5 + $0x788] sm:$0xff]
        %v726 = vld [vmem:[#allocation5 + $0x790] sm:$0xff]
        %v727 = vld [vmem:[#allocation5 + $0x798] sm:$0xff]
        %v728 = vld [vmem:[#allocation5 + $0x7a0] sm:$0xff]
        %v729 = vld [vmem:[#allocation5 + $0x7a8] sm:$0xff]
        %v730 = vld [vmem:[#allocation5 + $0x7b0] sm:$0xff]
        %v731 = vld [vmem:[#allocation5 + $0x7b8] sm:$0xff]
        %v732 = vld [vmem:[#allocation5 + $0x7c0] sm:$0xff]
        %v733 = vld [vmem:[#allocation5 + $0x7c8] sm:$0xff]
        %v734 = vld [vmem:[#allocation5 + $0x7d0] sm:$0xff]
        %v735 = vld [vmem:[#allocation5 + $0x7d8] sm:$0xff]
        %v736 = vld [vmem:[#allocation5 + $0x7e0] sm:$0xff]
        %v737 = vld [vmem:[#allocation5 + $0x7e8] sm:$0xff]
        %v738 = vld [vmem:[#allocation5 + $0x7f0] sm:$0xff]
        %v739 = vld [vmem:[#allocation5 + $0x7f8] sm:$0xff]
        %v740 = vld [vmem:[#allocation5 + $0x800] sm:$0xff]
        %v741 = vld [vmem:[#allocation5 + $0x808] sm:$0xff]
        %v742 = vld [vmem:[#allocation5 + $0x810] sm:$0xff]
        %v743 = vld [vmem:[#allocation5 + $0x818] sm:$0xff]
        %v744 = vld [vmem:[#allocation5 + $0x820] sm:$0xff]
        %v745 = vld [vmem:[#allocation5 + $0x828] sm:$0xff]
        %v746 = vld [vmem:[#allocation5 + $0x830] sm:$0xff]
        %v747 = vld [vmem:[#allocation5 + $0x838] sm:$0xff]
        %v748 = vld [vmem:[#allocation5 + $0x840] sm:$0xff]
        %v749 = vld [vmem:[#allocation5 + $0x848] sm:$0xff]
        %v750 = vld [vmem:[#allocation5 + $0x850] sm:$0xff]
        %v751 = vld [vmem:[#allocation5 + $0x858] sm:$0xff]
        %v752 = vld [vmem:[#allocation5 + $0x860] sm:$0xff]
        %v753 = vld [vmem:[#allocation5 + $0x868] sm:$0xff]
        %v754 = vld [vmem:[#allocation5 + $0x870] sm:$0xff]
        %v755 = vld [vmem:[#allocation5 + $0x878] sm:$0xff]
        %v756 = vld [vmem:[#allocation5 + $0x880] sm:$0xff]
        %v757 = vld [vmem:[#allocation5 + $0x888] sm:$0xff]
        %v758 = vld [vmem:[#allocation5 + $0x890] sm:$0xff]
        %v759 = vld [vmem:[#allocation5 + $0x898] sm:$0xff]
        %v760 = vld [vmem:[#allocation5 + $0x8a0] sm:$0xff]
        %v761 = vld [vmem:[#allocation5 + $0x8a8] sm:$0xff]
        %v762 = vld [vmem:[#allocation5 + $0x8b0] sm:$0xff]
        %v763 = vld [vmem:[#allocation5 + $0x8b8] sm:$0xff]
        %v764 = vld [vmem:[#allocation5 + $0x8c0] sm:$0xff]
        %v765 = vld [vmem:[#allocation5 + $0x8c8] sm:$0xff]
        %v766 = vld [vmem:[#allocation5 + $0x8d0] sm:$0xff]
        %v767 = vld [vmem:[#allocation5 + $0x8d8] sm:$0xff]
        %v768 = vld [vmem:[#allocation5 + $0x8e0] sm:$0xff]
        %v769 = vld [vmem:[#allocation5 + $0x8e8] sm:$0xff]
        %v770 = vld [vmem:[#allocation5 + $0x8f0] sm:$0xff]
        %v771 = vld [vmem:[#allocation5 + $0x8f8] sm:$0xff]
        %v772 = vld [vmem:[#allocation5 + $0x900] sm:$0xff]
        %v773 = vld [vmem:[#allocation5 + $0x908] sm:$0xff]
        %v774 = vld [vmem:[#allocation5 + $0x910] sm:$0xff]
        %v775 = vld [vmem:[#allocation5 + $0x918] sm:$0xff]
        %v776 = vld [vmem:[#allocation5 + $0x920] sm:$0xff]
        %v777 = vld [vmem:[#allocation5 + $0x928] sm:$0xff]
        %v778 = vld [vmem:[#allocation5 + $0x930] sm:$0xff]
        %v779 = vld [vmem:[#allocation5 + $0x938] sm:$0xff]
        %v780 = vld [vmem:[#allocation5 + $0x940] sm:$0xff]
        %v781 = vld [vmem:[#allocation5 + $0x948] sm:$0xff]
        %v782 = vld [vmem:[#allocation5 + $0x950] sm:$0xff]
        %v783 = vld [vmem:[#allocation5 + $0x958] sm:$0xff]
        %v784 = vld [vmem:[#allocation5 + $0x960] sm:$0xff]
        %v785 = vld [vmem:[#allocation5 + $0x968] sm:$0xff]
        %v786 = vld [vmem:[#allocation5 + $0x970] sm:$0xff]
        %v787 = vld [vmem:[#allocation5 + $0x978] sm:$0xff]
        %v788 = vld [vmem:[#allocation5 + $0x980] sm:$0xff]
        %v789 = vld [vmem:[#allocation5 + $0x988] sm:$0xff]
        %v790 = vld [vmem:[#allocation5 + $0x990] sm:$0xff]
        %v791 = vld [vmem:[#allocation5 + $0x998] sm:$0xff]
        %v792 = vld [vmem:[#allocation5 + $0x9a0] sm:$0xff]
        %v793 = vld [vmem:[#allocation5 + $0x9a8] sm:$0xff]
        %v794 = vld [vmem:[#allocation5 + $0x9b0] sm:$0xff]
        %v795 = vld [vmem:[#allocation5 + $0x9b8] sm:$0xff]
        %v796 = vld [vmem:[#allocation5 + $0x9c0] sm:$0xff]
        %v797 = vld [vmem:[#allocation5 + $0x9c8] sm:$0xff]
        %v798 = vld [vmem:[#allocation5 + $0x9d0] sm:$0xff]
        %v799 = vld [vmem:[#allocation5 + $0x9d8] sm:$0xff]
        %v800 = vld [vmem:[#allocation5 + $0x9e0] sm:$0xff]
        %v801 = vld [vmem:[#allocation5 + $0x9e8] sm:$0xff]
        %v802 = vld [vmem:[#allocation5 + $0x9f0] sm:$0xff]
        %v803 = vld [vmem:[#allocation5 + $0x9f8] sm:$0xff]
        %v804 = vld [vmem:[#allocation5 + $0xa00] sm:$0xff]
        %v805 = vld [vmem:[#allocation5 + $0xa08] sm:$0xff]
        %v806 = vld [vmem:[#allocation5 + $0xa10] sm:$0xff]
        %v807 = vld [vmem:[#allocation5 + $0xa18] sm:$0xff]
        %v808 = vld [vmem:[#allocation5 + $0xa20] sm:$0xff]
        %v809 = vld [vmem:[#allocation5 + $0xa28] sm:$0xff]
        %v810 = vld [vmem:[#allocation5 + $0xa30] sm:$0xff]
        %v811 = vld [vmem:[#allocation5 + $0xa38] sm:$0xff]
        %v812 = vld [vmem:[#allocation5 + $0xa40] sm:$0xff]
        %v813 = vld [vmem:[#allocation5 + $0xa48] sm:$0xff]
        %v814 = vld [vmem:[#allocation5 + $0xa50] sm:$0xff]
        %v815 = vld [vmem:[#allocation5 + $0xa58] sm:$0xff]
        %v816 = vld [vmem:[#allocation5 + $0xa60] sm:$0xff]
        %v817 = vld [vmem:[#allocation5 + $0xa68] sm:$0xff]
        %v818 = vld [vmem:[#allocation5 + $0xa70] sm:$0xff]
        %v819 = vld [vmem:[#allocation5 + $0xa78] sm:$0xff]
        %v820 = vld [vmem:[#allocation5 + $0xa80] sm:$0xff]
        %v821 = vld [vmem:[#allocation5 + $0xa88] sm:$0xff]
        %v822 = vld [vmem:[#allocation5 + $0xa90] sm:$0xff]
        %v823 = vld [vmem:[#allocation5 + $0xa98] sm:$0xff]
        %v824 = vld [vmem:[#allocation5 + $0xaa0] sm:$0xff]
        %v825 = vld [vmem:[#allocation5 + $0xaa8] sm:$0xff]
        %v826 = vld [vmem:[#allocation5 + $0xab0] sm:$0xff]
        %v827 = vld [vmem:[#allocation5 + $0xab8] sm:$0xff]
        %v828 = vld [vmem:[#allocation5 + $0xac0] sm:$0xff]
        %v829 = vld [vmem:[#allocation5 + $0xac8] sm:$0xff]
        %v830 = vld [vmem:[#allocation5 + $0xad0] sm:$0xff]
        %v831 = vld [vmem:[#allocation5 + $0xad8] sm:$0xff]
        %v832 = vld [vmem:[#allocation5 + $0xae0] sm:$0xff]
        %v833 = vld [vmem:[#allocation5 + $0xae8] sm:$0xff]
        %v834 = vld [vmem:[#allocation5 + $0xaf0] sm:$0xff]
        %v835 = vld [vmem:[#allocation5 + $0xaf8] sm:$0xff]
        %v836 = vld [vmem:[#allocation5 + $0xb00] sm:$0xff]
        %v837 = vld [vmem:[#allocation5 + $0xb08] sm:$0xff]
        %v838 = vld [vmem:[#allocation5 + $0xb10] sm:$0xff]
        %v839 = vld [vmem:[#allocation5 + $0xb18] sm:$0xff]
        %v840 = vld [vmem:[#allocation5 + $0xb20] sm:$0xff]
        %v841 = vld [vmem:[#allocation5 + $0xb28] sm:$0xff]
        %v842 = vld [vmem:[#allocation5 + $0xb30] sm:$0xff]
        %v843 = vld [vmem:[#allocation5 + $0xb38] sm:$0xff]
        %v844 = vld [vmem:[#allocation5 + $0xb40] sm:$0xff]
        %v845 = vld [vmem:[#allocation5 + $0xb48] sm:$0xff]
        %v846 = vld [vmem:[#allocation5 + $0xb50] sm:$0xff]
        %v847 = vld [vmem:[#allocation5 + $0xb58] sm:$0xff]
        %v848 = vld [vmem:[#allocation5 + $0xb60] sm:$0xff]
        %v849 = vld [vmem:[#allocation5 + $0xb68] sm:$0xff]
        %v850 = vld [vmem:[#allocation5 + $0xb70] sm:$0xff]
        %v851 = vld [vmem:[#allocation5 + $0xb78] sm:$0xff]
        %v852 = vld [vmem:[#allocation5 + $0xb80] sm:$0xff]
        %v853 = vld [vmem:[#allocation5 + $0xb88] sm:$0xff]
        %v854 = vld [vmem:[#allocation5 + $0xb90] sm:$0xff]
        %v855 = vld [vmem:[#allocation5 + $0xb98] sm:$0xff]
        %v856 = vld [vmem:[#allocation5 + $0xba0] sm:$0xff]
        %v857 = vld [vmem:[#allocation5 + $0xba8] sm:$0xff]
        %v858 = vld [vmem:[#allocation5 + $0xbb0] sm:$0xff]
        %v859 = vld [vmem:[#allocation5 + $0xbb8] sm:$0xff]
        %v860 = vld [vmem:[#allocation5 + $0xbc0] sm:$0xff]
        %v861 = vld [vmem:[#allocation5 + $0xbc8] sm:$0xff]
        %v862 = vld [vmem:[#allocation5 + $0xbd0] sm:$0xff]
        %v863 = vld [vmem:[#allocation5 + $0xbd8] sm:$0xff]
        %v864 = vld [vmem:[#allocation5 + $0xbe0] sm:$0xff]
        %v865 = vld [vmem:[#allocation5 + $0xbe8] sm:$0xff]
        %v866 = vld [vmem:[#allocation5 + $0xbf0] sm:$0xff]
        %v867 = vld [vmem:[#allocation5 + $0xbf8] sm:$0xff]
        %v868 = vld [vmem:[#allocation5 + $0xc00] sm:$0xff]
        %v869 = vld [vmem:[#allocation5 + $0xc08] sm:$0xff]
        %v870 = vld [vmem:[#allocation5 + $0xc10] sm:$0xff]
        %v871 = vld [vmem:[#allocation5 + $0xc18] sm:$0xff]
        %v872 = vld [vmem:[#allocation5 + $0xc20] sm:$0xff]
        %v873 = vld [vmem:[#allocation5 + $0xc28] sm:$0xff]
        %v874 = vld [vmem:[#allocation5 + $0xc30] sm:$0xff]
        %v875 = vld [vmem:[#allocation5 + $0xc38] sm:$0xff]
        %v876 = vld [vmem:[#allocation5 + $0xc40] sm:$0xff]
        %v877 = vld [vmem:[#allocation5 + $0xc48] sm:$0xff]
        %v878 = vld [vmem:[#allocation5 + $0xc50] sm:$0xff]
        %v879 = vld [vmem:[#allocation5 + $0xc58] sm:$0xff]
        %v880 = vld [vmem:[#allocation5 + $0xc60] sm:$0xff]
        %v881 = vld [vmem:[#allocation5 + $0xc68] sm:$0xff]
        %v882 = vld [vmem:[#allocation5 + $0xc70] sm:$0xff]
        %v883 = vld [vmem:[#allocation5 + $0xc78] sm:$0xff]
        %v884 = vld [vmem:[#allocation5 + $0xc80] sm:$0xff]
        %v885 = vld [vmem:[#allocation5 + $0xc88] sm:$0xff]
        %v886 = vld [vmem:[#allocation5 + $0xc90] sm:$0xff]
        %v887 = vld [vmem:[#allocation5 + $0xc98] sm:$0xff]
        %v888 = vld [vmem:[#allocation5 + $0xca0] sm:$0xff]
        %v889 = vld [vmem:[#allocation5 + $0xca8] sm:$0xff]
        %v890 = vld [vmem:[#allocation5 + $0xcb0] sm:$0xff]
        %v891 = vld [vmem:[#allocation5 + $0xcb8] sm:$0xff]
        %v892 = vld [vmem:[#allocation5 + $0xcc0] sm:$0xff]
        %v893 = vld [vmem:[#allocation5 + $0xcc8] sm:$0xff]
        %v894 = vld [vmem:[#allocation5 + $0xcd0] sm:$0xff]
        %v895 = vld [vmem:[#allocation5 + $0xcd8] sm:$0xff]
        %v896 = vld [vmem:[#allocation5 + $0xce0] sm:$0xff]
        %v897 = vld [vmem:[#allocation5 + $0xce8] sm:$0xff]
        %v898 = vld [vmem:[#allocation5 + $0xcf0] sm:$0xff]
        %v899 = vld [vmem:[#allocation5 + $0xcf8] sm:$0xff]
        %v900 = vld [vmem:[#allocation5 + $0xd00] sm:$0xff]
        %v901 = vld [vmem:[#allocation5 + $0xd08] sm:$0xff]
        %v902 = vld [vmem:[#allocation5 + $0xd10] sm:$0xff]
        %v903 = vld [vmem:[#allocation5 + $0xd18] sm:$0xff]
        %v904 = vld [vmem:[#allocation5 + $0xd20] sm:$0xff]
        %v905 = vld [vmem:[#allocation5 + $0xd28] sm:$0xff]
        %v906 = vld [vmem:[#allocation5 + $0xd30] sm:$0xff]
        %v907 = vld [vmem:[#allocation5 + $0xd38] sm:$0xff]
        %v908 = vld [vmem:[#allocation5 + $0xd40] sm:$0xff]
        %v909 = vld [vmem:[#allocation5 + $0xd48] sm:$0xff]
        %v910 = vld [vmem:[#allocation5 + $0xd50] sm:$0xff]
        %v911 = vld [vmem:[#allocation5 + $0xd58] sm:$0xff]
        %v912 = vld [vmem:[#allocation5 + $0xd60] sm:$0xff]
        %v913 = vld [vmem:[#allocation5 + $0xd68] sm:$0xff]
        %v914 = vld [vmem:[#allocation5 + $0xd70] sm:$0xff]
        %v915 = vld [vmem:[#allocation5 + $0xd78] sm:$0xff]
        %v916 = vld [vmem:[#allocation5 + $0xd80] sm:$0xff]
        %v917 = vld [vmem:[#allocation5 + $0xd88] sm:$0xff]
        %v918 = vld [vmem:[#allocation5 + $0xd90] sm:$0xff]
        %v919 = vld [vmem:[#allocation5 + $0xd98] sm:$0xff]
        %v920 = vld [vmem:[#allocation5 + $0xda0] sm:$0xff]
        %v921 = vld [vmem:[#allocation5 + $0xda8] sm:$0xff]
        %v922 = vld [vmem:[#allocation5 + $0xdb0] sm:$0xff]
        %v923 = vld [vmem:[#allocation5 + $0xdb8] sm:$0xff]
        %v924 = vld [vmem:[#allocation5 + $0xdc0] sm:$0xff]
        %v925 = vld [vmem:[#allocation5 + $0xdc8] sm:$0xff]
        %v926 = vld [vmem:[#allocation5 + $0xdd0] sm:$0xff]
        %v927 = vld [vmem:[#allocation5 + $0xdd8] sm:$0xff]
        %v928 = vld [vmem:[#allocation5 + $0xde0] sm:$0xff]
        %v929 = vld [vmem:[#allocation5 + $0xde8] sm:$0xff]
        %v930 = vld [vmem:[#allocation5 + $0xdf0] sm:$0xff]
        %v931 = vld [vmem:[#allocation5 + $0xdf8] sm:$0xff]
        %v932 = vld [vmem:[#allocation5 + $0xe00] sm:$0xff]
        %v933 = vld [vmem:[#allocation5 + $0xe08] sm:$0xff]
        %v934 = vld [vmem:[#allocation5 + $0xe10] sm:$0xff]
        %v935 = vld [vmem:[#allocation5 + $0xe18] sm:$0xff]
        %v936 = vld [vmem:[#allocation5 + $0xe20] sm:$0xff]
        %v937 = vld [vmem:[#allocation5 + $0xe28] sm:$0xff]
        %v938 = vld [vmem:[#allocation5 + $0xe30] sm:$0xff]
        %v939 = vld [vmem:[#allocation5 + $0xe38] sm:$0xff]
        %v940 = vld [vmem:[#allocation5 + $0xe40] sm:$0xff]
        %v941 = vld [vmem:[#allocation5 + $0xe48] sm:$0xff]
        %v942 = vld [vmem:[#allocation5 + $0xe50] sm:$0xff]
        %v943 = vld [vmem:[#allocation5 + $0xe58] sm:$0xff]
        %v944 = vld [vmem:[#allocation5 + $0xe60] sm:$0xff]
        %v945 = vld [vmem:[#allocation5 + $0xe68] sm:$0xff]
        %v946 = vld [vmem:[#allocation5 + $0xe70] sm:$0xff]
        %v947 = vld [vmem:[#allocation5 + $0xe78] sm:$0xff]
        %v948 = vld [vmem:[#allocation5 + $0xe80] sm:$0xff]
        %v949 = vld [vmem:[#allocation5 + $0xe88] sm:$0xff]
        %v950 = vld [vmem:[#allocation5 + $0xe90] sm:$0xff]
        %v951 = vld [vmem:[#allocation5 + $0xe98] sm:$0xff]
        %v952 = vld [vmem:[#allocation5 + $0xea0] sm:$0xff]
        %v953 = vld [vmem:[#allocation5 + $0xea8] sm:$0xff]
        %v954 = vld [vmem:[#allocation5 + $0xeb0] sm:$0xff]
        %v955 = vld [vmem:[#allocation5 + $0xeb8] sm:$0xff]
        %v956 = vld [vmem:[#allocation5 + $0xec0] sm:$0xff]
        %v957 = vld [vmem:[#allocation5 + $0xec8] sm:$0xff]
        %v958 = vld [vmem:[#allocation5 + $0xed0] sm:$0xff]
        %v959 = vld [vmem:[#allocation5 + $0xed8] sm:$0xff]
        %v960 = vld [vmem:[#allocation5 + $0xee0] sm:$0xff]
        %v961 = vld [vmem:[#allocation5 + $0xee8] sm:$0xff]
        %v962 = vld [vmem:[#allocation5 + $0xef0] sm:$0xff]
        %v963 = vld [vmem:[#allocation5 + $0xef8] sm:$0xff]
        %v964 = vld [vmem:[#allocation5 + $0xf00] sm:$0xff]
        %v965 = vld [vmem:[#allocation5 + $0xf08] sm:$0xff]
        %v966 = vld [vmem:[#allocation5 + $0xf10] sm:$0xff]
        %v967 = vld [vmem:[#allocation5 + $0xf18] sm:$0xff]
        %v968 = vld [vmem:[#allocation5 + $0xf20] sm:$0xff]
        %v969 = vld [vmem:[#allocation5 + $0xf28] sm:$0xff]
        %v970 = vld [vmem:[#allocation5 + $0xf30] sm:$0xff]
        %v971 = vld [vmem:[#allocation5 + $0xf38] sm:$0xff]
        %v972 = vld [vmem:[#allocation5 + $0xf40] sm:$0xff]
        %v973 = vld [vmem:[#allocation5 + $0xf48] sm:$0xff]
        %v974 = vld [vmem:[#allocation5 + $0xf50] sm:$0xff]
        %v975 = vld [vmem:[#allocation5 + $0xf58] sm:$0xff]
        %v976 = vld [vmem:[#allocation5 + $0xf60] sm:$0xff]
        %v977 = vld [vmem:[#allocation5 + $0xf68] sm:$0xff]
        %v978 = vld [vmem:[#allocation5 + $0xf70] sm:$0xff]
        %v979 = vld [vmem:[#allocation5 + $0xf78] sm:$0xff]
        %v980 = vld [vmem:[#allocation5 + $0xf80] sm:$0xff]
        %v981 = vld [vmem:[#allocation5 + $0xf88] sm:$0xff]
        %v982 = vld [vmem:[#allocation5 + $0xf90] sm:$0xff]
        %v983 = vld [vmem:[#allocation5 + $0xf98] sm:$0xff]
        %v984 = vld [vmem:[#allocation5 + $0xfa0] sm:$0xff]
        %v985 = vld [vmem:[#allocation5 + $0xfa8] sm:$0xff]
        %v986 = vld [vmem:[#allocation5 + $0xfb0] sm:$0xff]
        %v987 = vld [vmem:[#allocation5 + $0xfb8] sm:$0xff]
        %v988 = vld [vmem:[#allocation5 + $0xfc0] sm:$0xff]
        %v989 = vld [vmem:[#allocation5 + $0xfc8] sm:$0xff]
        %v990 = vld [vmem:[#allocation5 + $0xfd0] sm:$0xff]
        %v991 = vld [vmem:[#allocation5 + $0xfd8] sm:$0xff]
        %v992 = vld [vmem:[#allocation5 + $0xfe0] sm:$0xff]
        %v993 = vld [vmem:[#allocation5 + $0xfe8] sm:$0xff]
        %v994 = vld [vmem:[#allocation5 + $0xff0] sm:$0xff]
        %v995 = vld [vmem:[#allocation5 + $0xff8] sm:$0xff]
        %v996 = vld [vmem:[#allocation5 + $0x1000] sm:$0xff]
        %v997 = vld [vmem:[#allocation5 + $0x1008] sm:$0xff]
        %v998 = vld [vmem:[#allocation5 + $0x1010] sm:$0xff]
        %v999 = vld [vmem:[#allocation5 + $0x1018] sm:$0xff]
        %v1000 = vld [vmem:[#allocation5 + $0x1020] sm:$0xff]
        %v1001 = vld [vmem:[#allocation5 + $0x1028] sm:$0xff]
        %v1002 = vld [vmem:[#allocation5 + $0x1030] sm:$0xff]
        %v1003 = vld [vmem:[#allocation5 + $0x1038] sm:$0xff]
        %v1004 = vld [vmem:[#allocation5 + $0x1040] sm:$0xff]
        %v1005 = vld [vmem:[#allocation5 + $0x1048] sm:$0xff]
        %v1006 = vld [vmem:[#allocation5 + $0x1050] sm:$0xff]
        %v1007 = vld [vmem:[#allocation5 + $0x1058] sm:$0xff]
        %v1008 = vld [vmem:[#allocation5 + $0x1060] sm:$0xff]
        %v1009 = vld [vmem:[#allocation5 + $0x1068] sm:$0xff]
        %v1010 = vld [vmem:[#allocation5 + $0x1070] sm:$0xff]
        %v1011 = vld [vmem:[#allocation5 + $0x1078] sm:$0xff]
        %v1012 = vld [vmem:[#allocation5 + $0x1080] sm:$0xff]
        %v1013 = vld [vmem:[#allocation5 + $0x1088] sm:$0xff]
        %v1014 = vld [vmem:[#allocation5 + $0x1090] sm:$0xff]
        %v1015 = vld [vmem:[#allocation5 + $0x1098] sm:$0xff]
        %v1016 = vld [vmem:[#allocation5 + $0x10a0] sm:$0xff]
        %v1017 = vld [vmem:[#allocation5 + $0x10a8] sm:$0xff]
        %v1018 = vld [vmem:[#allocation5 + $0x10b0] sm:$0xff]
        %v1019 = vld [vmem:[#allocation5 + $0x10b8] sm:$0xff]
        %v1020 = vld [vmem:[#allocation5 + $0x10c0] sm:$0xff]
        %v1021 = vld [vmem:[#allocation5 + $0x10c8] sm:$0xff]
        %v1022 = vld [vmem:[#allocation5 + $0x10d0] sm:$0xff]
        %v1023 = vld [vmem:[#allocation5 + $0x10d8] sm:$0xff]
        %v1024 = vld [vmem:[#allocation5 + $0x10e0] sm:$0xff]
        %v1025 = vld [vmem:[#allocation5 + $0x10e8] sm:$0xff]
        %v1026 = vld [vmem:[#allocation5 + $0x10f0] sm:$0xff]
        %v1027 = vld [vmem:[#allocation5 + $0x10f8] sm:$0xff]
        %v1028 = vld [vmem:[#allocation5 + $0x1100] sm:$0xff]
        %v1029 = vld [vmem:[#allocation5 + $0x1108] sm:$0xff]
        %v1030 = vld [vmem:[#allocation5 + $0x1110] sm:$0xff]
        %v1031 = vld [vmem:[#allocation5 + $0x1118] sm:$0xff]
        %v1032 = vld [vmem:[#allocation5 + $0x1120] sm:$0xff]
        %v1033 = vld [vmem:[#allocation5 + $0x1128] sm:$0xff]
        %v1034 = vld [vmem:[#allocation5 + $0x1130] sm:$0xff]
        %v1035 = vld [vmem:[#allocation5 + $0x1138] sm:$0xff]
        %v1036 = vld [vmem:[#allocation5 + $0x1140] sm:$0xff]
        %v1037 = vld [vmem:[#allocation5 + $0x1148] sm:$0xff]
        %v1038 = vld [vmem:[#allocation5 + $0x1150] sm:$0xff]
        %v1039 = vld [vmem:[#allocation5 + $0x1158] sm:$0xff]
        %v1040 = vld [vmem:[#allocation5 + $0x1160] sm:$0xff]
        %v1041 = vld [vmem:[#allocation5 + $0x1168] sm:$0xff]
        %v1042 = vld [vmem:[#allocation5 + $0x1170] sm:$0xff]
        %v1043 = vld [vmem:[#allocation5 + $0x1178] sm:$0xff]
        %v1044 = vld [vmem:[#allocation5 + $0x1180] sm:$0xff]
        %v1045 = vld [vmem:[#allocation5 + $0x1188] sm:$0xff]
        %v1046 = vld [vmem:[#allocation5 + $0x1190] sm:$0xff]
        %v1047 = vld [vmem:[#allocation5 + $0x1198] sm:$0xff]
        %v1048 = vld [vmem:[#allocation5 + $0x11a0] sm:$0xff]
        %v1049 = vld [vmem:[#allocation5 + $0x11a8] sm:$0xff]
        %v1050 = vld [vmem:[#allocation5 + $0x11b0] sm:$0xff]
        %v1051 = vld [vmem:[#allocation5 + $0x11b8] sm:$0xff]
        %v1052 = vld [vmem:[#allocation5 + $0x11c0] sm:$0xff]
        %v1053 = vld [vmem:[#allocation5 + $0x11c8] sm:$0xff]
        %v1054 = vld [vmem:[#allocation5 + $0x11d0] sm:$0xff]
        %v1055 = vld [vmem:[#allocation5 + $0x11d8] sm:$0xff]
        %v1056 = vld [vmem:[#allocation5 + $0x11e0] sm:$0xff]
        %v1057 = vld [vmem:[#allocation5 + $0x11e8] sm:$0xff]
        %v1058 = vld [vmem:[#allocation5 + $0x11f0] sm:$0xff]
        %v1059 = vld [vmem:[#allocation5 + $0x11f8] sm:$0xff]
        %v1060 = vld [vmem:[#allocation5 + $0x1200] sm:$0xff]
        %v1061 = vld [vmem:[#allocation5 + $0x1208] sm:$0xff]
        %v1062 = vld [vmem:[#allocation5 + $0x1210] sm:$0xff]
        %v1063 = vld [vmem:[#allocation5 + $0x1218] sm:$0xff]
        %v1064 = vld [vmem:[#allocation5 + $0x1220] sm:$0xff]
        %v1065 = vld [vmem:[#allocation5 + $0x1228] sm:$0xff]
        %v1066 = vld [vmem:[#allocation5 + $0x1230] sm:$0xff]
        %v1067 = vld [vmem:[#allocation5 + $0x1238] sm:$0xff]
        %v1068 = vld [vmem:[#allocation5 + $0x1240] sm:$0xff]
        %v1069 = vld [vmem:[#allocation5 + $0x1248] sm:$0xff]
        %v1070 = vld [vmem:[#allocation5 + $0x1250] sm:$0xff]
        %v1071 = vld [vmem:[#allocation5 + $0x1258] sm:$0xff]
        %v1072 = vld [vmem:[#allocation5 + $0x1260] sm:$0xff]
        %v1073 = vld [vmem:[#allocation5 + $0x1268] sm:$0xff]
        %v1074 = vld [vmem:[#allocation5 + $0x1270] sm:$0xff]
        %v1075 = vld [vmem:[#allocation5 + $0x1278] sm:$0xff]
        %v1076 = vld [vmem:[#allocation5 + $0x1280] sm:$0xff]
        %v1077 = vld [vmem:[#allocation5 + $0x1288] sm:$0xff]
        %v1078 = vld [vmem:[#allocation5 + $0x1290] sm:$0xff]
        %v1079 = vld [vmem:[#allocation5 + $0x1298] sm:$0xff]
        %v1080 = vld [vmem:[#allocation5 + $0x12a0] sm:$0xff]
        %v1081 = vld [vmem:[#allocation5 + $0x12a8] sm:$0xff]
        %v1082 = vld [vmem:[#allocation5 + $0x12b0] sm:$0xff]
        %v1083 = vld [vmem:[#allocation5 + $0x12b8] sm:$0xff]
        %v1084 = vld [vmem:[#allocation5 + $0x12c0] sm:$0xff]
        %v1085 = vld [vmem:[#allocation5 + $0x12c8] sm:$0xff]
        %v1086 = vld [vmem:[#allocation5 + $0x12d0] sm:$0xff]
        %v1087 = vld [vmem:[#allocation5 + $0x12d8] sm:$0xff]
        %v1088 = vld [vmem:[#allocation5 + $0x12e0] sm:$0xff]
        %v1089 = vld [vmem:[#allocation5 + $0x12e8] sm:$0xff]
        %v1090 = vld [vmem:[#allocation5 + $0x12f0] sm:$0xff]
        %v1091 = vld [vmem:[#allocation5 + $0x12f8] sm:$0xff]
        %v1092 = vld [vmem:[#allocation5 + $0x1300] sm:$0xff]
        %v1093 = vld [vmem:[#allocation5 + $0x1308] sm:$0xff]
        %v1094 = vld [vmem:[#allocation5 + $0x1310] sm:$0xff]
        %v1095 = vld [vmem:[#allocation5 + $0x1318] sm:$0xff]
        %v1096 = vld [vmem:[#allocation5 + $0x1320] sm:$0xff]
        %v1097 = vld [vmem:[#allocation5 + $0x1328] sm:$0xff]
        %v1098 = vld [vmem:[#allocation5 + $0x1330] sm:$0xff]
        %v1099 = vld [vmem:[#allocation5 + $0x1338] sm:$0xff]
        %v1100 = vld [vmem:[#allocation5 + $0x1340] sm:$0xff]
        %v1101 = vld [vmem:[#allocation5 + $0x1348] sm:$0xff]
        %v1102 = vld [vmem:[#allocation5 + $0x1350] sm:$0xff]
        %v1103 = vld [vmem:[#allocation5 + $0x1358] sm:$0xff]
        %v1104 = vld [vmem:[#allocation5 + $0x1360] sm:$0xff]
        %v1105 = vld [vmem:[#allocation5 + $0x1368] sm:$0xff]
        %v1106 = vld [vmem:[#allocation5 + $0x1370] sm:$0xff]
        %v1107 = vld [vmem:[#allocation5 + $0x1378] sm:$0xff]
        %v1108 = vld [vmem:[#allocation5 + $0x1380] sm:$0xff]
        %v1109 = vld [vmem:[#allocation5 + $0x1388] sm:$0xff]
        %v1110 = vld [vmem:[#allocation5 + $0x1390] sm:$0xff]
        %v1111 = vld [vmem:[#allocation5 + $0x1398] sm:$0xff]
        %v1112 = vld [vmem:[#allocation5 + $0x13a0] sm:$0xff]
        %v1113 = vld [vmem:[#allocation5 + $0x13a8] sm:$0xff]
        %v1114 = vld [vmem:[#allocation5 + $0x13b0] sm:$0xff]
        %v1115 = vld [vmem:[#allocation5 + $0x13b8] sm:$0xff]
        %v1116 = vld [vmem:[#allocation5 + $0x13c0] sm:$0xff]
        %v1117 = vld [vmem:[#allocation5 + $0x13c8] sm:$0xff]
        %v1118 = vld [vmem:[#allocation5 + $0x13d0] sm:$0xff]
        %v1119 = vld [vmem:[#allocation5 + $0x13d8] sm:$0xff]
        %v1120 = vld [vmem:[#allocation5 + $0x13e0] sm:$0xff]
        %v1121 = vld [vmem:[#allocation5 + $0x13e8] sm:$0xff]
        %v1122 = vld [vmem:[#allocation5 + $0x13f0] sm:$0xff]
        %v1123 = vld [vmem:[#allocation5 + $0x13f8] sm:$0xff]
        %v1124 = vld [vmem:[#allocation5 + $0x1400] sm:$0xff]
        %v1125 = vld [vmem:[#allocation5 + $0x1408] sm:$0xff]
        %v1126 = vld [vmem:[#allocation5 + $0x1410] sm:$0xff]
        %v1127 = vld [vmem:[#allocation5 + $0x1418] sm:$0xff]
        %v1128 = vld [vmem:[#allocation5 + $0x1420] sm:$0xff]
        %v1129 = vld [vmem:[#allocation5 + $0x1428] sm:$0xff]
        %v1130 = vld [vmem:[#allocation5 + $0x1430] sm:$0xff]
        %v1131 = vld [vmem:[#allocation5 + $0x1438] sm:$0xff]
        %v1132 = vld [vmem:[#allocation5 + $0x1440] sm:$0xff]
        %v1133 = vld [vmem:[#allocation5 + $0x1448] sm:$0xff]
        %v1134 = vld [vmem:[#allocation5 + $0x1450] sm:$0xff]
        %v1135 = vld [vmem:[#allocation5 + $0x1458] sm:$0xff]
        %v1136 = vld [vmem:[#allocation5 + $0x1460] sm:$0xff]
        %v1137 = vld [vmem:[#allocation5 + $0x1468] sm:$0xff]
        %v1138 = vld [vmem:[#allocation5 + $0x1470] sm:$0xff]
        %v1139 = vld [vmem:[#allocation5 + $0x1478] sm:$0xff]
        %v1140 = vld [vmem:[#allocation5 + $0x1480] sm:$0xff]
        %v1141 = vld [vmem:[#allocation5 + $0x1488] sm:$0xff]
        %v1142 = vld [vmem:[#allocation5 + $0x1490] sm:$0xff]
        %v1143 = vld [vmem:[#allocation5 + $0x1498] sm:$0xff]
        %v1144 = vld [vmem:[#allocation5 + $0x14a0] sm:$0xff]
        %v1145 = vld [vmem:[#allocation5 + $0x14a8] sm:$0xff]
        %v1146 = vld [vmem:[#allocation5 + $0x14b0] sm:$0xff]
        %v1147 = vld [vmem:[#allocation5 + $0x14b8] sm:$0xff]
        %v1148 = vld [vmem:[#allocation5 + $0x14c0] sm:$0xff]
        %v1149 = vld [vmem:[#allocation5 + $0x14c8] sm:$0xff]
        %v1150 = vld [vmem:[#allocation5 + $0x14d0] sm:$0xff]
        %v1151 = vld [vmem:[#allocation5 + $0x14d8] sm:$0xff]
        %v1152 = vld [vmem:[#allocation5 + $0x14e0] sm:$0xff]
        %v1153 = vld [vmem:[#allocation5 + $0x14e8] sm:$0xff]
        %v1154 = vld [vmem:[#allocation5 + $0x14f0] sm:$0xff]
        %v1155 = vld [vmem:[#allocation5 + $0x14f8] sm:$0xff]
        %v1156 = vld [vmem:[#allocation5 + $0x1500] sm:$0xff]
        %v1157 = vld [vmem:[#allocation5 + $0x1508] sm:$0xff]
        %v1158 = vld [vmem:[#allocation5 + $0x1510] sm:$0xff]
        %v1159 = vld [vmem:[#allocation5 + $0x1518] sm:$0xff]
        %v1160 = vld [vmem:[#allocation5 + $0x1520] sm:$0xff]
        %v1161 = vld [vmem:[#allocation5 + $0x1528] sm:$0xff]
        %v1162 = vld [vmem:[#allocation5 + $0x1530] sm:$0xff]
        %v1163 = vld [vmem:[#allocation5 + $0x1538] sm:$0xff]
        %v1164 = vld [vmem:[#allocation5 + $0x1540] sm:$0xff]
        %v1165 = vld [vmem:[#allocation5 + $0x1548] sm:$0xff]
        %v1166 = vld [vmem:[#allocation5 + $0x1550] sm:$0xff]
        %v1167 = vld [vmem:[#allocation5 + $0x1558] sm:$0xff]
        %v1168 = vld [vmem:[#allocation5 + $0x1560] sm:$0xff]
        %v1169 = vld [vmem:[#allocation5 + $0x1568] sm:$0xff]
        %v1170 = vld [vmem:[#allocation5 + $0x1570] sm:$0xff]
        %v1171 = vld [vmem:[#allocation5 + $0x1578] sm:$0xff]
        %v1172 = vld [vmem:[#allocation5 + $0x1580] sm:$0xff]
        %v1173 = vld [vmem:[#allocation5 + $0x1588] sm:$0xff]
        %v1174 = vld [vmem:[#allocation5 + $0x1590] sm:$0xff]
        %v1175 = vld [vmem:[#allocation5 + $0x1598] sm:$0xff]
        %v1176 = vld [vmem:[#allocation5 + $0x15a0] sm:$0xff]
        %v1177 = vld [vmem:[#allocation5 + $0x15a8] sm:$0xff]
        %v1178 = vld [vmem:[#allocation5 + $0x15b0] sm:$0xff]
        %v1179 = vld [vmem:[#allocation5 + $0x15b8] sm:$0xff]
        %v1180 = vld [vmem:[#allocation5 + $0x15c0] sm:$0xff]
        %v1181 = vld [vmem:[#allocation5 + $0x15c8] sm:$0xff]
        %v1182 = vld [vmem:[#allocation5 + $0x15d0] sm:$0xff]
        %v1183 = vld [vmem:[#allocation5 + $0x15d8] sm:$0xff]
        %v1184 = vld [vmem:[#allocation5 + $0x15e0] sm:$0xff]
        %v1185 = vld [vmem:[#allocation5 + $0x15e8] sm:$0xff]
        %v1186 = vld [vmem:[#allocation5 + $0x15f0] sm:$0xff]
        %v1187 = vld [vmem:[#allocation5 + $0x15f8] sm:$0xff]
        %v1188 = vld [vmem:[#allocation5 + $0x1600] sm:$0xff]
        %v1189 = vld [vmem:[#allocation5 + $0x1608] sm:$0xff]
        %v1190 = vld [vmem:[#allocation5 + $0x1610] sm:$0xff]
        %v1191 = vld [vmem:[#allocation5 + $0x1618] sm:$0xff]
        %v1192 = vld [vmem:[#allocation5 + $0x1620] sm:$0xff]
        %v1193 = vld [vmem:[#allocation5 + $0x1628] sm:$0xff]
        %v1194 = vld [vmem:[#allocation5 + $0x1630] sm:$0xff]
        %v1195 = vld [vmem:[#allocation5 + $0x1638] sm:$0xff]
        %v1196 = vld [vmem:[#allocation5 + $0x1640] sm:$0xff]
        %v1197 = vld [vmem:[#allocation5 + $0x1648] sm:$0xff]
        %v1198 = vld [vmem:[#allocation5 + $0x1650] sm:$0xff]
        %v1199 = vld [vmem:[#allocation5 + $0x1658] sm:$0xff]
        %v1200 = vld [vmem:[#allocation5 + $0x1660] sm:$0xff]
        %v1201 = vld [vmem:[#allocation5 + $0x1668] sm:$0xff]
        %v1202 = vld [vmem:[#allocation5 + $0x1670] sm:$0xff]
        %v1203 = vld [vmem:[#allocation5 + $0x1678] sm:$0xff]
        %v1204 = vld [vmem:[#allocation5 + $0x1680] sm:$0xff]
        %v1205 = vld [vmem:[#allocation5 + $0x1688] sm:$0xff]
        %v1206 = vld [vmem:[#allocation5 + $0x1690] sm:$0xff]
        %v1207 = vld [vmem:[#allocation5 + $0x1698] sm:$0xff]
        %v1208 = vld [vmem:[#allocation5 + $0x16a0] sm:$0xff]
        %v1209 = vld [vmem:[#allocation5 + $0x16a8] sm:$0xff]
        %v1210 = vld [vmem:[#allocation5 + $0x16b0] sm:$0xff]
        %v1211 = vld [vmem:[#allocation5 + $0x16b8] sm:$0xff]
        %v1212 = vld [vmem:[#allocation5 + $0x16c0] sm:$0xff]
        %v1213 = vld [vmem:[#allocation5 + $0x16c8] sm:$0xff]
        %v1214 = vld [vmem:[#allocation5 + $0x16d0] sm:$0xff]
        %v1215 = vld [vmem:[#allocation5 + $0x16d8] sm:$0xff]
        %v1216 = vld [vmem:[#allocation5 + $0x16e0] sm:$0xff]
        %v1217 = vld [vmem:[#allocation5 + $0x16e8] sm:$0xff]
        %v1218 = vld [vmem:[#allocation5 + $0x16f0] sm:$0xff]
        %v1219 = vld [vmem:[#allocation5 + $0x16f8] sm:$0xff]
        %v1220 = vld [vmem:[#allocation5 + $0x1700] sm:$0xff]
        %v1221 = vld [vmem:[#allocation5 + $0x1708] sm:$0xff]
        %v1222 = vld [vmem:[#allocation5 + $0x1710] sm:$0xff]
        %v1223 = vld [vmem:[#allocation5 + $0x1718] sm:$0xff]
        %v1224 = vld [vmem:[#allocation5 + $0x1720] sm:$0xff]
        %v1225 = vld [vmem:[#allocation5 + $0x1728] sm:$0xff]
        %v1226 = vld [vmem:[#allocation5 + $0x1730] sm:$0xff]
        %v1227 = vld [vmem:[#allocation5 + $0x1738] sm:$0xff]
        %v1228 = vld [vmem:[#allocation5 + $0x1740] sm:$0xff]
        %v1229 = vld [vmem:[#allocation5 + $0x1748] sm:$0xff]
        %v1230 = vld [vmem:[#allocation5 + $0x1750] sm:$0xff]
        %v1231 = vld [vmem:[#allocation5 + $0x1758] sm:$0xff]
        %v1232 = vld [vmem:[#allocation5 + $0x1760] sm:$0xff]
        %v1233 = vld [vmem:[#allocation5 + $0x1768] sm:$0xff]
        %v1234 = vld [vmem:[#allocation5 + $0x1770] sm:$0xff]
        %v1235 = vld [vmem:[#allocation5 + $0x1778] sm:$0xff]
        %v1236 = vld [vmem:[#allocation5 + $0x1780] sm:$0xff]
        %v1237 = vld [vmem:[#allocation5 + $0x1788] sm:$0xff]
        %v1238 = vld [vmem:[#allocation5 + $0x1790] sm:$0xff]
        %v1239 = vld [vmem:[#allocation5 + $0x1798] sm:$0xff]
        %v1240 = vld [vmem:[#allocation5 + $0x17a0] sm:$0xff]
        %v1241 = vld [vmem:[#allocation5 + $0x17a8] sm:$0xff]
        %v1242 = vld [vmem:[#allocation5 + $0x17b0] sm:$0xff]
        %v1243 = vld [vmem:[#allocation5 + $0x17b8] sm:$0xff]
        %v1244 = vld [vmem:[#allocation5 + $0x17c0] sm:$0xff]
        %v1245 = vld [vmem:[#allocation5 + $0x17c8] sm:$0xff]
        %v1246 = vld [vmem:[#allocation5 + $0x17d0] sm:$0xff]
        %v1247 = vld [vmem:[#allocation5 + $0x17d8] sm:$0xff]
        %v1248 = vld [vmem:[#allocation5 + $0x17e0] sm:$0xff]
        %v1249 = vld [vmem:[#allocation5 + $0x17e8] sm:$0xff]
        %v1250 = vld [vmem:[#allocation5 + $0x17f0] sm:$0xff]
        %v1251 = vld [vmem:[#allocation5 + $0x17f8] sm:$0xff]
        %v1252 = vld [vmem:[#allocation5 + $0x1800] sm:$0xff]
        %v1253 = vld [vmem:[#allocation5 + $0x1808] sm:$0xff]
        %v1254 = vld [vmem:[#allocation5 + $0x1810] sm:$0xff]
        %v1255 = vld [vmem:[#allocation5 + $0x1818] sm:$0xff]
        %v1256 = vld [vmem:[#allocation5 + $0x1820] sm:$0xff]
        %v1257 = vld [vmem:[#allocation5 + $0x1828] sm:$0xff]
        %v1258 = vld [vmem:[#allocation5 + $0x1830] sm:$0xff]
        %v1259 = vld [vmem:[#allocation5 + $0x1838] sm:$0xff]
        %v1260 = vld [vmem:[#allocation5 + $0x1840] sm:$0xff]
        %v1261 = vld [vmem:[#allocation5 + $0x1848] sm:$0xff]
        %v1262 = vld [vmem:[#allocation5 + $0x1850] sm:$0xff]
        %v1263 = vld [vmem:[#allocation5 + $0x1858] sm:$0xff]
        %v1264 = vld [vmem:[#allocation5 + $0x1860] sm:$0xff]
        %v1265 = vld [vmem:[#allocation5 + $0x1868] sm:$0xff]
        %v1266 = vld [vmem:[#allocation5 + $0x1870] sm:$0xff]
        %v1267 = vld [vmem:[#allocation5 + $0x1878] sm:$0xff]
        %v1268 = vld [vmem:[#allocation5 + $0x1880] sm:$0xff]
        %v1269 = vld [vmem:[#allocation5 + $0x1888] sm:$0xff]
        %v1270 = vld [vmem:[#allocation5 + $0x1890] sm:$0xff]
        %v1271 = vld [vmem:[#allocation5 + $0x1898] sm:$0xff]
        %v1272 = vld [vmem:[#allocation5 + $0x18a0] sm:$0xff]
        %v1273 = vld [vmem:[#allocation5 + $0x18a8] sm:$0xff]
        %v1274 = vld [vmem:[#allocation5 + $0x18b0] sm:$0xff]
        %v1275 = vld [vmem:[#allocation5 + $0x18b8] sm:$0xff]
        %v1276 = vld [vmem:[#allocation5 + $0x18c0] sm:$0xff]
        %v1277 = vld [vmem:[#allocation5 + $0x18c8] sm:$0xff]
        %v1278 = vld [vmem:[#allocation5 + $0x18d0] sm:$0xff]
        %v1279 = vld [vmem:[#allocation5 + $0x18d8] sm:$0xff]
        %v1280 = vld [vmem:[#allocation5 + $0x18e0] sm:$0xff]
        %v1281 = vld [vmem:[#allocation5 + $0x18e8] sm:$0xff]
        %v1282 = vld [vmem:[#allocation5 + $0x18f0] sm:$0xff]
        %v1283 = vld [vmem:[#allocation5 + $0x18f8] sm:$0xff]
        %v1284 = vld [vmem:[#allocation5 + $0x1900] sm:$0xff]
        %v1285 = vld [vmem:[#allocation5 + $0x1908] sm:$0xff]
        %v1286 = vld [vmem:[#allocation5 + $0x1910] sm:$0xff]
        %v1287 = vld [vmem:[#allocation5 + $0x1918] sm:$0xff]
        %v1288 = vld [vmem:[#allocation5 + $0x1920] sm:$0xff]
        %v1289 = vld [vmem:[#allocation5 + $0x1928] sm:$0xff]
        %v1290 = vld [vmem:[#allocation5 + $0x1930] sm:$0xff]
        %v1291 = vld [vmem:[#allocation5 + $0x1938] sm:$0xff]
        %v1292 = vld [vmem:[#allocation5 + $0x1940] sm:$0xff]
        %v1293 = vld [vmem:[#allocation5 + $0x1948] sm:$0xff]
        %v1294 = vld [vmem:[#allocation5 + $0x1950] sm:$0xff]
        %v1295 = vld [vmem:[#allocation5 + $0x1958] sm:$0xff]
        %v1296 = vld [vmem:[#allocation5 + $0x1960] sm:$0xff]
        %v1297 = vld [vmem:[#allocation5 + $0x1968] sm:$0xff]
        %v1298 = vld [vmem:[#allocation5 + $0x1970] sm:$0xff]
        %v1299 = vld [vmem:[#allocation5 + $0x1978] sm:$0xff]
        %v1300 = vld [vmem:[#allocation5 + $0x1980] sm:$0xff]
        %v1301 = vld [vmem:[#allocation5 + $0x1988] sm:$0xff]
        %v1302 = vld [vmem:[#allocation5 + $0x1990] sm:$0xff]
        %v1303 = vld [vmem:[#allocation5 + $0x1998] sm:$0xff]
        %v1304 = vld [vmem:[#allocation5 + $0x19a0] sm:$0xff]
        %v1305 = vld [vmem:[#allocation5 + $0x19a8] sm:$0xff]
        %v1306 = vld [vmem:[#allocation5 + $0x19b0] sm:$0xff]
        %v1307 = vld [vmem:[#allocation5 + $0x19b8] sm:$0xff]
        %v1308 = vld [vmem:[#allocation5 + $0x19c0] sm:$0xff]
        %v1309 = vld [vmem:[#allocation5 + $0x19c8] sm:$0xff]
        %v1310 = vld [vmem:[#allocation5 + $0x19d0] sm:$0xff]
        %v1311 = vld [vmem:[#allocation5 + $0x19d8] sm:$0xff]
        %v1312 = vld [vmem:[#allocation5 + $0x19e0] sm:$0xff]
        %v1313 = vld [vmem:[#allocation5 + $0x19e8] sm:$0xff]
        %v1314 = vld [vmem:[#allocation5 + $0x19f0] sm:$0xff]
        %v1315 = vld [vmem:[#allocation5 + $0x19f8] sm:$0xff]
        %v1316 = vld [vmem:[#allocation5 + $0x1a00] sm:$0xff]
        %v1317 = vld [vmem:[#allocation5 + $0x1a08] sm:$0xff]
        %v1318 = vld [vmem:[#allocation5 + $0x1a10] sm:$0xff]
        %v1319 = vld [vmem:[#allocation5 + $0x1a18] sm:$0xff]
        %v1320 = vld [vmem:[#allocation5 + $0x1a20] sm:$0xff]
        %v1321 = vld [vmem:[#allocation5 + $0x1a28] sm:$0xff]
        %v1322 = vld [vmem:[#allocation5 + $0x1a30] sm:$0xff]
        %v1323 = vld [vmem:[#allocation5 + $0x1a38] sm:$0xff]
        %v1324 = vld [vmem:[#allocation5 + $0x1a40] sm:$0xff]
        %v1325 = vld [vmem:[#allocation5 + $0x1a48] sm:$0xff]
        %v1326 = vld [vmem:[#allocation5 + $0x1a50] sm:$0xff]
        %v1327 = vld [vmem:[#allocation5 + $0x1a58] sm:$0xff]
        %v1328 = vld [vmem:[#allocation5 + $0x1a60] sm:$0xff]
        %v1329 = vld [vmem:[#allocation5 + $0x1a68] sm:$0xff]
        %v1330 = vld [vmem:[#allocation5 + $0x1a70] sm:$0xff]
        %v1331 = vld [vmem:[#allocation5 + $0x1a78] sm:$0xff]
        %v1332 = vld [vmem:[#allocation5 + $0x1a80] sm:$0xff]
        %v1333 = vld [vmem:[#allocation5 + $0x1a88] sm:$0xff]
        %v1334 = vld [vmem:[#allocation5 + $0x1a90] sm:$0xff]
        %v1335 = vld [vmem:[#allocation5 + $0x1a98] sm:$0xff]
        %v1336 = vld [vmem:[#allocation5 + $0x1aa0] sm:$0xff]
        %v1337 = vld [vmem:[#allocation5 + $0x1aa8] sm:$0xff]
        %v1338 = vld [vmem:[#allocation5 + $0x1ab0] sm:$0xff]
        %v1339 = vld [vmem:[#allocation5 + $0x1ab8] sm:$0xff]
        %v1340 = vld [vmem:[#allocation5 + $0x1ac0] sm:$0xff]
        %v1341 = vld [vmem:[#allocation5 + $0x1ac8] sm:$0xff]
        %v1342 = vld [vmem:[#allocation5 + $0x1ad0] sm:$0xff]
        %v1343 = vld [vmem:[#allocation5 + $0x1ad8] sm:$0xff]
        %v1344 = vld [vmem:[#allocation5 + $0x1ae0] sm:$0xff]
        %v1345 = vld [vmem:[#allocation5 + $0x1ae8] sm:$0xff]
        %v1346 = vld [vmem:[#allocation5 + $0x1af0] sm:$0xff]
        %v1347 = vld [vmem:[#allocation5 + $0x1af8] sm:$0xff]
        %v1348 = vld [vmem:[#allocation5 + $0x1b00] sm:$0xff]
        %v1349 = vld [vmem:[#allocation5 + $0x1b08] sm:$0xff]
        %v1350 = vld [vmem:[#allocation5 + $0x1b10] sm:$0xff]
        %v1351 = vld [vmem:[#allocation5 + $0x1b18] sm:$0xff]
        %v1352 = vld [vmem:[#allocation5 + $0x1b20] sm:$0xff]
        %v1353 = vld [vmem:[#allocation5 + $0x1b28] sm:$0xff]
        %v1354 = vld [vmem:[#allocation5 + $0x1b30] sm:$0xff]
        %v1355 = vld [vmem:[#allocation5 + $0x1b38] sm:$0xff]
        %v1356 = vld [vmem:[#allocation5 + $0x1b40] sm:$0xff]
        %v1357 = vld [vmem:[#allocation5 + $0x1b48] sm:$0xff]
        %v1358 = vld [vmem:[#allocation5 + $0x1b50] sm:$0xff]
        %v1359 = vld [vmem:[#allocation5 + $0x1b58] sm:$0xff]
        %v1360 = vld [vmem:[#allocation5 + $0x1b60] sm:$0xff]
        %v1361 = vld [vmem:[#allocation5 + $0x1b68] sm:$0xff]
        %v1362 = vld [vmem:[#allocation5 + $0x1b70] sm:$0xff]
        %v1363 = vld [vmem:[#allocation5 + $0x1b78] sm:$0xff]
        %v1364 = vld [vmem:[#allocation5 + $0x1b80] sm:$0xff]
        %v1365 = vld [vmem:[#allocation5 + $0x1b88] sm:$0xff]
        %v1366 = vld [vmem:[#allocation5 + $0x1b90] sm:$0xff]
        %v1367 = vld [vmem:[#allocation5 + $0x1b98] sm:$0xff]
        %v1368 = vld [vmem:[#allocation5 + $0x1ba0] sm:$0xff]
        %v1369 = vld [vmem:[#allocation5 + $0x1ba8] sm:$0xff]
        %v1370 = vld [vmem:[#allocation5 + $0x1bb0] sm:$0xff]
        %v1371 = vld [vmem:[#allocation5 + $0x1bb8] sm:$0xff]
        %v1372 = vld [vmem:[#allocation5 + $0x1bc0] sm:$0xff]
        %v1373 = vld [vmem:[#allocation5 + $0x1bc8] sm:$0xff]
        %v1374 = vld [vmem:[#allocation5 + $0x1bd0] sm:$0xff]
        %v1375 = vld [vmem:[#allocation5 + $0x1bd8] sm:$0xff]
        %v1376 = vld [vmem:[#allocation5 + $0x1be0] sm:$0xff]
        %v1377 = vld [vmem:[#allocation5 + $0x1be8] sm:$0xff]
        %v1378 = vld [vmem:[#allocation5 + $0x1bf0] sm:$0xff]
        %v1379 = vld [vmem:[#allocation5 + $0x1bf8] sm:$0xff]
        %v1380 = vld [vmem:[#allocation5 + $0x1c00] sm:$0xff]
        %v1381 = vld [vmem:[#allocation5 + $0x1c08] sm:$0xff]
        %v1382 = vld [vmem:[#allocation5 + $0x1c10] sm:$0xff]
        %v1383 = vld [vmem:[#allocation5 + $0x1c18] sm:$0xff]
        %v1384 = vld [vmem:[#allocation5 + $0x1c20] sm:$0xff]
        %v1385 = vld [vmem:[#allocation5 + $0x1c28] sm:$0xff]
        %v1386 = vld [vmem:[#allocation5 + $0x1c30] sm:$0xff]
        %v1387 = vld [vmem:[#allocation5 + $0x1c38] sm:$0xff]
        %v1388 = vld [vmem:[#allocation5 + $0x1c40] sm:$0xff]
        %v1389 = vld [vmem:[#allocation5 + $0x1c48] sm:$0xff]
        %v1390 = vld [vmem:[#allocation5 + $0x1c50] sm:$0xff]
        %v1391 = vld [vmem:[#allocation5 + $0x1c58] sm:$0xff]
        %v1392 = vld [vmem:[#allocation5 + $0x1c60] sm:$0xff]
        %v1393 = vld [vmem:[#allocation5 + $0x1c68] sm:$0xff]
        %v1394 = vld [vmem:[#allocation5 + $0x1c70] sm:$0xff]
        %v1395 = vld [vmem:[#allocation5 + $0x1c78] sm:$0xff]
        %v1396 = vld [vmem:[#allocation5 + $0x1c80] sm:$0xff]
        %v1397 = vld [vmem:[#allocation5 + $0x1c88] sm:$0xff]
        %v1398 = vld [vmem:[#allocation5 + $0x1c90] sm:$0xff]
        %v1399 = vld [vmem:[#allocation5 + $0x1c98] sm:$0xff]
        %v1400 = vld [vmem:[#allocation5 + $0x1ca0] sm:$0xff]
        %v1401 = vld [vmem:[#allocation5 + $0x1ca8] sm:$0xff]
        %v1402 = vld [vmem:[#allocation5 + $0x1cb0] sm:$0xff]
        %v1403 = vld [vmem:[#allocation5 + $0x1cb8] sm:$0xff]
        %v1404 = vld [vmem:[#allocation5 + $0x1cc0] sm:$0xff]
        %v1405 = vld [vmem:[#allocation5 + $0x1cc8] sm:$0xff]
        %v1406 = vld [vmem:[#allocation5 + $0x1cd0] sm:$0xff]
        %v1407 = vld [vmem:[#allocation5 + $0x1cd8] sm:$0xff]
        %v1408 = vld [vmem:[#allocation5 + $0x1ce0] sm:$0xff]
        %v1409 = vld [vmem:[#allocation5 + $0x1ce8] sm:$0xff]
        %v1410 = vld [vmem:[#allocation5 + $0x1cf0] sm:$0xff]
        %v1411 = vld [vmem:[#allocation5 + $0x1cf8] sm:$0xff]
        %v1412 = vld [vmem:[#allocation5 + $0x1d00] sm:$0xff]
        %v1413 = vld [vmem:[#allocation5 + $0x1d08] sm:$0xff]
        %v1414 = vld [vmem:[#allocation5 + $0x1d10] sm:$0xff]
        %v1415 = vld [vmem:[#allocation5 + $0x1d18] sm:$0xff]
        %v1416 = vld [vmem:[#allocation5 + $0x1d20] sm:$0xff]
        %v1417 = vld [vmem:[#allocation5 + $0x1d28] sm:$0xff]
        %v1418 = vld [vmem:[#allocation5 + $0x1d30] sm:$0xff]
        %v1419 = vld [vmem:[#allocation5 + $0x1d38] sm:$0xff]
        %v1420 = vld [vmem:[#allocation5 + $0x1d40] sm:$0xff]
        %v1421 = vld [vmem:[#allocation5 + $0x1d48] sm:$0xff]
        %v1422 = vld [vmem:[#allocation5 + $0x1d50] sm:$0xff]
        %v1423 = vld [vmem:[#allocation5 + $0x1d58] sm:$0xff]
        %v1424 = vld [vmem:[#allocation5 + $0x1d60] sm:$0xff]
        %v1425 = vld [vmem:[#allocation5 + $0x1d68] sm:$0xff]
        %v1426 = vld [vmem:[#allocation5 + $0x1d70] sm:$0xff]
        %v1427 = vld [vmem:[#allocation5 + $0x1d78] sm:$0xff]
        %v1428 = vld [vmem:[#allocation5 + $0x1d80] sm:$0xff]
        %v1429 = vld [vmem:[#allocation5 + $0x1d88] sm:$0xff]
        %v1430 = vld [vmem:[#allocation5 + $0x1d90] sm:$0xff]
        %v1431 = vld [vmem:[#allocation5 + $0x1d98] sm:$0xff]
        %v1432 = vld [vmem:[#allocation5 + $0x1da0] sm:$0xff]
        %v1433 = vld [vmem:[#allocation5 + $0x1da8] sm:$0xff]
        %v1434 = vld [vmem:[#allocation5 + $0x1db0] sm:$0xff]
        %v1435 = vld [vmem:[#allocation5 + $0x1db8] sm:$0xff]
        %v1436 = vld [vmem:[#allocation5 + $0x1dc0] sm:$0xff]
        %v1437 = vld [vmem:[#allocation5 + $0x1dc8] sm:$0xff]
        %v1438 = vld [vmem:[#allocation5 + $0x1dd0] sm:$0xff]
        %v1439 = vld [vmem:[#allocation5 + $0x1dd8] sm:$0xff]
        %v1440 = vld [vmem:[#allocation5 + $0x1de0] sm:$0xff]
        %v1441 = vld [vmem:[#allocation5 + $0x1de8] sm:$0xff]
        %v1442 = vld [vmem:[#allocation5 + $0x1df0] sm:$0xff]
        %v1443 = vld [vmem:[#allocation5 + $0x1df8] sm:$0xff]
        %v1444 = vld [vmem:[#allocation5 + $0x1e00] sm:$0xff]
        %v1445 = vld [vmem:[#allocation5 + $0x1e08] sm:$0xff]
        %v1446 = vld [vmem:[#allocation5 + $0x1e10] sm:$0xff]
        %v1447 = vld [vmem:[#allocation5 + $0x1e18] sm:$0xff]
        %v1448 = vld [vmem:[#allocation5 + $0x1e20] sm:$0xff]
        %v1449 = vld [vmem:[#allocation5 + $0x1e28] sm:$0xff]
        %v1450 = vld [vmem:[#allocation5 + $0x1e30] sm:$0xff]
        %v1451 = vld [vmem:[#allocation5 + $0x1e38] sm:$0xff]
        %v1452 = vld [vmem:[#allocation5 + $0x1e40] sm:$0xff]
        %v1453 = vld [vmem:[#allocation5 + $0x1e48] sm:$0xff]
        %v1454 = vld [vmem:[#allocation5 + $0x1e50] sm:$0xff]
        %v1455 = vld [vmem:[#allocation5 + $0x1e58] sm:$0xff]
        %v1456 = vld [vmem:[#allocation5 + $0x1e60] sm:$0xff]
        %v1457 = vld [vmem:[#allocation5 + $0x1e68] sm:$0xff]
        %v1458 = vld [vmem:[#allocation5 + $0x1e70] sm:$0xff]
        %v1459 = vld [vmem:[#allocation5 + $0x1e78] sm:$0xff]
        %v1460 = vld [vmem:[#allocation5 + $0x1e80] sm:$0xff]
        %v1461 = vld [vmem:[#allocation5 + $0x1e88] sm:$0xff]
        %v1462 = vld [vmem:[#allocation5 + $0x1e90] sm:$0xff]
        %v1463 = vld [vmem:[#allocation5 + $0x1e98] sm:$0xff]
        %v1464 = vld [vmem:[#allocation5 + $0x1ea0] sm:$0xff]
        %v1465 = vld [vmem:[#allocation5 + $0x1ea8] sm:$0xff]
        %v1466 = vld [vmem:[#allocation5 + $0x1eb0] sm:$0xff]
        %v1467 = vld [vmem:[#allocation5 + $0x1eb8] sm:$0xff]
        %v1468 = vld [vmem:[#allocation5 + $0x1ec0] sm:$0xff]
        %v1469 = vld [vmem:[#allocation5 + $0x1ec8] sm:$0xff]
        %v1470 = vld [vmem:[#allocation5 + $0x1ed0] sm:$0xff]
        %v1471 = vld [vmem:[#allocation5 + $0x1ed8] sm:$0xff]
        %v1472 = vld [vmem:[#allocation5 + $0x1ee0] sm:$0xff]
        %v1473 = vld [vmem:[#allocation5 + $0x1ee8] sm:$0xff]
        %v1474 = vld [vmem:[#allocation5 + $0x1ef0] sm:$0xff]
        %v1475 = vld [vmem:[#allocation5 + $0x1ef8] sm:$0xff]
        %v1476 = vld [vmem:[#allocation5 + $0x1f00] sm:$0xff]
        %v1477 = vld [vmem:[#allocation5 + $0x1f08] sm:$0xff]
        %v1478 = vld [vmem:[#allocation5 + $0x1f10] sm:$0xff]
        %v1479 = vld [vmem:[#allocation5 + $0x1f18] sm:$0xff]
        %v1480 = vld [vmem:[#allocation5 + $0x1f20] sm:$0xff]
        %v1481 = vld [vmem:[#allocation5 + $0x1f28] sm:$0xff]
        %v1482 = vld [vmem:[#allocation5 + $0x1f30] sm:$0xff]
        %v1483 = vld [vmem:[#allocation5 + $0x1f38] sm:$0xff]
        %v1484 = vld [vmem:[#allocation5 + $0x1f40] sm:$0xff]
        %v1485 = vld [vmem:[#allocation5 + $0x1f48] sm:$0xff]
        %v1486 = vld [vmem:[#allocation5 + $0x1f50] sm:$0xff]
        %v1487 = vld [vmem:[#allocation5 + $0x1f58] sm:$0xff]
        %v1488 = vld [vmem:[#allocation5 + $0x1f60] sm:$0xff]
        %v1489 = vld [vmem:[#allocation5 + $0x1f68] sm:$0xff]
        %v1490 = vld [vmem:[#allocation5 + $0x1f70] sm:$0xff]
        %v1491 = vld [vmem:[#allocation5 + $0x1f78] sm:$0xff]
        %v1492 = vld [vmem:[#allocation5 + $0x1f80] sm:$0xff]
        %v1493 = vld [vmem:[#allocation5 + $0x1f88] sm:$0xff]
        %v1494 = vld [vmem:[#allocation5 + $0x1f90] sm:$0xff]
        %v1495 = vld [vmem:[#allocation5 + $0x1f98] sm:$0xff]
        %v1496 = vld [vmem:[#allocation5 + $0x1fa0] sm:$0xff]
        %v1497 = vld [vmem:[#allocation5 + $0x1fa8] sm:$0xff]
        %v1498 = vld [vmem:[#allocation5 + $0x1fb0] sm:$0xff]
        %v1499 = vld [vmem:[#allocation5 + $0x1fb8] sm:$0xff]
        %v1500 = vld [vmem:[#allocation5 + $0x1fc0] sm:$0xff]
        %v1501 = vld [vmem:[#allocation5 + $0x1fc8] sm:$0xff]
        %v1502 = vld [vmem:[#allocation5 + $0x1fd0] sm:$0xff]
        %v1503 = vld [vmem:[#allocation5 + $0x1fd8] sm:$0xff]
        %v1504 = vld [vmem:[#allocation5 + $0x1fe0] sm:$0xff]
        %v1505 = vld [vmem:[#allocation5 + $0x1fe8] sm:$0xff]
        %v1506 = vld [vmem:[#allocation5 + $0x1ff0] sm:$0xff]
        %v1507 = vld [vmem:[#allocation5 + $0x1ff8] sm:$0xff]
        %v1508 = vld [vmem:[#allocation5 + $0x2000] sm:$0xff]
        %v1509 = vld [vmem:[#allocation5 + $0x2008] sm:$0xff]
        %v1510 = vld [vmem:[#allocation5 + $0x2010] sm:$0xff]
        %v1511 = vld [vmem:[#allocation5 + $0x2018] sm:$0xff]
        %v1512 = vld [vmem:[#allocation5 + $0x2020] sm:$0xff]
        %v1513 = vld [vmem:[#allocation5 + $0x2028] sm:$0xff]
        %v1514 = vld [vmem:[#allocation5 + $0x2030] sm:$0xff]
        %v1515 = vld [vmem:[#allocation5 + $0x2038] sm:$0xff]
        %v1516 = vld [vmem:[#allocation5 + $0x2040] sm:$0xff]
        %v1517 = vld [vmem:[#allocation5 + $0x2048] sm:$0xff]
        %v1518 = vld [vmem:[#allocation5 + $0x2050] sm:$0xff]
        %v1519 = vld [vmem:[#allocation5 + $0x2058] sm:$0xff]
        %v1520 = vld [vmem:[#allocation5 + $0x2060] sm:$0xff]
        %v1521 = vld [vmem:[#allocation5 + $0x2068] sm:$0xff]
        %v1522 = vld [vmem:[#allocation5 + $0x2070] sm:$0xff]
        %v1523 = vld [vmem:[#allocation5 + $0x2078] sm:$0xff]
        %v1524 = vld [vmem:[#allocation5 + $0x2080] sm:$0xff]
        %v1525 = vld [vmem:[#allocation5 + $0x2088] sm:$0xff]
        %v1526 = vld [vmem:[#allocation5 + $0x2090] sm:$0xff]
        %v1527 = vld [vmem:[#allocation5 + $0x2098] sm:$0xff]
        %v1528 = vld [vmem:[#allocation5 + $0x20a0] sm:$0xff]
        %v1529 = vld [vmem:[#allocation5 + $0x20a8] sm:$0xff]
        %v1530 = vld [vmem:[#allocation5 + $0x20b0] sm:$0xff]
        %v1531 = vld [vmem:[#allocation5 + $0x20b8] sm:$0xff]
        %v1532 = vld [vmem:[#allocation5 + $0x20c0] sm:$0xff]
        %v1533 = vld [vmem:[#allocation5 + $0x20c8] sm:$0xff]
        %v1534 = vld [vmem:[#allocation5 + $0x20d0] sm:$0xff]
        %v1535 = vld [vmem:[#allocation5 + $0x20d8] sm:$0xff]
        %v1536 = vld [vmem:[#allocation5 + $0x20e0] sm:$0xff]
        %v1537 = vld [vmem:[#allocation5 + $0x20e8] sm:$0xff]
        %v1538 = vld [vmem:[#allocation5 + $0x20f0] sm:$0xff]
        %v1539 = vld [vmem:[#allocation5 + $0x20f8] sm:$0xff]
        %v1540 = vld [vmem:[#allocation5 + $0x2100] sm:$0xff]
        %v1541 = vld [vmem:[#allocation5 + $0x2108] sm:$0xff]
        %v1542 = vld [vmem:[#allocation5 + $0x2110] sm:$0xff]
        %v1543 = vld [vmem:[#allocation5 + $0x2118] sm:$0xff]
        %v1544 = vld [vmem:[#allocation5 + $0x2120] sm:$0xff]
        %v1545 = vld [vmem:[#allocation5 + $0x2128] sm:$0xff]
        %v1546 = vld [vmem:[#allocation5 + $0x2130] sm:$0xff]
        %v1547 = vld [vmem:[#allocation5 + $0x2138] sm:$0xff]
        %v1548 = vld [vmem:[#allocation5 + $0x2140] sm:$0xff]
        %v1549 = vld [vmem:[#allocation5 + $0x2148] sm:$0xff]
        %v1550 = vld [vmem:[#allocation5 + $0x2150] sm:$0xff]
        %v1551 = vld [vmem:[#allocation5 + $0x2158] sm:$0xff]
        %v1552 = vld [vmem:[#allocation5 + $0x2160] sm:$0xff]
        %v1553 = vld [vmem:[#allocation5 + $0x2168] sm:$0xff]
        %v1554 = vld [vmem:[#allocation5 + $0x2170] sm:$0xff]
        %v1555 = vld [vmem:[#allocation5 + $0x2178] sm:$0xff]
        %v1556 = vld [vmem:[#allocation5 + $0x2180] sm:$0xff]
        %v1557 = vld [vmem:[#allocation5 + $0x2188] sm:$0xff]
        %v1558 = vld [vmem:[#allocation5 + $0x2190] sm:$0xff]
        %v1559 = vld [vmem:[#allocation5 + $0x2198] sm:$0xff]
        %v1560 = vld [vmem:[#allocation5 + $0x21a0] sm:$0xff]
        %v1561 = vld [vmem:[#allocation5 + $0x21a8] sm:$0xff]
        %v1562 = vld [vmem:[#allocation5 + $0x21b0] sm:$0xff]
        %v1563 = vld [vmem:[#allocation5 + $0x21b8] sm:$0xff]
        %v1564 = vld [vmem:[#allocation5 + $0x21c0] sm:$0xff]
        %v1565 = vld [vmem:[#allocation5 + $0x21c8] sm:$0xff]
        %v1566 = vld [vmem:[#allocation5 + $0x21d0] sm:$0xff]
        %v1567 = vld [vmem:[#allocation5 + $0x21d8] sm:$0xff]
        %v1568 = vld [vmem:[#allocation5 + $0x21e0] sm:$0xff]
        %v1569 = vld [vmem:[#allocation5 + $0x21e8] sm:$0xff]
        %v1570 = vld [vmem:[#allocation5 + $0x21f0] sm:$0xff]
        %v1571 = vld [vmem:[#allocation5 + $0x21f8] sm:$0xff]
        %v1572 = vld [vmem:[#allocation5 + $0x2200] sm:$0xff]
        %v1573 = vld [vmem:[#allocation5 + $0x2208] sm:$0xff]
        %v1574 = vld [vmem:[#allocation5 + $0x2210] sm:$0xff]
        %v1575 = vld [vmem:[#allocation5 + $0x2218] sm:$0xff]
        %v1576 = vld [vmem:[#allocation5 + $0x2220] sm:$0xff]
        %v1577 = vld [vmem:[#allocation5 + $0x2228] sm:$0xff]
        %v1578 = vld [vmem:[#allocation5 + $0x2230] sm:$0xff]
        %v1579 = vld [vmem:[#allocation5 + $0x2238] sm:$0xff]
        %v1580 = vld [vmem:[#allocation5 + $0x2240] sm:$0xff]
        %v1581 = vld [vmem:[#allocation5 + $0x2248] sm:$0xff]
        %v1582 = vld [vmem:[#allocation5 + $0x2250] sm:$0xff]
        %v1583 = vld [vmem:[#allocation5 + $0x2258] sm:$0xff]
        %v1584 = vld [vmem:[#allocation5 + $0x2260] sm:$0xff]
        %v1585 = vld [vmem:[#allocation5 + $0x2268] sm:$0xff]
        %v1586 = vld [vmem:[#allocation5 + $0x2270] sm:$0xff]
        %v1587 = vld [vmem:[#allocation5 + $0x2278] sm:$0xff]
        %v1588 = vld [vmem:[#allocation5 + $0x2280] sm:$0xff]
        %v1589 = vld [vmem:[#allocation5 + $0x2288] sm:$0xff]
        %v1590 = vld [vmem:[#allocation5 + $0x2290] sm:$0xff]
        %v1591 = vld [vmem:[#allocation5 + $0x2298] sm:$0xff]
        %v1592 = vld [vmem:[#allocation5 + $0x22a0] sm:$0xff]
        %v1593 = vld [vmem:[#allocation5 + $0x22a8] sm:$0xff]
        %v1594 = vld [vmem:[#allocation5 + $0x22b0] sm:$0xff]
        %v1595 = vld [vmem:[#allocation5 + $0x22b8] sm:$0xff]
        %v1596 = vld [vmem:[#allocation5 + $0x22c0] sm:$0xff]
        %v1597 = vld [vmem:[#allocation5 + $0x22c8] sm:$0xff]
        %v1598 = vld [vmem:[#allocation5 + $0x22d0] sm:$0xff]
        %v1599 = vld [vmem:[#allocation5 + $0x22d8] sm:$0xff]
        %v1600 = vld [vmem:[#allocation5 + $0x22e0] sm:$0xff]
        %v1601 = vld [vmem:[#allocation5 + $0x22e8] sm:$0xff]
        %v1602 = vld [vmem:[#allocation5 + $0x22f0] sm:$0xff]
        %v1603 = vld [vmem:[#allocation5 + $0x22f8] sm:$0xff]
        %v1604 = vld [vmem:[#allocation5 + $0x2300] sm:$0xff]
        %v1605 = vld [vmem:[#allocation5 + $0x2308] sm:$0xff]
        %v1606 = vld [vmem:[#allocation5 + $0x2310] sm:$0xff]
        %v1607 = vld [vmem:[#allocation5 + $0x2318] sm:$0xff]
        %v1608 = vld [vmem:[#allocation5 + $0x2320] sm:$0xff]
        %v1609 = vld [vmem:[#allocation5 + $0x2328] sm:$0xff]
        %v1610 = vld [vmem:[#allocation5 + $0x2330] sm:$0xff]
        %v1611 = vld [vmem:[#allocation5 + $0x2338] sm:$0xff]
        %v1612 = vld [vmem:[#allocation5 + $0x2340] sm:$0xff]
        %v1613 = vld [vmem:[#allocation5 + $0x2348] sm:$0xff]
        %v1614 = vld [vmem:[#allocation5 + $0x2350] sm:$0xff]
        %v1615 = vld [vmem:[#allocation5 + $0x2358] sm:$0xff]
        %v1616 = vld [vmem:[#allocation5 + $0x2360] sm:$0xff]
        %v1617 = vld [vmem:[#allocation5 + $0x2368] sm:$0xff]
        %v1618 = vld [vmem:[#allocation5 + $0x2370] sm:$0xff]
        %v1619 = vld [vmem:[#allocation5 + $0x2378] sm:$0xff]
        %v1620 = vld [vmem:[#allocation5 + $0x2380] sm:$0xff]
        %v1621 = vld [vmem:[#allocation5 + $0x2388] sm:$0xff]
        %v1622 = vld [vmem:[#allocation5 + $0x2390] sm:$0xff]
        %v1623 = vld [vmem:[#allocation5 + $0x2398] sm:$0xff]
        %v1624 = vld [vmem:[#allocation5 + $0x23a0] sm:$0xff]
        %v1625 = vld [vmem:[#allocation5 + $0x23a8] sm:$0xff]
        %v1626 = vld [vmem:[#allocation5 + $0x23b0] sm:$0xff]
        %v1627 = vld [vmem:[#allocation5 + $0x23b8] sm:$0xff]
        %v1628 = vld [vmem:[#allocation5 + $0x23c0] sm:$0xff]
        %v1629 = vld [vmem:[#allocation5 + $0x23c8] sm:$0xff]
        %v1630 = vld [vmem:[#allocation5 + $0x23d0] sm:$0xff]
        %v1631 = vld [vmem:[#allocation5 + $0x23d8] sm:$0xff]
        %v1632 = vld [vmem:[#allocation5 + $0x23e0] sm:$0xff]
        %v1633 = vld [vmem:[#allocation5 + $0x23e8] sm:$0xff]
        %v1634 = vld [vmem:[#allocation5 + $0x23f0] sm:$0xff]
        %v1635 = vld [vmem:[#allocation5 + $0x23f8] sm:$0xff]
        %v1636 = vld [vmem:[#allocation5 + $0x2400] sm:$0xff]
        %v1637 = vld [vmem:[#allocation5 + $0x2408] sm:$0xff]
        %v1638 = vld [vmem:[#allocation5 + $0x2410] sm:$0xff]
        %v1639 = vld [vmem:[#allocation5 + $0x2418] sm:$0xff]
        %v1640 = vld [vmem:[#allocation5 + $0x2420] sm:$0xff]
        %v1641 = vld [vmem:[#allocation5 + $0x2428] sm:$0xff]
        %v1642 = vld [vmem:[#allocation5 + $0x2430] sm:$0xff]
        %v1643 = vld [vmem:[#allocation5 + $0x2438] sm:$0xff]
        %v1644 = vld [vmem:[#allocation5 + $0x2440] sm:$0xff]
        %v1645 = vld [vmem:[#allocation5 + $0x2448] sm:$0xff]
        %v1646 = vld [vmem:[#allocation5 + $0x2450] sm:$0xff]
        %v1647 = vld [vmem:[#allocation5 + $0x2458] sm:$0xff]
        %v1648 = vld [vmem:[#allocation5 + $0x2460] sm:$0xff]
        %v1649 = vld [vmem:[#allocation5 + $0x2468] sm:$0xff]
        %v1650 = vld [vmem:[#allocation5 + $0x2470] sm:$0xff]
        %v1651 = vld [vmem:[#allocation5 + $0x2478] sm:$0xff]
        %v1652 = vld [vmem:[#allocation5 + $0x2480] sm:$0xff]
        %v1653 = vld [vmem:[#allocation5 + $0x2488] sm:$0xff]
        %v1654 = vld [vmem:[#allocation5 + $0x2490] sm:$0xff]
        %v1655 = vld [vmem:[#allocation5 + $0x2498] sm:$0xff]
        %v1656 = vld [vmem:[#allocation5 + $0x24a0] sm:$0xff]
        %v1657 = vld [vmem:[#allocation5 + $0x24a8] sm:$0xff]
        %v1658 = vld [vmem:[#allocation5 + $0x24b0] sm:$0xff]
        %v1659 = vld [vmem:[#allocation5 + $0x24b8] sm:$0xff]
        %v1660 = vld [vmem:[#allocation5 + $0x24c0] sm:$0xff]
        %v1661 = vld [vmem:[#allocation5 + $0x24c8] sm:$0xff]
        %v1662 = vld [vmem:[#allocation5 + $0x24d0] sm:$0xff]
        %v1663 = vld [vmem:[#allocation5 + $0x24d8] sm:$0xff]
        %v1664 = vld [vmem:[#allocation5 + $0x24e0] sm:$0xff]
        %v1665 = vld [vmem:[#allocation5 + $0x24e8] sm:$0xff]
        %v1666 = vld [vmem:[#allocation5 + $0x24f0] sm:$0xff]
        %v1667 = vld [vmem:[#allocation5 + $0x24f8] sm:$0xff]
        %v1668 = vld [vmem:[#allocation5 + $0x2500] sm:$0xff]
        %v1669 = vld [vmem:[#allocation5 + $0x2508] sm:$0xff]
        %v1670 = vld [vmem:[#allocation5 + $0x2510] sm:$0xff]
        %v1671 = vld [vmem:[#allocation5 + $0x2518] sm:$0xff]
        %v1672 = vld [vmem:[#allocation5 + $0x2520] sm:$0xff]
        %v1673 = vld [vmem:[#allocation5 + $0x2528] sm:$0xff]
        %v1674 = vld [vmem:[#allocation5 + $0x2530] sm:$0xff]
        %v1675 = vld [vmem:[#allocation5 + $0x2538] sm:$0xff]
        %v1676 = vld [vmem:[#allocation5 + $0x2540] sm:$0xff]
        %v1677 = vld [vmem:[#allocation5 + $0x2548] sm:$0xff]
        %v1678 = vld [vmem:[#allocation5 + $0x2550] sm:$0xff]
        %v1679 = vld [vmem:[#allocation5 + $0x2558] sm:$0xff]
        %v1680 = vld [vmem:[#allocation5 + $0x2560] sm:$0xff]
        %v1681 = vld [vmem:[#allocation5 + $0x2568] sm:$0xff]
        %v1682 = vld [vmem:[#allocation5 + $0x2570] sm:$0xff]
        %v1683 = vld [vmem:[#allocation5 + $0x2578] sm:$0xff]
        %v1684 = vld [vmem:[#allocation5 + $0x2580] sm:$0xff]
        %v1685 = vld [vmem:[#allocation5 + $0x2588] sm:$0xff]
        %v1686 = vld [vmem:[#allocation5 + $0x2590] sm:$0xff]
        %v1687 = vld [vmem:[#allocation5 + $0x2598] sm:$0xff]
        %v1688 = vld [vmem:[#allocation5 + $0x25a0] sm:$0xff]
        %v1689 = vld [vmem:[#allocation5 + $0x25a8] sm:$0xff]
        %v1690 = vld [vmem:[#allocation5 + $0x25b0] sm:$0xff]
        %v1691 = vld [vmem:[#allocation5 + $0x25b8] sm:$0xff]
        %v1692 = vld [vmem:[#allocation5 + $0x25c0] sm:$0xff]
        %v1693 = vld [vmem:[#allocation5 + $0x25c8] sm:$0xff]
        %v1694 = vld [vmem:[#allocation5 + $0x25d0] sm:$0xff]
        %v1695 = vld [vmem:[#allocation5 + $0x25d8] sm:$0xff]
        %v1696 = vld [vmem:[#allocation5 + $0x25e0] sm:$0xff]
        %v1697 = vld [vmem:[#allocation5 + $0x25e8] sm:$0xff]
        %v1698 = vld [vmem:[#allocation5 + $0x25f0] sm:$0xff]
        %v1699 = vld [vmem:[#allocation5 + $0x25f8] sm:$0xff]
        %v1700 = vld [vmem:[#allocation5 + $0x2600] sm:$0xff]
        %v1701 = vld [vmem:[#allocation5 + $0x2608] sm:$0xff]
        %v1702 = vld [vmem:[#allocation5 + $0x2610] sm:$0xff]
        %v1703 = vld [vmem:[#allocation5 + $0x2618] sm:$0xff]
        %v1704 = vld [vmem:[#allocation5 + $0x2620] sm:$0xff]
        %v1705 = vld [vmem:[#allocation5 + $0x2628] sm:$0xff]
        %v1706 = vld [vmem:[#allocation5 + $0x2630] sm:$0xff]
        %v1707 = vld [vmem:[#allocation5 + $0x2638] sm:$0xff]
        %v1708 = vld [vmem:[#allocation5 + $0x2640] sm:$0xff]
        %v1709 = vld [vmem:[#allocation5 + $0x2648] sm:$0xff]
        %v1710 = vld [vmem:[#allocation5 + $0x2650] sm:$0xff]
        %v1711 = vld [vmem:[#allocation5 + $0x2658] sm:$0xff]
        %v1712 = vld [vmem:[#allocation5 + $0x2660] sm:$0xff]
        %v1713 = vld [vmem:[#allocation5 + $0x2668] sm:$0xff]
        %v1714 = vld [vmem:[#allocation5 + $0x2670] sm:$0xff]
        %v1715 = vld [vmem:[#allocation5 + $0x2678] sm:$0xff]
        %v1716 = vld [vmem:[#allocation5 + $0x2680] sm:$0xff]
        %v1717 = vld [vmem:[#allocation5 + $0x2688] sm:$0xff]
        %v1718 = vld [vmem:[#allocation5 + $0x2690] sm:$0xff]
        %v1719 = vld [vmem:[#allocation5 + $0x2698] sm:$0xff]
        %v1720 = vld [vmem:[#allocation5 + $0x26a0] sm:$0xff]
        %v1721 = vld [vmem:[#allocation5 + $0x26a8] sm:$0xff]
        %v1722 = vld [vmem:[#allocation5 + $0x26b0] sm:$0xff]
        %v1723 = vld [vmem:[#allocation5 + $0x26b8] sm:$0xff]
        %v1724 = vld [vmem:[#allocation5 + $0x26c0] sm:$0xff]
        %v1725 = vld [vmem:[#allocation5 + $0x26c8] sm:$0xff]
        %v1726 = vld [vmem:[#allocation5 + $0x26d0] sm:$0xff]
        %v1727 = vld [vmem:[#allocation5 + $0x26d8] sm:$0xff]
        %v1728 = vld [vmem:[#allocation5 + $0x26e0] sm:$0xff]
        %v1729 = vld [vmem:[#allocation5 + $0x26e8] sm:$0xff]
        %v1730 = vld [vmem:[#allocation5 + $0x26f0] sm:$0xff]
        %v1731 = vld [vmem:[#allocation5 + $0x26f8] sm:$0xff]
        %v1732 = vld [vmem:[#allocation5 + $0x2700] sm:$0xff]
        %v1733 = vld [vmem:[#allocation5 + $0x2708] sm:$0xff]
        %v1734 = vld [vmem:[#allocation5 + $0x2710] sm:$0xff]
        %v1735 = vld [vmem:[#allocation5 + $0x2718] sm:$0xff]
        %v1736 = vld [vmem:[#allocation5 + $0x2720] sm:$0xff]
        %v1737 = vld [vmem:[#allocation5 + $0x2728] sm:$0xff]
        %v1738 = vld [vmem:[#allocation5 + $0x2730] sm:$0xff]
        %v1739 = vld [vmem:[#allocation5 + $0x2738] sm:$0xff]
        %v1740 = vld [vmem:[#allocation5 + $0x2740] sm:$0xff]
        %v1741 = vld [vmem:[#allocation5 + $0x2748] sm:$0xff]
        %v1742 = vld [vmem:[#allocation5 + $0x2750] sm:$0xff]
        %v1743 = vld [vmem:[#allocation5 + $0x2758] sm:$0xff]
        %v1744 = vld [vmem:[#allocation5 + $0x2760] sm:$0xff]
        %v1745 = vld [vmem:[#allocation5 + $0x2768] sm:$0xff]
        %v1746 = vld [vmem:[#allocation5 + $0x2770] sm:$0xff]
        %v1747 = vld [vmem:[#allocation5 + $0x2778] sm:$0xff]
        %v1748 = vld [vmem:[#allocation5 + $0x2780] sm:$0xff]
        %v1749 = vld [vmem:[#allocation5 + $0x2788] sm:$0xff]
        %v1750 = vld [vmem:[#allocation5 + $0x2790] sm:$0xff]
        %v1751 = vld [vmem:[#allocation5 + $0x2798] sm:$0xff]
        %v1752 = vld [vmem:[#allocation5 + $0x27a0] sm:$0xff]
        %v1753 = vld [vmem:[#allocation5 + $0x27a8] sm:$0xff]
        %v1754 = vld [vmem:[#allocation5 + $0x27b0] sm:$0xff]
        %v1755 = vld [vmem:[#allocation5 + $0x27b8] sm:$0xff]
        %v1756 = vld [vmem:[#allocation5 + $0x27c0] sm:$0xff]
        %v1757 = vld [vmem:[#allocation5 + $0x27c8] sm:$0xff]
        %v1758 = vld [vmem:[#allocation5 + $0x27d0] sm:$0xff]
        %v1759 = vld [vmem:[#allocation5 + $0x27d8] sm:$0xff]
        %v1760 = vld [vmem:[#allocation5 + $0x27e0] sm:$0xff]
        %v1761 = vld [vmem:[#allocation5 + $0x27e8] sm:$0xff]
        %v1762 = vld [vmem:[#allocation5 + $0x27f0] sm:$0xff]
        %v1763 = vld [vmem:[#allocation5 + $0x27f8] sm:$0xff]
        %v1764 = vld [vmem:[#allocation5 + $0x2800] sm:$0xff]
        %v1765 = vld [vmem:[#allocation5 + $0x2808] sm:$0xff]
        %v1766 = vld [vmem:[#allocation5 + $0x2810] sm:$0xff]
        %v1767 = vld [vmem:[#allocation5 + $0x2818] sm:$0xff]
        %v1768 = vld [vmem:[#allocation5 + $0x2820] sm:$0xff]
        %v1769 = vld [vmem:[#allocation5 + $0x2828] sm:$0xff]
        %v1770 = vld [vmem:[#allocation5 + $0x2830] sm:$0xff]
        %v1771 = vld [vmem:[#allocation5 + $0x2838] sm:$0xff]
        %v1772 = vld [vmem:[#allocation5 + $0x2840] sm:$0xff]
        %v1773 = vld [vmem:[#allocation5 + $0x2848] sm:$0xff]
        %v1774 = vld [vmem:[#allocation5 + $0x2850] sm:$0xff]
        %v1775 = vld [vmem:[#allocation5 + $0x2858] sm:$0xff]
        %v1776 = vld [vmem:[#allocation5 + $0x2860] sm:$0xff]
        %v1777 = vld [vmem:[#allocation5 + $0x2868] sm:$0xff]
        %v1778 = vld [vmem:[#allocation5 + $0x2870] sm:$0xff]
        %v1779 = vld [vmem:[#allocation5 + $0x2878] sm:$0xff]
        %v1780 = vld [vmem:[#allocation5 + $0x2880] sm:$0xff]
        %v1781 = vld [vmem:[#allocation5 + $0x2888] sm:$0xff]
        %v1782 = vld [vmem:[#allocation5 + $0x2890] sm:$0xff]
        %v1783 = vld [vmem:[#allocation5 + $0x2898] sm:$0xff]
        %v1784 = vld [vmem:[#allocation5 + $0x28a0] sm:$0xff]
        %v1785 = vld [vmem:[#allocation5 + $0x28a8] sm:$0xff]
        %v1786 = vld [vmem:[#allocation5 + $0x28b0] sm:$0xff]
        %v1787 = vld [vmem:[#allocation5 + $0x28b8] sm:$0xff]
        %v1788 = vld [vmem:[#allocation5 + $0x28c0] sm:$0xff]
        %v1789 = vld [vmem:[#allocation5 + $0x28c8] sm:$0xff]
        %v1790 = vld [vmem:[#allocation5 + $0x28d0] sm:$0xff]
        %v1791 = vld [vmem:[#allocation5 + $0x28d8] sm:$0xff]
        %v1792 = vld [vmem:[#allocation5 + $0x28e0] sm:$0xff]
        %v1793 = vld [vmem:[#allocation5 + $0x28e8] sm:$0xff]
        %v1794 = vld [vmem:[#allocation5 + $0x28f0] sm:$0xff]
        %v1795 = vld [vmem:[#allocation5 + $0x28f8] sm:$0xff]
        %v1796 = vld [vmem:[#allocation5 + $0x2900] sm:$0xff]
        %v1797 = vld [vmem:[#allocation5 + $0x2908] sm:$0xff]
        %v1798 = vld [vmem:[#allocation5 + $0x2910] sm:$0xff]
        %v1799 = vld [vmem:[#allocation5 + $0x2918] sm:$0xff]
        %v1800 = vld [vmem:[#allocation5 + $0x2920] sm:$0xff]
        %v1801 = vld [vmem:[#allocation5 + $0x2928] sm:$0xff]
        %v1802 = vld [vmem:[#allocation5 + $0x2930] sm:$0xff]
        %v1803 = vld [vmem:[#allocation5 + $0x2938] sm:$0xff]
        %v1804 = vld [vmem:[#allocation5 + $0x2940] sm:$0xff]
        %v1805 = vld [vmem:[#allocation5 + $0x2948] sm:$0xff]
        %v1806 = vld [vmem:[#allocation5 + $0x2950] sm:$0xff]
        %v1807 = vld [vmem:[#allocation5 + $0x2958] sm:$0xff]
        %v1808 = vld [vmem:[#allocation5 + $0x2960] sm:$0xff]
        %v1809 = vld [vmem:[#allocation5 + $0x2968] sm:$0xff]
        %v1810 = vld [vmem:[#allocation5 + $0x2970] sm:$0xff]
        %v1811 = vld [vmem:[#allocation5 + $0x2978] sm:$0xff]
        %v1812 = vld [vmem:[#allocation7] sm:$0xff]
        %v1814 = vlaneseq
        %v1815 = vshrl.u32 %v1814, 7
        %v1816 = vsub.s32 0, %v1815
        %v1817 = vrot.slane %v1812, %v1816
        %v1818 = vlaneseq
        %v1819 = vshrl.u32 %v1818, 7
        %v1820 = vsub.s32 1, %v1819
        %v1821 = vrot.slane %v1812, %v1820
        %v1822 = vlaneseq
        %v1823 = vshrl.u32 %v1822, 7
        %v1824 = vsub.s32 2, %v1823
        %v1825 = vrot.slane %v1812, %v1824
        %v1826 = vlaneseq
        %v1827 = vshrl.u32 %v1826, 7
        %v1828 = vsub.s32 3, %v1827
        %v1829 = vrot.slane %v1812, %v1828
        %v1830 = vlaneseq
        %v1831 = vshrl.u32 %v1830, 7
        %v1832 = vsub.s32 4, %v1831
        %v1833 = vrot.slane %v1812, %v1832
        %v1834 = vlaneseq
        %v1835 = vshrl.u32 %v1834, 7
        %v1836 = vsub.s32 5, %v1835
        %v1837 = vrot.slane %v1812, %v1836
        %v1838 = vlaneseq
        %v1839 = vshrl.u32 %v1838, 7
        %v1840 = vsub.s32 6, %v1839
        %v1841 = vrot.slane %v1812, %v1840
        %v1842 = vlaneseq
        %v1843 = vshrl.u32 %v1842, 7
        %v1844 = vsub.s32 7, %v1843
        %v1845 = vrot.slane %v1812, %v1844
        %vm1854 = vcmask 392192
        %v1856 = vsel %vm1854, %v472, 0
        %v1859 = vsel %vm1854, %v483, 0
        %1861 = vmatprep.subr.mxu0 %v485
        %1862 = vmatpush1.msra.mxu0 %v484
        %1863 = vmatprep.subr.mxu0 %v493
        %1864 = vmatpush1.msra.mxu0 %v492
        %1865 = vmatprep.subr.mxu0 %v501
        %1866 = vmatpush1.msra.mxu0 %v500
        %1867 = vmatprep.subr.mxu0 %v509
        %1868 = vmatpush1.msra.mxu0 %v508
        %1869 = vmatprep.subr.mxu0 %v517
        %1870 = vmatpush1.msra.mxu0 %v516
        %1871 = vmatprep.subr.mxu0 %v525
        %1872 = vmatpush1.msra.mxu0 %v524
        %1873 = vmatprep.subr.mxu0 %v533
        %1874 = vmatpush1.msra.mxu0 %v532
        %1875 = vmatprep.subr.mxu0 %v541
        %1876 = vmatpush1.msra.mxu0 %v540
        %1877 = vmatprep.subr.mxu0 %v549
        %1878 = vmatpush1.msra.mxu0 %v548
        %1879 = vmatprep.subr.mxu0 %v557
        %1880 = vmatpush1.msra.mxu0 %v556
        %1881 = vmatprep.subr.mxu0 %v565
        %1882 = vmatpush1.msra.mxu0 %v564
        %1883 = vmatprep.subr.mxu0 %v573
        %1884 = vmatpush1.msra.mxu0 %v572
        %1885 = vmatprep.subr.mxu0 %v581
        %1886 = vmatpush1.msra.mxu0 %v580
        %1887 = vmatprep.subr.mxu0 %v589
        %1888 = vmatpush1.msra.mxu0 %v588
        %1889 = vmatprep.subr.mxu0 %v597
        %1890 = vmatpush1.msra.mxu0 %v596
        %1891 = vmatprep.subr.mxu0 %v605
        %1892 = vmatpush1.msra.mxu0 %v604
        %1893 = vmatprep.subr.mxu0 %v613
        %1894 = vmatpush1.msra.mxu0 %v612
        %1895 = vmatprep.subr.mxu0 %v621
        %1896 = vmatpush1.msra.mxu0 %v620
        %1897 = vmatprep.subr.mxu0 %v629
        %1898 = vmatpush1.msra.mxu0 %v628
        %1899 = vmatprep.subr.mxu0 %v637
        %1900 = vmatpush1.msra.mxu0 %v636
        %1901 = vmatprep.subr.mxu0 %v645
        %1902 = vmatpush1.msra.mxu0 %v644
        %1903 = vmatprep.subr.mxu0 %v653
        %1904 = vmatpush1.msra.mxu0 %v652
        %1905 = vmatprep.subr.mxu0 %v661
        %1906 = vmatpush1.msra.mxu0 %v660
        %1907 = vmatprep.subr.mxu0 %v669
        %1908 = vmatpush1.msra.mxu0 %v668
        %1909 = vmatprep.subr.mxu0 %v677
        %1910 = vmatpush1.msra.mxu0 %v676
        %1911 = vmatprep.subr.mxu0 %v685
        %1912 = vmatpush1.msra.mxu0 %v684
        %1913 = vmatprep.subr.mxu0 %v693
        %1914 = vmatpush1.msra.mxu0 %v692
        %1915 = vmatprep.subr.mxu0 %v701
        %1916 = vmatpush1.msra.mxu0 %v700
        %1917 = vmatprep.subr.mxu0 %v709
        %1918 = vmatpush1.msra.mxu0 %v708
        %1919 = vmatprep.subr.mxu0 %v717
        %1920 = vmatpush1.msra.mxu0 %v716
        %1921 = vmatprep.subr.mxu0 %v725
        %1922 = vmatpush1.msra.mxu0 %v724
        %1923 = vmatprep.subr.mxu0 %v733
        %1924 = vmatpush1.msra.mxu0 %v732
        %1925 = vmatprep.mubr.f32.mxu0 %v463
        %1926 = vmatmul.mubr.f32.gmra.mrb[0].mxu0 %v462
        %v1927 = vpop.f32.mrb[0].mxu0
        %v1928 = vadd.f32 %v1817, %v1927
        %v1929 = vpop.f32.mrb[0].mxu0
        %v1930 = vadd.f32 %v1821, %v1929
        %1931 = vmatprep.mubr.f32.mxu0 %v474
        %1932 = vmatmul.mubr.f32.gmra.mrb[0].mxu0 %v473
        %v1933 = vpop.f32.mrb[0].mxu0
        %v1934 = vadd.f32 %v1817, %v1933
        %v1935 = vpop.f32.mrb[0].mxu0
        %v1936 = vadd.f32 %v1821, %v1935
        %1937 = vdwg.mxu0
        %1938 = vmatprep.subr.mxu0 %v741
        %1939 = vmatpush1.msra.mxu0 %v740
        %1940 = vmatprep.subr.mxu0 %v749
        %1941 = vmatpush1.msra.mxu0 %v748
        %1942 = vmatprep.subr.mxu0 %v757
        %1943 = vmatpush1.msra.mxu0 %v756
        %1944 = vmatprep.subr.mxu0 %v765
        %1945 = vmatpush1.msra.mxu0 %v764
        %1946 = vmatprep.subr.mxu0 %v773
        %1947 = vmatpush1.msra.mxu0 %v772
        %1948 = vmatprep.subr.mxu0 %v781
        %1949 = vmatpush1.msra.mxu0 %v780
        %1950 = vmatprep.subr.mxu0 %v789
        %1951 = vmatpush1.msra.mxu0 %v788
        %1952 = vmatprep.subr.mxu0 %v797
        %1953 = vmatpush1.msra.mxu0 %v796
        %1954 = vmatprep.subr.mxu0 %v805
        %1955 = vmatpush1.msra.mxu0 %v804
        %1956 = vmatprep.subr.mxu0 %v813
        %1957 = vmatpush1.msra.mxu0 %v812
        %1958 = vmatprep.subr.mxu0 %v821
        %1959 = vmatpush1.msra.mxu0 %v820
        %1960 = vmatprep.subr.mxu0 %v829
        %1961 = vmatpush1.msra.mxu0 %v828
        %1962 = vmatprep.subr.mxu0 %v837
        %1963 = vmatpush1.msra.mxu0 %v836
        %1964 = vmatprep.subr.mxu0 %v845
        %1965 = vmatpush1.msra.mxu0 %v844
        %1966 = vmatprep.subr.mxu0 %v853
        %1967 = vmatpush1.msra.mxu0 %v852
        %1968 = vmatprep.subr.mxu0 %v861
        %1969 = vmatpush1.msra.mxu0 %v860
        %1970 = vmatprep.subr.mxu0 %v869
        %1971 = vmatpush1.msra.mxu0 %v868
        %1972 = vmatprep.subr.mxu0 %v877
        %1973 = vmatpush1.msra.mxu0 %v876
        %1974 = vmatprep.subr.mxu0 %v885
        %1975 = vmatpush1.msra.mxu0 %v884
        %1976 = vmatprep.subr.mxu0 %v893
        %1977 = vmatpush1.msra.mxu0 %v892
        %1978 = vmatprep.subr.mxu0 %v901
        %1979 = vmatpush1.msra.mxu0 %v900
        %1980 = vmatprep.subr.mxu0 %v909
        %1981 = vmatpush1.msra.mxu0 %v908
        %1982 = vmatprep.subr.mxu0 %v917
        %1983 = vmatpush1.msra.mxu0 %v916
        %1984 = vmatprep.subr.mxu0 %v925
        %1985 = vmatpush1.msra.mxu0 %v924
        %1986 = vmatprep.subr.mxu0 %v933
        %1987 = vmatpush1.msra.mxu0 %v932
        %1988 = vmatprep.subr.mxu0 %v941
        %1989 = vmatpush1.msra.mxu0 %v940
        %1990 = vmatprep.subr.mxu0 %v949
        %1991 = vmatpush1.msra.mxu0 %v948
        %1992 = vmatprep.subr.mxu0 %v957
        %1993 = vmatpush1.msra.mxu0 %v956
        %1994 = vmatprep.subr.mxu0 %v965
        %1995 = vmatpush1.msra.mxu0 %v964
        %1996 = vmatprep.subr.mxu0 %v973
        %1997 = vmatpush1.msra.mxu0 %v972
        %1998 = vmatprep.subr.mxu0 %v981
        %1999 = vmatpush1.msra.mxu0 %v980
        %2000 = vmatprep.subr.mxu0 %v989
        %2001 = vmatpush1.msra.mxu0 %v988
        %2002 = vmatprep.mubr.f32.mxu0 %v465
        %2003 = vmatmul.mubr.f32.gmra.mrb[0].mxu0 %v464
        %v2004 = vpop.f32.mrb[0].mxu0
        %v2005 = vadd.f32 %v1928, %v2004
        %v2006 = vpop.f32.mrb[0].mxu0
        %v2007 = vadd.f32 %v1930, %v2006
        %2008 = vmatprep.mubr.f32.mxu0 %v476
        %2009 = vmatmul.mubr.f32.gmra.mrb[0].mxu0 %v475
        %v2010 = vpop.f32.mrb[0].mxu0
        %v2011 = vadd.f32 %v1934, %v2010
        %v2012 = vpop.f32.mrb[0].mxu0
        %v2013 = vadd.f32 %v1936, %v2012
        %2014 = vdwg.mxu0
        %2015 = vmatprep.subr.mxu0 %v997
        %2016 = vmatpush1.msra.mxu0 %v996
        %2017 = vmatprep.subr.mxu0 %v1005
        %2018 = vmatpush1.msra.mxu0 %v1004
        %2019 = vmatprep.subr.mxu0 %v1013
        %2020 = vmatpush1.msra.mxu0 %v1012
        %2021 = vmatprep.subr.mxu0 %v1021
        %2022 = vmatpush1.msra.mxu0 %v1020
        %2023 = vmatprep.subr.mxu0 %v1029
        %2024 = vmatpush1.msra.mxu0 %v1028
        %2025 = vmatprep.subr.mxu0 %v1037
        %2026 = vmatpush1.msra.mxu0 %v1036
        %2027 = vmatprep.subr.mxu0 %v1045
        %2028 = vmatpush1.msra.mxu0 %v1044
        %2029 = vmatprep.subr.mxu0 %v1053
        %2030 = vmatpush1.msra.mxu0 %v1052
        %2031 = vmatprep.subr.mxu0 %v1061
        %2032 = vmatpush1.msra.mxu0 %v1060
        %2033 = vmatprep.subr.mxu0 %v1069
        %2034 = vmatpush1.msra.mxu0 %v1068
        %2035 = vmatprep.subr.mxu0 %v1077
        %2036 = vmatpush1.msra.mxu0 %v1076
        %2037 = vmatprep.subr.mxu0 %v1085
        %2038 = vmatpush1.msra.mxu0 %v1084
        %2039 = vmatprep.subr.mxu0 %v1093
        %2040 = vmatpush1.msra.mxu0 %v1092
        %2041 = vmatprep.subr.mxu0 %v1101
        %2042 = vmatpush1.msra.mxu0 %v1100
        %2043 = vmatprep.subr.mxu0 %v1109
        %2044 = vmatpush1.msra.mxu0 %v1108
        %2045 = vmatprep.subr.mxu0 %v1117
        %2046 = vmatpush1.msra.mxu0 %v1116
        %2047 = vmatprep.subr.mxu0 %v1125
        %2048 = vmatpush1.msra.mxu0 %v1124
        %2049 = vmatprep.subr.mxu0 %v1133
        %2050 = vmatpush1.msra.mxu0 %v1132
        %2051 = vmatprep.subr.mxu0 %v1141
        %2052 = vmatpush1.msra.mxu0 %v1140
        %2053 = vmatprep.subr.mxu0 %v1149
        %2054 = vmatpush1.msra.mxu0 %v1148
        %2055 = vmatprep.subr.mxu0 %v1157
        %2056 = vmatpush1.msra.mxu0 %v1156
        %2057 = vmatprep.subr.mxu0 %v1165
        %2058 = vmatpush1.msra.mxu0 %v1164
        %2059 = vmatprep.subr.mxu0 %v1173
        %2060 = vmatpush1.msra.mxu0 %v1172
        %2061 = vmatprep.subr.mxu0 %v1181
        %2062 = vmatpush1.msra.mxu0 %v1180
        %2063 = vmatprep.subr.mxu0 %v1189
        %2064 = vmatpush1.msra.mxu0 %v1188
        %2065 = vmatprep.subr.mxu0 %v1197
        %2066 = vmatpush1.msra.mxu0 %v1196
        %2067 = vmatprep.subr.mxu0 %v1205
        %2068 = vmatpush1.msra.mxu0 %v1204
        %2069 = vmatprep.subr.mxu0 %v1213
        %2070 = vmatpush1.msra.mxu0 %v1212
        %2071 = vmatprep.subr.mxu0 %v1221
        %2072 = vmatpush1.msra.mxu0 %v1220
        %2073 = vmatprep.subr.mxu0 %v1229
        %2074 = vmatpush1.msra.mxu0 %v1228
        %2075 = vmatprep.subr.mxu0 %v1237
        %2076 = vmatpush1.msra.mxu0 %v1236
        %2077 = vmatprep.subr.mxu0 %v1245
        %2078 = vmatpush1.msra.mxu0 %v1244
        %2079 = vmatprep.mubr.f32.mxu0 %v467
        %2080 = vmatmul.mubr.f32.gmra.mrb[0].mxu0 %v466
        %v2081 = vpop.f32.mrb[0].mxu0
        %v2082 = vadd.f32 %v2005, %v2081
        %v2083 = vpop.f32.mrb[0].mxu0
        %v2084 = vadd.f32 %v2007, %v2083
        %2085 = vmatprep.mubr.f32.mxu0 %v478
        %2086 = vmatmul.mubr.f32.gmra.mrb[0].mxu0 %v477
        %v2087 = vpop.f32.mrb[0].mxu0
        %v2088 = vadd.f32 %v2011, %v2087
        %v2089 = vpop.f32.mrb[0].mxu0
        %v2090 = vadd.f32 %v2013, %v2089
        %2091 = vdwg.mxu0
        %2092 = vmatprep.subr.mxu0 %v1253
        %2093 = vmatpush1.msra.mxu0 %v1252
        %2094 = vmatprep.subr.mxu0 %v1261
        %2095 = vmatpush1.msra.mxu0 %v1260
        %2096 = vmatprep.subr.mxu0 %v1269
        %2097 = vmatpush1.msra.mxu0 %v1268
        %2098 = vmatprep.subr.mxu0 %v1277
        %2099 = vmatpush1.msra.mxu0 %v1276
        %2100 = vmatprep.subr.mxu0 %v1285
        %2101 = vmatpush1.msra.mxu0 %v1284
        %2102 = vmatprep.subr.mxu0 %v1293
        %2103 = vmatpush1.msra.mxu0 %v1292
        %2104 = vmatprep.subr.mxu0 %v1301
        %2105 = vmatpush1.msra.mxu0 %v1300
        %2106 = vmatprep.subr.mxu0 %v1309
        %2107 = vmatpush1.msra.mxu0 %v1308
        %2108 = vmatprep.subr.mxu0 %v1317
        %2109 = vmatpush1.msra.mxu0 %v1316
        %2110 = vmatprep.subr.mxu0 %v1325
        %2111 = vmatpush1.msra.mxu0 %v1324
        %2112 = vmatprep.subr.mxu0 %v1333
        %2113 = vmatpush1.msra.mxu0 %v1332
        %2114 = vmatprep.subr.mxu0 %v1341
        %2115 = vmatpush1.msra.mxu0 %v1340
        %2116 = vmatprep.subr.mxu0 %v1349
        %2117 = vmatpush1.msra.mxu0 %v1348
        %2118 = vmatprep.subr.mxu0 %v1357
        %2119 = vmatpush1.msra.mxu0 %v1356
        %2120 = vmatprep.subr.mxu0 %v1365
        %2121 = vmatpush1.msra.mxu0 %v1364
        %2122 = vmatprep.subr.mxu0 %v1373
        %2123 = vmatpush1.msra.mxu0 %v1372
        %2124 = vmatprep.subr.mxu0 %v1381
        %2125 = vmatpush1.msra.mxu0 %v1380
        %2126 = vmatprep.subr.mxu0 %v1389
        %2127 = vmatpush1.msra.mxu0 %v1388
        %2128 = vmatprep.subr.mxu0 %v1397
        %2129 = vmatpush1.msra.mxu0 %v1396
        %2130 = vmatprep.subr.mxu0 %v1405
        %2131 = vmatpush1.msra.mxu0 %v1404
        %2132 = vmatprep.subr.mxu0 %v1413
        %2133 = vmatpush1.msra.mxu0 %v1412
        %2134 = vmatprep.subr.mxu0 %v1421
        %2135 = vmatpush1.msra.mxu0 %v1420
        %2136 = vmatprep.subr.mxu0 %v1429
        %2137 = vmatpush1.msra.mxu0 %v1428
        %2138 = vmatprep.subr.mxu0 %v1437
        %2139 = vmatpush1.msra.mxu0 %v1436
        %2140 = vmatprep.subr.mxu0 %v1445
        %2141 = vmatpush1.msra.mxu0 %v1444
        %2142 = vmatprep.subr.mxu0 %v1453
        %2143 = vmatpush1.msra.mxu0 %v1452
        %2144 = vmatprep.subr.mxu0 %v1461
        %2145 = vmatpush1.msra.mxu0 %v1460
        %2146 = vmatprep.subr.mxu0 %v1469
        %2147 = vmatpush1.msra.mxu0 %v1468
        %2148 = vmatprep.subr.mxu0 %v1477
        %2149 = vmatpush1.msra.mxu0 %v1476
        %2150 = vmatprep.subr.mxu0 %v1485
        %2151 = vmatpush1.msra.mxu0 %v1484
        %2152 = vmatprep.subr.mxu0 %v1493
        %2153 = vmatpush1.msra.mxu0 %v1492
        %2154 = vmatprep.subr.mxu0 %v1501
        %2155 = vmatpush1.msra.mxu0 %v1500
        %2156 = vmatprep.mubr.f32.mxu0 %v469
        %2157 = vmatmul.mubr.f32.gmra.mrb[0].mxu0 %v468
        %v2158 = vpop.f32.mrb[0].mxu0
        %v2159 = vadd.f32 %v2082, %v2158
        %v2160 = vpop.f32.mrb[0].mxu0
        %v2161 = vadd.f32 %v2084, %v2160
        %2162 = vmatprep.mubr.f32.mxu0 %v480
        %2163 = vmatmul.mubr.f32.gmra.mrb[0].mxu0 %v479
        %v2164 = vpop.f32.mrb[0].mxu0
        %v2165 = vadd.f32 %v2088, %v2164
        %v2166 = vpop.f32.mrb[0].mxu0
        %v2167 = vadd.f32 %v2090, %v2166
        %2168 = vdwg.mxu0
        %2169 = vmatprep.subr.mxu0 %v1509
        %2170 = vmatpush1.msra.mxu0 %v1508
        %2171 = vmatprep.subr.mxu0 %v1517
        %2172 = vmatpush1.msra.mxu0 %v1516
        %2173 = vmatprep.subr.mxu0 %v1525
        %2174 = vmatpush1.msra.mxu0 %v1524
        %2175 = vmatprep.subr.mxu0 %v1533
        %2176 = vmatpush1.msra.mxu0 %v1532
        %2177 = vmatprep.subr.mxu0 %v1541
        %2178 = vmatpush1.msra.mxu0 %v1540
        %2179 = vmatprep.subr.mxu0 %v1549
        %2180 = vmatpush1.msra.mxu0 %v1548
        %2181 = vmatprep.subr.mxu0 %v1557
        %2182 = vmatpush1.msra.mxu0 %v1556
        %2183 = vmatprep.subr.mxu0 %v1565
        %2184 = vmatpush1.msra.mxu0 %v1564
        %2185 = vmatprep.subr.mxu0 %v1573
        %2186 = vmatpush1.msra.mxu0 %v1572
        %2187 = vmatprep.subr.mxu0 %v1581
        %2188 = vmatpush1.msra.mxu0 %v1580
        %2189 = vmatprep.subr.mxu0 %v1589
        %2190 = vmatpush1.msra.mxu0 %v1588
        %2191 = vmatprep.subr.mxu0 %v1597
        %2192 = vmatpush1.msra.mxu0 %v1596
        %2193 = vmatprep.subr.mxu0 %v1605
        %2194 = vmatpush1.msra.mxu0 %v1604
        %2195 = vmatprep.subr.mxu0 %v1613
        %2196 = vmatpush1.msra.mxu0 %v1612
        %2197 = vmatprep.subr.mxu0 %v1621
        %2198 = vmatpush1.msra.mxu0 %v1620
        %2199 = vmatprep.subr.mxu0 %v1629
        %2200 = vmatpush1.msra.mxu0 %v1628
        %2201 = vmatprep.subr.mxu0 %v1637
        %2202 = vmatpush1.msra.mxu0 %v1636
        %2203 = vmatprep.subr.mxu0 %v1645
        %2204 = vmatpush1.msra.mxu0 %v1644
        %2205 = vmatprep.subr.mxu0 %v1653
        %2206 = vmatpush1.msra.mxu0 %v1652
        %2207 = vmatprep.subr.mxu0 %v1661
        %2208 = vmatpush1.msra.mxu0 %v1660
        %2209 = vmatprep.subr.mxu0 %v1669
        %2210 = vmatpush1.msra.mxu0 %v1668
        %2211 = vmatprep.subr.mxu0 %v1677
        %2212 = vmatpush1.msra.mxu0 %v1676
        %2213 = vmatprep.subr.mxu0 %v1685
        %2214 = vmatpush1.msra.mxu0 %v1684
        %2215 = vmatprep.subr.mxu0 %v1693
        %2216 = vmatpush1.msra.mxu0 %v1692
        %2217 = vmatprep.subr.mxu0 %v1701
        %2218 = vmatpush1.msra.mxu0 %v1700
        %2219 = vmatprep.subr.mxu0 %v1709
        %2220 = vmatpush1.msra.mxu0 %v1708
        %2221 = vmatprep.subr.mxu0 %v1717
        %2222 = vmatpush1.msra.mxu0 %v1716
        %2223 = vmatprep.subr.mxu0 %v1725
        %2224 = vmatpush1.msra.mxu0 %v1724
        %2225 = vmatprep.subr.mxu0 %v1733
        %2226 = vmatpush1.msra.mxu0 %v1732
        %2227 = vmatprep.subr.mxu0 %v1741
        %2228 = vmatpush1.msra.mxu0 %v1740
        %2229 = vmatprep.subr.mxu0 %v1749
        %2230 = vmatpush1.msra.mxu0 %v1748
        %2231 = vmatprep.subr.mxu0 %v1757
        %2232 = vmatpush1.msra.mxu0 %v1756
        %2233 = vmatprep.mubr.f32.mxu0 %v471
        %2234 = vmatmul.mubr.f32.gmra.mrb[0].mxu0 %v470
        %v2235 = vpop.f32.mrb[0].mxu0
        %v2236 = vadd.f32 %v2159, %v2235
        %v2237 = vpop.f32.mrb[0].mxu0
        %v2238 = vadd.f32 %v2161, %v2237
        %2239 = vmatprep.mubr.f32.mxu0 %v482
        %2240 = vmatmul.mubr.f32.gmra.mrb[0].mxu0 %v481
        %v2241 = vpop.f32.mrb[0].mxu0
        %v2242 = vadd.f32 %v2165, %v2241
        %v2243 = vpop.f32.mrb[0].mxu0
        %v2244 = vadd.f32 %v2167, %v2243
        %2245 = vdwg.mxu0
        %2246 = vmatprep.subr.mxu0 %v1765
        %2247 = vmatpush1.msra.mxu0 %v1764
        %2248 = vmatprep.subr.mxu0 %v1773
        %2249 = vmatpush1.msra.mxu0 %v1772
        %2250 = vmatprep.subr.mxu0 %v1781
        %2251 = vmatpush1.msra.mxu0 %v1780
        %2252 = vmatprep.subr.mxu0 %v1789
        %2253 = vmatpush1.msra.mxu0 %v1788
        %2254 = vmatprep.subr.mxu0 %v1797
        %2255 = vmatpush1.msra.mxu0 %v1796
        %2256 = vmatprep.subr.mxu0 %v1805
        %2257 = vmatpush1.msra.mxu0 %v1804
        %2258 = vmatprep.subr.mxu0 0.0
        %2259 = vmatpush1.msra.mxu0 0.0
        %2260 = vmatprep.subr.mxu0 0.0
        %2261 = vmatpush1.msra.mxu0 0.0
        %2262 = vmatprep.subr.mxu0 0.0
        %2263 = vmatpush1.msra.mxu0 0.0
        %2264 = vmatprep.subr.mxu0 0.0
        %2265 = vmatpush1.msra.mxu0 0.0
        %2266 = vmatprep.subr.mxu0 0.0
        %2267 = vmatpush1.msra.mxu0 0.0
        %2268 = vmatprep.subr.mxu0 0.0
        %2269 = vmatpush1.msra.mxu0 0.0
        %2270 = vmatprep.subr.mxu0 0.0
        %2271 = vmatpush1.msra.mxu0 0.0
        %2272 = vmatprep.subr.mxu0 0.0
        %2273 = vmatpush1.msra.mxu0 0.0
        %2274 = vmatprep.subr.mxu0 0.0
        %2275 = vmatpush1.msra.mxu0 0.0
        %2276 = vmatprep.subr.mxu0 0.0
        %2277 = vmatpush1.msra.mxu0 0.0
        %2278 = vmatprep.subr.mxu0 0.0
        %2279 = vmatpush1.msra.mxu0 0.0
        %2280 = vmatprep.subr.mxu0 0.0
        %2281 = vmatpush1.msra.mxu0 0.0
        %2282 = vmatprep.subr.mxu0 0.0
        %2283 = vmatpush1.msra.mxu0 0.0
        %2284 = vmatprep.subr.mxu0 0.0
        %2285 = vmatpush1.msra.mxu0 0.0
        %2286 = vmatprep.subr.mxu0 0.0
        %2287 = vmatpush1.msra.mxu0 0.0
        %2288 = vmatprep.subr.mxu0 0.0
        %2289 = vmatpush1.msra.mxu0 0.0
        %2290 = vmatprep.subr.mxu0 0.0
        %2291 = vmatpush1.msra.mxu0 0.0
        %2292 = vmatprep.subr.mxu0 0.0
        %2293 = vmatpush1.msra.mxu0 0.0
        %2294 = vmatprep.subr.mxu0 0.0
        %2295 = vmatpush1.msra.mxu0 0.0
        %2296 = vmatprep.subr.mxu0 0.0
        %2297 = vmatpush1.msra.mxu0 0.0
        %2298 = vmatprep.subr.mxu0 0.0
        %2299 = vmatpush1.msra.mxu0 0.0
        %2300 = vmatprep.subr.mxu0 0.0
        %2301 = vmatpush1.msra.mxu0 0.0
        %2302 = vmatprep.subr.mxu0 0.0
        %2303 = vmatpush1.msra.mxu0 0.0
        %2304 = vmatprep.subr.mxu0 0.0
        %2305 = vmatpush1.msra.mxu0 0.0
        %2306 = vmatprep.subr.mxu0 0.0
        %2307 = vmatpush1.msra.mxu0 0.0
        %2308 = vmatprep.subr.mxu0 0.0
        %2309 = vmatpush1.msra.mxu0 0.0
        %2310 = vmatprep.mubr.f32.mxu0 0.0
        %2311 = vmatmul.mubr.f32.gmra.mrb[0].mxu0 %v1856
        %v2312 = vpop.f32.mrb[0].mxu0
        %v2313 = vadd.f32 %v2236, %v2312
        %v2314 = vpop.f32.mrb[0].mxu0
        %v2315 = vadd.f32 %v2238, %v2314
        %2316 = vmatprep.mubr.f32.mxu0 0.0
        %2317 = vmatmul.mubr.f32.gmra.mrb[0].mxu0 %v1859
        %v2318 = vpop.f32.mrb[0].mxu0
        %v2319 = vadd.f32 %v2242, %v2318
        %v2320 = vpop.f32.mrb[0].mxu0
        %v2321 = vadd.f32 %v2244, %v2320
        %2322 = vdwg.mxu0
        %2323 = vmatprep.subr.mxu0 %v487
        %2324 = vmatpush1.msra.mxu0 %v486
        %2325 = vmatprep.subr.mxu0 %v495
        %2326 = vmatpush1.msra.mxu0 %v494
        %2327 = vmatprep.subr.mxu0 %v503
        %2328 = vmatpush1.msra.mxu0 %v502
        %2329 = vmatprep.subr.mxu0 %v511
        %2330 = vmatpush1.msra.mxu0 %v510
        %2331 = vmatprep.subr.mxu0 %v519
        %2332 = vmatpush1.msra.mxu0 %v518
        %2333 = vmatprep.subr.mxu0 %v527
        %2334 = vmatpush1.msra.mxu0 %v526
        %2335 = vmatprep.subr.mxu0 %v535
        %2336 = vmatpush1.msra.mxu0 %v534
        %2337 = vmatprep.subr.mxu0 %v543
        %2338 = vmatpush1.msra.mxu0 %v542
        %2339 = vmatprep.subr.mxu0 %v551
        %2340 = vmatpush1.msra.mxu0 %v550
        %2341 = vmatprep.subr.mxu0 %v559
        %2342 = vmatpush1.msra.mxu0 %v558
        %2343 = vmatprep.subr.mxu0 %v567
        %2344 = vmatpush1.msra.mxu0 %v566
        %2345 = vmatprep.subr.mxu0 %v575
        %2346 = vmatpush1.msra.mxu0 %v574
        %2347 = vmatprep.subr.mxu0 %v583
        %2348 = vmatpush1.msra.mxu0 %v582
        %2349 = vmatprep.subr.mxu0 %v591
        %2350 = vmatpush1.msra.mxu0 %v590
        %2351 = vmatprep.subr.mxu0 %v599
        %2352 = vmatpush1.msra.mxu0 %v598
        %2353 = vmatprep.subr.mxu0 %v607
        %2354 = vmatpush1.msra.mxu0 %v606
        %2355 = vmatprep.subr.mxu0 %v615
        %2356 = vmatpush1.msra.mxu0 %v614
        %2357 = vmatprep.subr.mxu0 %v623
        %2358 = vmatpush1.msra.mxu0 %v622
        %2359 = vmatprep.subr.mxu0 %v631
        %2360 = vmatpush1.msra.mxu0 %v630
        %2361 = vmatprep.subr.mxu0 %v639
        %2362 = vmatpush1.msra.mxu0 %v638
        %2363 = vmatprep.subr.mxu0 %v647
        %2364 = vmatpush1.msra.mxu0 %v646
        %2365 = vmatprep.subr.mxu0 %v655
        %2366 = vmatpush1.msra.mxu0 %v654
        %2367 = vmatprep.subr.mxu0 %v663
        %2368 = vmatpush1.msra.mxu0 %v662
        %2369 = vmatprep.subr.mxu0 %v671
        %2370 = vmatpush1.msra.mxu0 %v670
        %2371 = vmatprep.subr.mxu0 %v679
        %2372 = vmatpush1.msra.mxu0 %v678
        %2373 = vmatprep.subr.mxu0 %v687
        %2374 = vmatpush1.msra.mxu0 %v686
        %2375 = vmatprep.subr.mxu0 %v695
        %2376 = vmatpush1.msra.mxu0 %v694
        %2377 = vmatprep.subr.mxu0 %v703
        %2378 = vmatpush1.msra.mxu0 %v702
        %2379 = vmatprep.subr.mxu0 %v711
        %2380 = vmatpush1.msra.mxu0 %v710
        %2381 = vmatprep.subr.mxu0 %v719
        %2382 = vmatpush1.msra.mxu0 %v718
        %2383 = vmatprep.subr.mxu0 %v727
        %2384 = vmatpush1.msra.mxu0 %v726
        %2385 = vmatprep.subr.mxu0 %v735
        %2386 = vmatpush1.msra.mxu0 %v734
        %2387 = vmatprep.mubr.f32.mxu0 %v463
        %2388 = vmatmul.mubr.f32.gmra.mrb[0].mxu0 %v462
        %v2389 = vpop.f32.mrb[0].mxu0
        %v2390 = vadd.f32 %v1825, %v2389
        %v2391 = vpop.f32.mrb[0].mxu0
        %v2392 = vadd.f32 %v1829, %v2391
        %2393 = vmatprep.mubr.f32.mxu0 %v474
        %2394 = vmatmul.mubr.f32.gmra.mrb[0].mxu0 %v473
        %v2395 = vpop.f32.mrb[0].mxu0
        %v2396 = vadd.f32 %v1825, %v2395
        %v2397 = vpop.f32.mrb[0].mxu0
        %v2398 = vadd.f32 %v1829, %v2397
        %2399 = vdwg.mxu0
        %2400 = vmatprep.subr.mxu0 %v743
        %2401 = vmatpush1.msra.mxu0 %v742
        %2402 = vmatprep.subr.mxu0 %v751
        %2403 = vmatpush1.msra.mxu0 %v750
        %2404 = vmatprep.subr.mxu0 %v759
        %2405 = vmatpush1.msra.mxu0 %v758
        %2406 = vmatprep.subr.mxu0 %v767
        %2407 = vmatpush1.msra.mxu0 %v766
        %2408 = vmatprep.subr.mxu0 %v775
        %2409 = vmatpush1.msra.mxu0 %v774
        %2410 = vmatprep.subr.mxu0 %v783
        %2411 = vmatpush1.msra.mxu0 %v782
        %2412 = vmatprep.subr.mxu0 %v791
        %2413 = vmatpush1.msra.mxu0 %v790
        %2414 = vmatprep.subr.mxu0 %v799
        %2415 = vmatpush1.msra.mxu0 %v798
        %2416 = vmatprep.subr.mxu0 %v807
        %2417 = vmatpush1.msra.mxu0 %v806
        %2418 = vmatprep.subr.mxu0 %v815
        %2419 = vmatpush1.msra.mxu0 %v814
        %2420 = vmatprep.subr.mxu0 %v823
        %2421 = vmatpush1.msra.mxu0 %v822
        %2422 = vmatprep.subr.mxu0 %v831
        %2423 = vmatpush1.msra.mxu0 %v830
        %2424 = vmatprep.subr.mxu0 %v839
        %2425 = vmatpush1.msra.mxu0 %v838
        %2426 = vmatprep.subr.mxu0 %v847
        %2427 = vmatpush1.msra.mxu0 %v846
        %2428 = vmatprep.subr.mxu0 %v855
        %2429 = vmatpush1.msra.mxu0 %v854
        %2430 = vmatprep.subr.mxu0 %v863
        %2431 = vmatpush1.msra.mxu0 %v862
        %2432 = vmatprep.subr.mxu0 %v871
        %2433 = vmatpush1.msra.mxu0 %v870
        %2434 = vmatprep.subr.mxu0 %v879
        %2435 = vmatpush1.msra.mxu0 %v878
        %2436 = vmatprep.subr.mxu0 %v887
        %2437 = vmatpush1.msra.mxu0 %v886
        %2438 = vmatprep.subr.mxu0 %v895
        %2439 = vmatpush1.msra.mxu0 %v894
        %2440 = vmatprep.subr.mxu0 %v903
        %2441 = vmatpush1.msra.mxu0 %v902
        %2442 = vmatprep.subr.mxu0 %v911
        %2443 = vmatpush1.msra.mxu0 %v910
        %2444 = vmatprep.subr.mxu0 %v919
        %2445 = vmatpush1.msra.mxu0 %v918
        %2446 = vmatprep.subr.mxu0 %v927
        %2447 = vmatpush1.msra.mxu0 %v926
        %2448 = vmatprep.subr.mxu0 %v935
        %2449 = vmatpush1.msra.mxu0 %v934
        %2450 = vmatprep.subr.mxu0 %v943
        %2451 = vmatpush1.msra.mxu0 %v942
        %2452 = vmatprep.subr.mxu0 %v951
        %2453 = vmatpush1.msra.mxu0 %v950
        %2454 = vmatprep.subr.mxu0 %v959
        %2455 = vmatpush1.msra.mxu0 %v958
        %2456 = vmatprep.subr.mxu0 %v967
        %2457 = vmatpush1.msra.mxu0 %v966
        %2458 = vmatprep.subr.mxu0 %v975
        %2459 = vmatpush1.msra.mxu0 %v974
        %2460 = vmatprep.subr.mxu0 %v983
        %2461 = vmatpush1.msra.mxu0 %v982
        %2462 = vmatprep.subr.mxu0 %v991
        %2463 = vmatpush1.msra.mxu0 %v990
        %2464 = vmatprep.mubr.f32.mxu0 %v465
        %2465 = vmatmul.mubr.f32.gmra.mrb[0].mxu0 %v464
        %v2466 = vpop.f32.mrb[0].mxu0
        %v2467 = vadd.f32 %v2390, %v2466
        %v2468 = vpop.f32.mrb[0].mxu0
        %v2469 = vadd.f32 %v2392, %v2468
        %2470 = vmatprep.mubr.f32.mxu0 %v476
        %2471 = vmatmul.mubr.f32.gmra.mrb[0].mxu0 %v475
        %v2472 = vpop.f32.mrb[0].mxu0
        %v2473 = vadd.f32 %v2396, %v2472
        %v2474 = vpop.f32.mrb[0].mxu0
        %v2475 = vadd.f32 %v2398, %v2474
        %2476 = vdwg.mxu0
        %2477 = vmatprep.subr.mxu0 %v999
        %2478 = vmatpush1.msra.mxu0 %v998
        %2479 = vmatprep.subr.mxu0 %v1007
        %2480 = vmatpush1.msra.mxu0 %v1006
        %2481 = vmatprep.subr.mxu0 %v1015
        %2482 = vmatpush1.msra.mxu0 %v1014
        %2483 = vmatprep.subr.mxu0 %v1023
        %2484 = vmatpush1.msra.mxu0 %v1022
        %2485 = vmatprep.subr.mxu0 %v1031
        %2486 = vmatpush1.msra.mxu0 %v1030
        %2487 = vmatprep.subr.mxu0 %v1039
        %2488 = vmatpush1.msra.mxu0 %v1038
        %2489 = vmatprep.subr.mxu0 %v1047
        %2490 = vmatpush1.msra.mxu0 %v1046
        %2491 = vmatprep.subr.mxu0 %v1055
        %2492 = vmatpush1.msra.mxu0 %v1054
        %2493 = vmatprep.subr.mxu0 %v1063
        %2494 = vmatpush1.msra.mxu0 %v1062
        %2495 = vmatprep.subr.mxu0 %v1071
        %2496 = vmatpush1.msra.mxu0 %v1070
        %2497 = vmatprep.subr.mxu0 %v1079
        %2498 = vmatpush1.msra.mxu0 %v1078
        %2499 = vmatprep.subr.mxu0 %v1087
        %2500 = vmatpush1.msra.mxu0 %v1086
        %2501 = vmatprep.subr.mxu0 %v1095
        %2502 = vmatpush1.msra.mxu0 %v1094
        %2503 = vmatprep.subr.mxu0 %v1103
        %2504 = vmatpush1.msra.mxu0 %v1102
        %2505 = vmatprep.subr.mxu0 %v1111
        %2506 = vmatpush1.msra.mxu0 %v1110
        %2507 = vmatprep.subr.mxu0 %v1119
        %2508 = vmatpush1.msra.mxu0 %v1118
        %2509 = vmatprep.subr.mxu0 %v1127
        %2510 = vmatpush1.msra.mxu0 %v1126
        %2511 = vmatprep.subr.mxu0 %v1135
        %2512 = vmatpush1.msra.mxu0 %v1134
        %2513 = vmatprep.subr.mxu0 %v1143
        %2514 = vmatpush1.msra.mxu0 %v1142
        %2515 = vmatprep.subr.mxu0 %v1151
        %2516 = vmatpush1.msra.mxu0 %v1150
        %2517 = vmatprep.subr.mxu0 %v1159
        %2518 = vmatpush1.msra.mxu0 %v1158
        %2519 = vmatprep.subr.mxu0 %v1167
        %2520 = vmatpush1.msra.mxu0 %v1166
        %2521 = vmatprep.subr.mxu0 %v1175
        %2522 = vmatpush1.msra.mxu0 %v1174
        %2523 = vmatprep.subr.mxu0 %v1183
        %2524 = vmatpush1.msra.mxu0 %v1182
        %2525 = vmatprep.subr.mxu0 %v1191
        %2526 = vmatpush1.msra.mxu0 %v1190
        %2527 = vmatprep.subr.mxu0 %v1199
        %2528 = vmatpush1.msra.mxu0 %v1198
        %2529 = vmatprep.subr.mxu0 %v1207
        %2530 = vmatpush1.msra.mxu0 %v1206
        %2531 = vmatprep.subr.mxu0 %v1215
        %2532 = vmatpush1.msra.mxu0 %v1214
        %2533 = vmatprep.subr.mxu0 %v1223
        %2534 = vmatpush1.msra.mxu0 %v1222
        %2535 = vmatprep.subr.mxu0 %v1231
        %2536 = vmatpush1.msra.mxu0 %v1230
        %2537 = vmatprep.subr.mxu0 %v1239
        %2538 = vmatpush1.msra.mxu0 %v1238
        %2539 = vmatprep.subr.mxu0 %v1247
        %2540 = vmatpush1.msra.mxu0 %v1246
        %2541 = vmatprep.mubr.f32.mxu0 %v467
        %2542 = vmatmul.mubr.f32.gmra.mrb[0].mxu0 %v466
        %v2543 = vpop.f32.mrb[0].mxu0
        %v2544 = vadd.f32 %v2467, %v2543
        %v2545 = vpop.f32.mrb[0].mxu0
        %v2546 = vadd.f32 %v2469, %v2545
        %2547 = vmatprep.mubr.f32.mxu0 %v478
        %2548 = vmatmul.mubr.f32.gmra.mrb[0].mxu0 %v477
        %v2549 = vpop.f32.mrb[0].mxu0
        %v2550 = vadd.f32 %v2473, %v2549
        %v2551 = vpop.f32.mrb[0].mxu0
        %v2552 = vadd.f32 %v2475, %v2551
        %2553 = vdwg.mxu0
        %2554 = vmatprep.subr.mxu0 %v1255
        %2555 = vmatpush1.msra.mxu0 %v1254
        %2556 = vmatprep.subr.mxu0 %v1263
        %2557 = vmatpush1.msra.mxu0 %v1262
        %2558 = vmatprep.subr.mxu0 %v1271
        %2559 = vmatpush1.msra.mxu0 %v1270
        %2560 = vmatprep.subr.mxu0 %v1279
        %2561 = vmatpush1.msra.mxu0 %v1278
        %2562 = vmatprep.subr.mxu0 %v1287
        %2563 = vmatpush1.msra.mxu0 %v1286
        %2564 = vmatprep.subr.mxu0 %v1295
        %2565 = vmatpush1.msra.mxu0 %v1294
        %2566 = vmatprep.subr.mxu0 %v1303
        %2567 = vmatpush1.msra.mxu0 %v1302
        %2568 = vmatprep.subr.mxu0 %v1311
        %2569 = vmatpush1.msra.mxu0 %v1310
        %2570 = vmatprep.subr.mxu0 %v1319
        %2571 = vmatpush1.msra.mxu0 %v1318
        %2572 = vmatprep.subr.mxu0 %v1327
        %2573 = vmatpush1.msra.mxu0 %v1326
        %2574 = vmatprep.subr.mxu0 %v1335
        %2575 = vmatpush1.msra.mxu0 %v1334
        %2576 = vmatprep.subr.mxu0 %v1343
        %2577 = vmatpush1.msra.mxu0 %v1342
        %2578 = vmatprep.subr.mxu0 %v1351
        %2579 = vmatpush1.msra.mxu0 %v1350
        %2580 = vmatprep.subr.mxu0 %v1359
        %2581 = vmatpush1.msra.mxu0 %v1358
        %2582 = vmatprep.subr.mxu0 %v1367
        %2583 = vmatpush1.msra.mxu0 %v1366
        %2584 = vmatprep.subr.mxu0 %v1375
        %2585 = vmatpush1.msra.mxu0 %v1374
        %2586 = vmatprep.subr.mxu0 %v1383
        %2587 = vmatpush1.msra.mxu0 %v1382
        %2588 = vmatprep.subr.mxu0 %v1391
        %2589 = vmatpush1.msra.mxu0 %v1390
        %2590 = vmatprep.subr.mxu0 %v1399
        %2591 = vmatpush1.msra.mxu0 %v1398
        %2592 = vmatprep.subr.mxu0 %v1407
        %2593 = vmatpush1.msra.mxu0 %v1406
        %2594 = vmatprep.subr.mxu0 %v1415
        %2595 = vmatpush1.msra.mxu0 %v1414
        %2596 = vmatprep.subr.mxu0 %v1423
        %2597 = vmatpush1.msra.mxu0 %v1422
        %2598 = vmatprep.subr.mxu0 %v1431
        %2599 = vmatpush1.msra.mxu0 %v1430
        %2600 = vmatprep.subr.mxu0 %v1439
        %2601 = vmatpush1.msra.mxu0 %v1438
        %2602 = vmatprep.subr.mxu0 %v1447
        %2603 = vmatpush1.msra.mxu0 %v1446
        %2604 = vmatprep.subr.mxu0 %v1455
        %2605 = vmatpush1.msra.mxu0 %v1454
        %2606 = vmatprep.subr.mxu0 %v1463
        %2607 = vmatpush1.msra.mxu0 %v1462
        %2608 = vmatprep.subr.mxu0 %v1471
        %2609 = vmatpush1.msra.mxu0 %v1470
        %2610 = vmatprep.subr.mxu0 %v1479
        %2611 = vmatpush1.msra.mxu0 %v1478
        %2612 = vmatprep.subr.mxu0 %v1487
        %2613 = vmatpush1.msra.mxu0 %v1486
        %2614 = vmatprep.subr.mxu0 %v1495
        %2615 = vmatpush1.msra.mxu0 %v1494
        %2616 = vmatprep.subr.mxu0 %v1503
        %2617 = vmatpush1.msra.mxu0 %v1502
        %2618 = vmatprep.mubr.f32.mxu0 %v469
        %2619 = vmatmul.mubr.f32.gmra.mrb[0].mxu0 %v468
        %v2620 = vpop.f32.mrb[0].mxu0
        %v2621 = vadd.f32 %v2544, %v2620
        %v2622 = vpop.f32.mrb[0].mxu0
        %v2623 = vadd.f32 %v2546, %v2622
        %2624 = vmatprep.mubr.f32.mxu0 %v480
        %2625 = vmatmul.mubr.f32.gmra.mrb[0].mxu0 %v479
        %v2626 = vpop.f32.mrb[0].mxu0
        %v2627 = vadd.f32 %v2550, %v2626
        %v2628 = vpop.f32.mrb[0].mxu0
        %v2629 = vadd.f32 %v2552, %v2628
        %2630 = vdwg.mxu0
        %2631 = vmatprep.subr.mxu0 %v1511
        %2632 = vmatpush1.msra.mxu0 %v1510
        %2633 = vmatprep.subr.mxu0 %v1519
        %2634 = vmatpush1.msra.mxu0 %v1518
        %2635 = vmatprep.subr.mxu0 %v1527
        %2636 = vmatpush1.msra.mxu0 %v1526
        %2637 = vmatprep.subr.mxu0 %v1535
        %2638 = vmatpush1.msra.mxu0 %v1534
        %2639 = vmatprep.subr.mxu0 %v1543
        %2640 = vmatpush1.msra.mxu0 %v1542
        %2641 = vmatprep.subr.mxu0 %v1551
        %2642 = vmatpush1.msra.mxu0 %v1550
        %2643 = vmatprep.subr.mxu0 %v1559
        %2644 = vmatpush1.msra.mxu0 %v1558
        %2645 = vmatprep.subr.mxu0 %v1567
        %2646 = vmatpush1.msra.mxu0 %v1566
        %2647 = vmatprep.subr.mxu0 %v1575
        %2648 = vmatpush1.msra.mxu0 %v1574
        %2649 = vmatprep.subr.mxu0 %v1583
        %2650 = vmatpush1.msra.mxu0 %v1582
        %2651 = vmatprep.subr.mxu0 %v1591
        %2652 = vmatpush1.msra.mxu0 %v1590
        %2653 = vmatprep.subr.mxu0 %v1599
        %2654 = vmatpush1.msra.mxu0 %v1598
        %2655 = vmatprep.subr.mxu0 %v1607
        %2656 = vmatpush1.msra.mxu0 %v1606
        %2657 = vmatprep.subr.mxu0 %v1615
        %2658 = vmatpush1.msra.mxu0 %v1614
        %2659 = vmatprep.subr.mxu0 %v1623
        %2660 = vmatpush1.msra.mxu0 %v1622
        %2661 = vmatprep.subr.mxu0 %v1631
        %2662 = vmatpush1.msra.mxu0 %v1630
        %2663 = vmatprep.subr.mxu0 %v1639
        %2664 = vmatpush1.msra.mxu0 %v1638
        %2665 = vmatprep.subr.mxu0 %v1647
        %2666 = vmatpush1.msra.mxu0 %v1646
        %2667 = vmatprep.subr.mxu0 %v1655
        %2668 = vmatpush1.msra.mxu0 %v1654
        %2669 = vmatprep.subr.mxu0 %v1663
        %2670 = vmatpush1.msra.mxu0 %v1662
        %2671 = vmatprep.subr.mxu0 %v1671
        %2672 = vmatpush1.msra.mxu0 %v1670
        %2673 = vmatprep.subr.mxu0 %v1679
        %2674 = vmatpush1.msra.mxu0 %v1678
        %2675 = vmatprep.subr.mxu0 %v1687
        %2676 = vmatpush1.msra.mxu0 %v1686
        %2677 = vmatprep.subr.mxu0 %v1695
        %2678 = vmatpush1.msra.mxu0 %v1694
        %2679 = vmatprep.subr.mxu0 %v1703
        %2680 = vmatpush1.msra.mxu0 %v1702
        %2681 = vmatprep.subr.mxu0 %v1711
        %2682 = vmatpush1.msra.mxu0 %v1710
        %2683 = vmatprep.subr.mxu0 %v1719
        %2684 = vmatpush1.msra.mxu0 %v1718
        %2685 = vmatprep.subr.mxu0 %v1727
        %2686 = vmatpush1.msra.mxu0 %v1726
        %2687 = vmatprep.subr.mxu0 %v1735
        %2688 = vmatpush1.msra.mxu0 %v1734
        %2689 = vmatprep.subr.mxu0 %v1743
        %2690 = vmatpush1.msra.mxu0 %v1742
        %2691 = vmatprep.subr.mxu0 %v1751
        %2692 = vmatpush1.msra.mxu0 %v1750
        %2693 = vmatprep.subr.mxu0 %v1759
        %2694 = vmatpush1.msra.mxu0 %v1758
        %2695 = vmatprep.mubr.f32.mxu0 %v471
        %2696 = vmatmul.mubr.f32.gmra.mrb[0].mxu0 %v470
        %v2697 = vpop.f32.mrb[0].mxu0
        %v2698 = vadd.f32 %v2621, %v2697
        %v2699 = vpop.f32.mrb[0].mxu0
        %v2700 = vadd.f32 %v2623, %v2699
        %2701 = vmatprep.mubr.f32.mxu0 %v482
        %2702 = vmatmul.mubr.f32.gmra.mrb[0].mxu0 %v481
        %v2703 = vpop.f32.mrb[0].mxu0
        %v2704 = vadd.f32 %v2627, %v2703
        %v2705 = vpop.f32.mrb[0].mxu0
        %v2706 = vadd.f32 %v2629, %v2705
        %2707 = vdwg.mxu0
        %2708 = vmatprep.subr.mxu0 %v1767
        %2709 = vmatpush1.msra.mxu0 %v1766
        %2710 = vmatprep.subr.mxu0 %v1775
        %2711 = vmatpush1.msra.mxu0 %v1774
        %2712 = vmatprep.subr.mxu0 %v1783
        %2713 = vmatpush1.msra.mxu0 %v1782
        %2714 = vmatprep.subr.mxu0 %v1791
        %2715 = vmatpush1.msra.mxu0 %v1790
        %2716 = vmatprep.subr.mxu0 %v1799
        %2717 = vmatpush1.msra.mxu0 %v1798
        %2718 = vmatprep.subr.mxu0 %v1807
        %2719 = vmatpush1.msra.mxu0 %v1806
        %2720 = vmatprep.subr.mxu0 0.0
        %2721 = vmatpush1.msra.mxu0 0.0
        %2722 = vmatprep.subr.mxu0 0.0
        %2723 = vmatpush1.msra.mxu0 0.0
        %2724 = vmatprep.subr.mxu0 0.0
        %2725 = vmatpush1.msra.mxu0 0.0
        %2726 = vmatprep.subr.mxu0 0.0
        %2727 = vmatpush1.msra.mxu0 0.0
        %2728 = vmatprep.subr.mxu0 0.0
        %2729 = vmatpush1.msra.mxu0 0.0
        %2730 = vmatprep.subr.mxu0 0.0
        %2731 = vmatpush1.msra.mxu0 0.0
        %2732 = vmatprep.subr.mxu0 0.0
        %2733 = vmatpush1.msra.mxu0 0.0
        %2734 = vmatprep.subr.mxu0 0.0
        %2735 = vmatpush1.msra.mxu0 0.0
        %2736 = vmatprep.subr.mxu0 0.0
        %2737 = vmatpush1.msra.mxu0 0.0
        %2738 = vmatprep.subr.mxu0 0.0
        %2739 = vmatpush1.msra.mxu0 0.0
        %2740 = vmatprep.subr.mxu0 0.0
        %2741 = vmatpush1.msra.mxu0 0.0
        %2742 = vmatprep.subr.mxu0 0.0
        %2743 = vmatpush1.msra.mxu0 0.0
        %2744 = vmatprep.subr.mxu0 0.0
        %2745 = vmatpush1.msra.mxu0 0.0
        %2746 = vmatprep.subr.mxu0 0.0
        %2747 = vmatpush1.msra.mxu0 0.0
        %2748 = vmatprep.subr.mxu0 0.0
        %2749 = vmatpush1.msra.mxu0 0.0
        %2750 = vmatprep.subr.mxu0 0.0
        %2751 = vmatpush1.msra.mxu0 0.0
        %2752 = vmatprep.subr.mxu0 0.0
        %2753 = vmatpush1.msra.mxu0 0.0
        %2754 = vmatprep.subr.mxu0 0.0
        %2755 = vmatpush1.msra.mxu0 0.0
        %2756 = vmatprep.subr.mxu0 0.0
        %2757 = vmatpush1.msra.mxu0 0.0
        %2758 = vmatprep.subr.mxu0 0.0
        %2759 = vmatpush1.msra.mxu0 0.0
        %2760 = vmatprep.subr.mxu0 0.0
        %2761 = vmatpush1.msra.mxu0 0.0
        %2762 = vmatprep.subr.mxu0 0.0
        %2763 = vmatpush1.msra.mxu0 0.0
        %2764 = vmatprep.subr.mxu0 0.0
        %2765 = vmatpush1.msra.mxu0 0.0
        %2766 = vmatprep.subr.mxu0 0.0
        %2767 = vmatpush1.msra.mxu0 0.0
        %2768 = vmatprep.subr.mxu0 0.0
        %2769 = vmatpush1.msra.mxu0 0.0
        %2770 = vmatprep.subr.mxu0 0.0
        %2771 = vmatpush1.msra.mxu0 0.0
        %2772 = vmatprep.mubr.f32.mxu0 0.0
        %2773 = vmatmul.mubr.f32.gmra.mrb[0].mxu0 %v1856
        %v2774 = vpop.f32.mrb[0].mxu0
        %v2775 = vadd.f32 %v2698, %v2774
        %v2776 = vpop.f32.mrb[0].mxu0
        %v2777 = vadd.f32 %v2700, %v2776
        %2778 = vmatprep.mubr.f32.mxu0 0.0
        %2779 = vmatmul.mubr.f32.gmra.mrb[0].mxu0 %v1859
        %v2780 = vpop.f32.mrb[0].mxu0
        %v2781 = vadd.f32 %v2704, %v2780
        %v2782 = vpop.f32.mrb[0].mxu0
        %v2783 = vadd.f32 %v2706, %v2782
        %2784 = vdwg.mxu0
        %2785 = vmatprep.subr.mxu0 %v489
        %2786 = vmatpush1.msra.mxu0 %v488
        %2787 = vmatprep.subr.mxu0 %v497
        %2788 = vmatpush1.msra.mxu0 %v496
        %2789 = vmatprep.subr.mxu0 %v505
        %2790 = vmatpush1.msra.mxu0 %v504
        %2791 = vmatprep.subr.mxu0 %v513
        %2792 = vmatpush1.msra.mxu0 %v512
        %2793 = vmatprep.subr.mxu0 %v521
        %2794 = vmatpush1.msra.mxu0 %v520
        %2795 = vmatprep.subr.mxu0 %v529
        %2796 = vmatpush1.msra.mxu0 %v528
        %2797 = vmatprep.subr.mxu0 %v537
        %2798 = vmatpush1.msra.mxu0 %v536
        %2799 = vmatprep.subr.mxu0 %v545
        %2800 = vmatpush1.msra.mxu0 %v544
        %2801 = vmatprep.subr.mxu0 %v553
        %2802 = vmatpush1.msra.mxu0 %v552
        %2803 = vmatprep.subr.mxu0 %v561
        %2804 = vmatpush1.msra.mxu0 %v560
        %2805 = vmatprep.subr.mxu0 %v569
        %2806 = vmatpush1.msra.mxu0 %v568
        %2807 = vmatprep.subr.mxu0 %v577
        %2808 = vmatpush1.msra.mxu0 %v576
        %2809 = vmatprep.subr.mxu0 %v585
        %2810 = vmatpush1.msra.mxu0 %v584
        %2811 = vmatprep.subr.mxu0 %v593
        %2812 = vmatpush1.msra.mxu0 %v592
        %2813 = vmatprep.subr.mxu0 %v601
        %2814 = vmatpush1.msra.mxu0 %v600
        %2815 = vmatprep.subr.mxu0 %v609
        %2816 = vmatpush1.msra.mxu0 %v608
        %2817 = vmatprep.subr.mxu0 %v617
        %2818 = vmatpush1.msra.mxu0 %v616
        %2819 = vmatprep.subr.mxu0 %v625
        %2820 = vmatpush1.msra.mxu0 %v624
        %2821 = vmatprep.subr.mxu0 %v633
        %2822 = vmatpush1.msra.mxu0 %v632
        %2823 = vmatprep.subr.mxu0 %v641
        %2824 = vmatpush1.msra.mxu0 %v640
        %2825 = vmatprep.subr.mxu0 %v649
        %2826 = vmatpush1.msra.mxu0 %v648
        %2827 = vmatprep.subr.mxu0 %v657
        %2828 = vmatpush1.msra.mxu0 %v656
        %2829 = vmatprep.subr.mxu0 %v665
        %2830 = vmatpush1.msra.mxu0 %v664
        %2831 = vmatprep.subr.mxu0 %v673
        %2832 = vmatpush1.msra.mxu0 %v672
        %2833 = vmatprep.subr.mxu0 %v681
        %2834 = vmatpush1.msra.mxu0 %v680
        %2835 = vmatprep.subr.mxu0 %v689
        %2836 = vmatpush1.msra.mxu0 %v688
        %2837 = vmatprep.subr.mxu0 %v697
        %2838 = vmatpush1.msra.mxu0 %v696
        %2839 = vmatprep.subr.mxu0 %v705
        %2840 = vmatpush1.msra.mxu0 %v704
        %2841 = vmatprep.subr.mxu0 %v713
        %2842 = vmatpush1.msra.mxu0 %v712
        %2843 = vmatprep.subr.mxu0 %v721
        %2844 = vmatpush1.msra.mxu0 %v720
        %2845 = vmatprep.subr.mxu0 %v729
        %2846 = vmatpush1.msra.mxu0 %v728
        %2847 = vmatprep.subr.mxu0 %v737
        %2848 = vmatpush1.msra.mxu0 %v736
        %2849 = vmatprep.mubr.f32.mxu0 %v463
        %2850 = vmatmul.mubr.f32.gmra.mrb[0].mxu0 %v462
        %v2851 = vpop.f32.mrb[0].mxu0
        %v2852 = vadd.f32 %v1833, %v2851
        %v2853 = vpop.f32.mrb[0].mxu0
        %v2854 = vadd.f32 %v1837, %v2853
        %2855 = vmatprep.mubr.f32.mxu0 %v474
        %2856 = vmatmul.mubr.f32.gmra.mrb[0].mxu0 %v473
        %v2857 = vpop.f32.mrb[0].mxu0
        %v2858 = vadd.f32 %v1833, %v2857
        %v2859 = vpop.f32.mrb[0].mxu0
        %v2860 = vadd.f32 %v1837, %v2859
        %2861 = vdwg.mxu0
        %2862 = vmatprep.subr.mxu0 %v745
        %2863 = vmatpush1.msra.mxu0 %v744
        %2864 = vmatprep.subr.mxu0 %v753
        %2865 = vmatpush1.msra.mxu0 %v752
        %2866 = vmatprep.subr.mxu0 %v761
        %2867 = vmatpush1.msra.mxu0 %v760
        %2868 = vmatprep.subr.mxu0 %v769
        %2869 = vmatpush1.msra.mxu0 %v768
        %2870 = vmatprep.subr.mxu0 %v777
        %2871 = vmatpush1.msra.mxu0 %v776
        %2872 = vmatprep.subr.mxu0 %v785
        %2873 = vmatpush1.msra.mxu0 %v784
        %2874 = vmatprep.subr.mxu0 %v793
        %2875 = vmatpush1.msra.mxu0 %v792
        %2876 = vmatprep.subr.mxu0 %v801
        %2877 = vmatpush1.msra.mxu0 %v800
        %2878 = vmatprep.subr.mxu0 %v809
        %2879 = vmatpush1.msra.mxu0 %v808
        %2880 = vmatprep.subr.mxu0 %v817
        %2881 = vmatpush1.msra.mxu0 %v816
        %2882 = vmatprep.subr.mxu0 %v825
        %2883 = vmatpush1.msra.mxu0 %v824
        %2884 = vmatprep.subr.mxu0 %v833
        %2885 = vmatpush1.msra.mxu0 %v832
        %2886 = vmatprep.subr.mxu0 %v841
        %2887 = vmatpush1.msra.mxu0 %v840
        %2888 = vmatprep.subr.mxu0 %v849
        %2889 = vmatpush1.msra.mxu0 %v848
        %2890 = vmatprep.subr.mxu0 %v857
        %2891 = vmatpush1.msra.mxu0 %v856
        %2892 = vmatprep.subr.mxu0 %v865
        %2893 = vmatpush1.msra.mxu0 %v864
        %2894 = vmatprep.subr.mxu0 %v873
        %2895 = vmatpush1.msra.mxu0 %v872
        %2896 = vmatprep.subr.mxu0 %v881
        %2897 = vmatpush1.msra.mxu0 %v880
        %2898 = vmatprep.subr.mxu0 %v889
        %2899 = vmatpush1.msra.mxu0 %v888
        %2900 = vmatprep.subr.mxu0 %v897
        %2901 = vmatpush1.msra.mxu0 %v896
        %2902 = vmatprep.subr.mxu0 %v905
        %2903 = vmatpush1.msra.mxu0 %v904
        %2904 = vmatprep.subr.mxu0 %v913
        %2905 = vmatpush1.msra.mxu0 %v912
        %2906 = vmatprep.subr.mxu0 %v921
        %2907 = vmatpush1.msra.mxu0 %v920
        %2908 = vmatprep.subr.mxu0 %v929
        %2909 = vmatpush1.msra.mxu0 %v928
        %2910 = vmatprep.subr.mxu0 %v937
        %2911 = vmatpush1.msra.mxu0 %v936
        %2912 = vmatprep.subr.mxu0 %v945
        %2913 = vmatpush1.msra.mxu0 %v944
        %2914 = vmatprep.subr.mxu0 %v953
        %2915 = vmatpush1.msra.mxu0 %v952
        %2916 = vmatprep.subr.mxu0 %v961
        %2917 = vmatpush1.msra.mxu0 %v960
        %2918 = vmatprep.subr.mxu0 %v969
        %2919 = vmatpush1.msra.mxu0 %v968
        %2920 = vmatprep.subr.mxu0 %v977
        %2921 = vmatpush1.msra.mxu0 %v976
        %2922 = vmatprep.subr.mxu0 %v985
        %2923 = vmatpush1.msra.mxu0 %v984
        %2924 = vmatprep.subr.mxu0 %v993
        %2925 = vmatpush1.msra.mxu0 %v992
        %2926 = vmatprep.mubr.f32.mxu0 %v465
        %2927 = vmatmul.mubr.f32.gmra.mrb[0].mxu0 %v464
        %v2928 = vpop.f32.mrb[0].mxu0
        %v2929 = vadd.f32 %v2852, %v2928
        %v2930 = vpop.f32.mrb[0].mxu0
        %v2931 = vadd.f32 %v2854, %v2930
        %2932 = vmatprep.mubr.f32.mxu0 %v476
        %2933 = vmatmul.mubr.f32.gmra.mrb[0].mxu0 %v475
        %v2934 = vpop.f32.mrb[0].mxu0
        %v2935 = vadd.f32 %v2858, %v2934
        %v2936 = vpop.f32.mrb[0].mxu0
        %v2937 = vadd.f32 %v2860, %v2936
        %2938 = vdwg.mxu0
        %2939 = vmatprep.subr.mxu0 %v1001
        %2940 = vmatpush1.msra.mxu0 %v1000
        %2941 = vmatprep.subr.mxu0 %v1009
        %2942 = vmatpush1.msra.mxu0 %v1008
        %2943 = vmatprep.subr.mxu0 %v1017
        %2944 = vmatpush1.msra.mxu0 %v1016
        %2945 = vmatprep.subr.mxu0 %v1025
        %2946 = vmatpush1.msra.mxu0 %v1024
        %2947 = vmatprep.subr.mxu0 %v1033
        %2948 = vmatpush1.msra.mxu0 %v1032
        %2949 = vmatprep.subr.mxu0 %v1041
        %2950 = vmatpush1.msra.mxu0 %v1040
        %2951 = vmatprep.subr.mxu0 %v1049
        %2952 = vmatpush1.msra.mxu0 %v1048
        %2953 = vmatprep.subr.mxu0 %v1057
        %2954 = vmatpush1.msra.mxu0 %v1056
        %2955 = vmatprep.subr.mxu0 %v1065
        %2956 = vmatpush1.msra.mxu0 %v1064
        %2957 = vmatprep.subr.mxu0 %v1073
        %2958 = vmatpush1.msra.mxu0 %v1072
        %2959 = vmatprep.subr.mxu0 %v1081
        %2960 = vmatpush1.msra.mxu0 %v1080
        %2961 = vmatprep.subr.mxu0 %v1089
        %2962 = vmatpush1.msra.mxu0 %v1088
        %2963 = vmatprep.subr.mxu0 %v1097
        %2964 = vmatpush1.msra.mxu0 %v1096
        %2965 = vmatprep.subr.mxu0 %v1105
        %2966 = vmatpush1.msra.mxu0 %v1104
        %2967 = vmatprep.subr.mxu0 %v1113
        %2968 = vmatpush1.msra.mxu0 %v1112
        %2969 = vmatprep.subr.mxu0 %v1121
        %2970 = vmatpush1.msra.mxu0 %v1120
        %2971 = vmatprep.subr.mxu0 %v1129
        %2972 = vmatpush1.msra.mxu0 %v1128
        %2973 = vmatprep.subr.mxu0 %v1137
        %2974 = vmatpush1.msra.mxu0 %v1136
        %2975 = vmatprep.subr.mxu0 %v1145
        %2976 = vmatpush1.msra.mxu0 %v1144
        %2977 = vmatprep.subr.mxu0 %v1153
        %2978 = vmatpush1.msra.mxu0 %v1152
        %2979 = vmatprep.subr.mxu0 %v1161
        %2980 = vmatpush1.msra.mxu0 %v1160
        %2981 = vmatprep.subr.mxu0 %v1169
        %2982 = vmatpush1.msra.mxu0 %v1168
        %2983 = vmatprep.subr.mxu0 %v1177
        %2984 = vmatpush1.msra.mxu0 %v1176
        %2985 = vmatprep.subr.mxu0 %v1185
        %2986 = vmatpush1.msra.mxu0 %v1184
        %2987 = vmatprep.subr.mxu0 %v1193
        %2988 = vmatpush1.msra.mxu0 %v1192
        %2989 = vmatprep.subr.mxu0 %v1201
        %2990 = vmatpush1.msra.mxu0 %v1200
        %2991 = vmatprep.subr.mxu0 %v1209
        %2992 = vmatpush1.msra.mxu0 %v1208
        %2993 = vmatprep.subr.mxu0 %v1217
        %2994 = vmatpush1.msra.mxu0 %v1216
        %2995 = vmatprep.subr.mxu0 %v1225
        %2996 = vmatpush1.msra.mxu0 %v1224
        %2997 = vmatprep.subr.mxu0 %v1233
        %2998 = vmatpush1.msra.mxu0 %v1232
        %2999 = vmatprep.subr.mxu0 %v1241
        %3000 = vmatpush1.msra.mxu0 %v1240
        %3001 = vmatprep.subr.mxu0 %v1249
        %3002 = vmatpush1.msra.mxu0 %v1248
        %3003 = vmatprep.mubr.f32.mxu0 %v467
        %3004 = vmatmul.mubr.f32.gmra.mrb[0].mxu0 %v466
        %v3005 = vpop.f32.mrb[0].mxu0
        %v3006 = vadd.f32 %v2929, %v3005
        %v3007 = vpop.f32.mrb[0].mxu0
        %v3008 = vadd.f32 %v2931, %v3007
        %3009 = vmatprep.mubr.f32.mxu0 %v478
        %3010 = vmatmul.mubr.f32.gmra.mrb[0].mxu0 %v477
        %v3011 = vpop.f32.mrb[0].mxu0
        %v3012 = vadd.f32 %v2935, %v3011
        %v3013 = vpop.f32.mrb[0].mxu0
        %v3014 = vadd.f32 %v2937, %v3013
        %3015 = vdwg.mxu0
        %3016 = vmatprep.subr.mxu0 %v1257
        %3017 = vmatpush1.msra.mxu0 %v1256
        %3018 = vmatprep.subr.mxu0 %v1265
        %3019 = vmatpush1.msra.mxu0 %v1264
        %3020 = vmatprep.subr.mxu0 %v1273
        %3021 = vmatpush1.msra.mxu0 %v1272
        %3022 = vmatprep.subr.mxu0 %v1281
        %3023 = vmatpush1.msra.mxu0 %v1280
        %3024 = vmatprep.subr.mxu0 %v1289
        %3025 = vmatpush1.msra.mxu0 %v1288
        %3026 = vmatprep.subr.mxu0 %v1297
        %3027 = vmatpush1.msra.mxu0 %v1296
        %3028 = vmatprep.subr.mxu0 %v1305
        %3029 = vmatpush1.msra.mxu0 %v1304
        %3030 = vmatprep.subr.mxu0 %v1313
        %3031 = vmatpush1.msra.mxu0 %v1312
        %3032 = vmatprep.subr.mxu0 %v1321
        %3033 = vmatpush1.msra.mxu0 %v1320
        %3034 = vmatprep.subr.mxu0 %v1329
        %3035 = vmatpush1.msra.mxu0 %v1328
        %3036 = vmatprep.subr.mxu0 %v1337
        %3037 = vmatpush1.msra.mxu0 %v1336
        %3038 = vmatprep.subr.mxu0 %v1345
        %3039 = vmatpush1.msra.mxu0 %v1344
        %3040 = vmatprep.subr.mxu0 %v1353
        %3041 = vmatpush1.msra.mxu0 %v1352
        %3042 = vmatprep.subr.mxu0 %v1361
        %3043 = vmatpush1.msra.mxu0 %v1360
        %3044 = vmatprep.subr.mxu0 %v1369
        %3045 = vmatpush1.msra.mxu0 %v1368
        %3046 = vmatprep.subr.mxu0 %v1377
        %3047 = vmatpush1.msra.mxu0 %v1376
        %3048 = vmatprep.subr.mxu0 %v1385
        %3049 = vmatpush1.msra.mxu0 %v1384
        %3050 = vmatprep.subr.mxu0 %v1393
        %3051 = vmatpush1.msra.mxu0 %v1392
        %3052 = vmatprep.subr.mxu0 %v1401
        %3053 = vmatpush1.msra.mxu0 %v1400
        %3054 = vmatprep.subr.mxu0 %v1409
        %3055 = vmatpush1.msra.mxu0 %v1408
        %3056 = vmatprep.subr.mxu0 %v1417
        %3057 = vmatpush1.msra.mxu0 %v1416
        %3058 = vmatprep.subr.mxu0 %v1425
        %3059 = vmatpush1.msra.mxu0 %v1424
        %3060 = vmatprep.subr.mxu0 %v1433
        %3061 = vmatpush1.msra.mxu0 %v1432
        %3062 = vmatprep.subr.mxu0 %v1441
        %3063 = vmatpush1.msra.mxu0 %v1440
        %3064 = vmatprep.subr.mxu0 %v1449
        %3065 = vmatpush1.msra.mxu0 %v1448
        %3066 = vmatprep.subr.mxu0 %v1457
        %3067 = vmatpush1.msra.mxu0 %v1456
        %3068 = vmatprep.subr.mxu0 %v1465
        %3069 = vmatpush1.msra.mxu0 %v1464
        %3070 = vmatprep.subr.mxu0 %v1473
        %3071 = vmatpush1.msra.mxu0 %v1472
        %3072 = vmatprep.subr.mxu0 %v1481
        %3073 = vmatpush1.msra.mxu0 %v1480
        %3074 = vmatprep.subr.mxu0 %v1489
        %3075 = vmatpush1.msra.mxu0 %v1488
        %3076 = vmatprep.subr.mxu0 %v1497
        %3077 = vmatpush1.msra.mxu0 %v1496
        %3078 = vmatprep.subr.mxu0 %v1505
        %3079 = vmatpush1.msra.mxu0 %v1504
        %3080 = vmatprep.mubr.f32.mxu0 %v469
        %3081 = vmatmul.mubr.f32.gmra.mrb[0].mxu0 %v468
        %v3082 = vpop.f32.mrb[0].mxu0
        %v3083 = vadd.f32 %v3006, %v3082
        %v3084 = vpop.f32.mrb[0].mxu0
        %v3085 = vadd.f32 %v3008, %v3084
        %3086 = vmatprep.mubr.f32.mxu0 %v480
        %3087 = vmatmul.mubr.f32.gmra.mrb[0].mxu0 %v479
        %v3088 = vpop.f32.mrb[0].mxu0
        %v3089 = vadd.f32 %v3012, %v3088
        %v3090 = vpop.f32.mrb[0].mxu0
        %v3091 = vadd.f32 %v3014, %v3090
        %3092 = vdwg.mxu0
        %3093 = vmatprep.subr.mxu0 %v1513
        %3094 = vmatpush1.msra.mxu0 %v1512
        %3095 = vmatprep.subr.mxu0 %v1521
        %3096 = vmatpush1.msra.mxu0 %v1520
        %3097 = vmatprep.subr.mxu0 %v1529
        %3098 = vmatpush1.msra.mxu0 %v1528
        %3099 = vmatprep.subr.mxu0 %v1537
        %3100 = vmatpush1.msra.mxu0 %v1536
        %3101 = vmatprep.subr.mxu0 %v1545
        %3102 = vmatpush1.msra.mxu0 %v1544
        %3103 = vmatprep.subr.mxu0 %v1553
        %3104 = vmatpush1.msra.mxu0 %v1552
        %3105 = vmatprep.subr.mxu0 %v1561
        %3106 = vmatpush1.msra.mxu0 %v1560
        %3107 = vmatprep.subr.mxu0 %v1569
        %3108 = vmatpush1.msra.mxu0 %v1568
        %3109 = vmatprep.subr.mxu0 %v1577
        %3110 = vmatpush1.msra.mxu0 %v1576
        %3111 = vmatprep.subr.mxu0 %v1585
        %3112 = vmatpush1.msra.mxu0 %v1584
        %3113 = vmatprep.subr.mxu0 %v1593
        %3114 = vmatpush1.msra.mxu0 %v1592
        %3115 = vmatprep.subr.mxu0 %v1601
        %3116 = vmatpush1.msra.mxu0 %v1600
        %3117 = vmatprep.subr.mxu0 %v1609
        %3118 = vmatpush1.msra.mxu0 %v1608
        %3119 = vmatprep.subr.mxu0 %v1617
        %3120 = vmatpush1.msra.mxu0 %v1616
        %3121 = vmatprep.subr.mxu0 %v1625
        %3122 = vmatpush1.msra.mxu0 %v1624
        %3123 = vmatprep.subr.mxu0 %v1633
        %3124 = vmatpush1.msra.mxu0 %v1632
        %3125 = vmatprep.subr.mxu0 %v1641
        %3126 = vmatpush1.msra.mxu0 %v1640
        %3127 = vmatprep.subr.mxu0 %v1649
        %3128 = vmatpush1.msra.mxu0 %v1648
        %3129 = vmatprep.subr.mxu0 %v1657
        %3130 = vmatpush1.msra.mxu0 %v1656
        %3131 = vmatprep.subr.mxu0 %v1665
        %3132 = vmatpush1.msra.mxu0 %v1664
        %3133 = vmatprep.subr.mxu0 %v1673
        %3134 = vmatpush1.msra.mxu0 %v1672
        %3135 = vmatprep.subr.mxu0 %v1681
        %3136 = vmatpush1.msra.mxu0 %v1680
        %3137 = vmatprep.subr.mxu0 %v1689
        %3138 = vmatpush1.msra.mxu0 %v1688
        %3139 = vmatprep.subr.mxu0 %v1697
        %3140 = vmatpush1.msra.mxu0 %v1696
        %3141 = vmatprep.subr.mxu0 %v1705
        %3142 = vmatpush1.msra.mxu0 %v1704
        %3143 = vmatprep.subr.mxu0 %v1713
        %3144 = vmatpush1.msra.mxu0 %v1712
        %3145 = vmatprep.subr.mxu0 %v1721
        %3146 = vmatpush1.msra.mxu0 %v1720
        %3147 = vmatprep.subr.mxu0 %v1729
        %3148 = vmatpush1.msra.mxu0 %v1728
        %3149 = vmatprep.subr.mxu0 %v1737
        %3150 = vmatpush1.msra.mxu0 %v1736
        %3151 = vmatprep.subr.mxu0 %v1745
        %3152 = vmatpush1.msra.mxu0 %v1744
        %3153 = vmatprep.subr.mxu0 %v1753
        %3154 = vmatpush1.msra.mxu0 %v1752
        %3155 = vmatprep.subr.mxu0 %v1761
        %3156 = vmatpush1.msra.mxu0 %v1760
        %3157 = vmatprep.mubr.f32.mxu0 %v471
        %3158 = vmatmul.mubr.f32.gmra.mrb[0].mxu0 %v470
        %v3159 = vpop.f32.mrb[0].mxu0
        %v3160 = vadd.f32 %v3083, %v3159
        %v3161 = vpop.f32.mrb[0].mxu0
        %v3162 = vadd.f32 %v3085, %v3161
        %3163 = vmatprep.mubr.f32.mxu0 %v482
        %3164 = vmatmul.mubr.f32.gmra.mrb[0].mxu0 %v481
        %v3165 = vpop.f32.mrb[0].mxu0
        %v3166 = vadd.f32 %v3089, %v3165
        %v3167 = vpop.f32.mrb[0].mxu0
        %v3168 = vadd.f32 %v3091, %v3167
        %3169 = vdwg.mxu0
        %3170 = vmatprep.subr.mxu0 %v1769
        %3171 = vmatpush1.msra.mxu0 %v1768
        %3172 = vmatprep.subr.mxu0 %v1777
        %3173 = vmatpush1.msra.mxu0 %v1776
        %3174 = vmatprep.subr.mxu0 %v1785
        %3175 = vmatpush1.msra.mxu0 %v1784
        %3176 = vmatprep.subr.mxu0 %v1793
        %3177 = vmatpush1.msra.mxu0 %v1792
        %3178 = vmatprep.subr.mxu0 %v1801
        %3179 = vmatpush1.msra.mxu0 %v1800
        %3180 = vmatprep.subr.mxu0 %v1809
        %3181 = vmatpush1.msra.mxu0 %v1808
        %3182 = vmatprep.subr.mxu0 0.0
        %3183 = vmatpush1.msra.mxu0 0.0
        %3184 = vmatprep.subr.mxu0 0.0
        %3185 = vmatpush1.msra.mxu0 0.0
        %3186 = vmatprep.subr.mxu0 0.0
        %3187 = vmatpush1.msra.mxu0 0.0
        %3188 = vmatprep.subr.mxu0 0.0
        %3189 = vmatpush1.msra.mxu0 0.0
        %3190 = vmatprep.subr.mxu0 0.0
        %3191 = vmatpush1.msra.mxu0 0.0
        %3192 = vmatprep.subr.mxu0 0.0
        %3193 = vmatpush1.msra.mxu0 0.0
        %3194 = vmatprep.subr.mxu0 0.0
        %3195 = vmatpush1.msra.mxu0 0.0
        %3196 = vmatprep.subr.mxu0 0.0
        %3197 = vmatpush1.msra.mxu0 0.0
        %3198 = vmatprep.subr.mxu0 0.0
        %3199 = vmatpush1.msra.mxu0 0.0
        %3200 = vmatprep.subr.mxu0 0.0
        %3201 = vmatpush1.msra.mxu0 0.0
        %3202 = vmatprep.subr.mxu0 0.0
        %3203 = vmatpush1.msra.mxu0 0.0
        %3204 = vmatprep.subr.mxu0 0.0
        %3205 = vmatpush1.msra.mxu0 0.0
        %3206 = vmatprep.subr.mxu0 0.0
        %3207 = vmatpush1.msra.mxu0 0.0
        %3208 = vmatprep.subr.mxu0 0.0
        %3209 = vmatpush1.msra.mxu0 0.0
        %3210 = vmatprep.subr.mxu0 0.0
        %3211 = vmatpush1.msra.mxu0 0.0
        %3212 = vmatprep.subr.mxu0 0.0
        %3213 = vmatpush1.msra.mxu0 0.0
        %3214 = vmatprep.subr.mxu0 0.0
        %3215 = vmatpush1.msra.mxu0 0.0
        %3216 = vmatprep.subr.mxu0 0.0
        %3217 = vmatpush1.msra.mxu0 0.0
        %3218 = vmatprep.subr.mxu0 0.0
        %3219 = vmatpush1.msra.mxu0 0.0
        %3220 = vmatprep.subr.mxu0 0.0
        %3221 = vmatpush1.msra.mxu0 0.0
        %3222 = vmatprep.subr.mxu0 0.0
        %3223 = vmatpush1.msra.mxu0 0.0
        %3224 = vmatprep.subr.mxu0 0.0
        %3225 = vmatpush1.msra.mxu0 0.0
        %3226 = vmatprep.subr.mxu0 0.0
        %3227 = vmatpush1.msra.mxu0 0.0
        %3228 = vmatprep.subr.mxu0 0.0
        %3229 = vmatpush1.msra.mxu0 0.0
        %3230 = vmatprep.subr.mxu0 0.0
        %3231 = vmatpush1.msra.mxu0 0.0
        %3232 = vmatprep.subr.mxu0 0.0
        %3233 = vmatpush1.msra.mxu0 0.0
        %3234 = vmatprep.mubr.f32.mxu0 0.0
        %3235 = vmatmul.mubr.f32.gmra.mrb[0].mxu0 %v1856
        %v3236 = vpop.f32.mrb[0].mxu0
        %v3237 = vadd.f32 %v3160, %v3236
        %v3238 = vpop.f32.mrb[0].mxu0
        %v3239 = vadd.f32 %v3162, %v3238
        %3240 = vmatprep.mubr.f32.mxu0 0.0
        %3241 = vmatmul.mubr.f32.gmra.mrb[0].mxu0 %v1859
        %v3242 = vpop.f32.mrb[0].mxu0
        %v3243 = vadd.f32 %v3166, %v3242
        %v3244 = vpop.f32.mrb[0].mxu0
        %v3245 = vadd.f32 %v3168, %v3244
        %3246 = vdwg.mxu0
        %3247 = vmatprep.subr.mxu0 %v491
        %3248 = vmatpush1.msra.mxu0 %v490
        %3249 = vmatprep.subr.mxu0 %v499
        %3250 = vmatpush1.msra.mxu0 %v498
        %3251 = vmatprep.subr.mxu0 %v507
        %3252 = vmatpush1.msra.mxu0 %v506
        %3253 = vmatprep.subr.mxu0 %v515
        %3254 = vmatpush1.msra.mxu0 %v514
        %3255 = vmatprep.subr.mxu0 %v523
        %3256 = vmatpush1.msra.mxu0 %v522
        %3257 = vmatprep.subr.mxu0 %v531
        %3258 = vmatpush1.msra.mxu0 %v530
        %3259 = vmatprep.subr.mxu0 %v539
        %3260 = vmatpush1.msra.mxu0 %v538
        %3261 = vmatprep.subr.mxu0 %v547
        %3262 = vmatpush1.msra.mxu0 %v546
        %3263 = vmatprep.subr.mxu0 %v555
        %3264 = vmatpush1.msra.mxu0 %v554
        %3265 = vmatprep.subr.mxu0 %v563
        %3266 = vmatpush1.msra.mxu0 %v562
        %3267 = vmatprep.subr.mxu0 %v571
        %3268 = vmatpush1.msra.mxu0 %v570
        %3269 = vmatprep.subr.mxu0 %v579
        %3270 = vmatpush1.msra.mxu0 %v578
        %3271 = vmatprep.subr.mxu0 %v587
        %3272 = vmatpush1.msra.mxu0 %v586
        %3273 = vmatprep.subr.mxu0 %v595
        %3274 = vmatpush1.msra.mxu0 %v594
        %3275 = vmatprep.subr.mxu0 %v603
        %3276 = vmatpush1.msra.mxu0 %v602
        %3277 = vmatprep.subr.mxu0 %v611
        %3278 = vmatpush1.msra.mxu0 %v610
        %3279 = vmatprep.subr.mxu0 %v619
        %3280 = vmatpush1.msra.mxu0 %v618
        %3281 = vmatprep.subr.mxu0 %v627
        %3282 = vmatpush1.msra.mxu0 %v626
        %3283 = vmatprep.subr.mxu0 %v635
        %3284 = vmatpush1.msra.mxu0 %v634
        %3285 = vmatprep.subr.mxu0 %v643
        %3286 = vmatpush1.msra.mxu0 %v642
        %3287 = vmatprep.subr.mxu0 %v651
        %3288 = vmatpush1.msra.mxu0 %v650
        %3289 = vmatprep.subr.mxu0 %v659
        %3290 = vmatpush1.msra.mxu0 %v658
        %3291 = vmatprep.subr.mxu0 %v667
        %3292 = vmatpush1.msra.mxu0 %v666
        %3293 = vmatprep.subr.mxu0 %v675
        %3294 = vmatpush1.msra.mxu0 %v674
        %3295 = vmatprep.subr.mxu0 %v683
        %3296 = vmatpush1.msra.mxu0 %v682
        %3297 = vmatprep.subr.mxu0 %v691
        %3298 = vmatpush1.msra.mxu0 %v690
        %3299 = vmatprep.subr.mxu0 %v699
        %3300 = vmatpush1.msra.mxu0 %v698
        %3301 = vmatprep.subr.mxu0 %v707
        %3302 = vmatpush1.msra.mxu0 %v706
        %3303 = vmatprep.subr.mxu0 %v715
        %3304 = vmatpush1.msra.mxu0 %v714
        %3305 = vmatprep.subr.mxu0 %v723
        %3306 = vmatpush1.msra.mxu0 %v722
        %3307 = vmatprep.subr.mxu0 %v731
        %3308 = vmatpush1.msra.mxu0 %v730
        %3309 = vmatprep.subr.mxu0 %v739
        %3310 = vmatpush1.msra.mxu0 %v738
        %3311 = vmatprep.mubr.f32.mxu0 %v463
        %3312 = vmatmul.mubr.f32.gmra.mrb[0].mxu0 %v462
        %v3313 = vpop.f32.mrb[0].mxu0
        %v3314 = vadd.f32 %v1841, %v3313
        %v3315 = vpop.f32.mrb[0].mxu0
        %v3316 = vadd.f32 %v1845, %v3315
        %3317 = vmatprep.mubr.f32.mxu0 %v474
        %3318 = vmatmul.mubr.f32.gmra.mrb[0].mxu0 %v473
        %v3319 = vpop.f32.mrb[0].mxu0
        %v3320 = vadd.f32 %v1841, %v3319
        %v3321 = vpop.f32.mrb[0].mxu0
        %v3322 = vadd.f32 %v1845, %v3321
        %3323 = vdwg.mxu0
        %3324 = vmatprep.subr.mxu0 %v747
        %3325 = vmatpush1.msra.mxu0 %v746
        %3326 = vmatprep.subr.mxu0 %v755
        %3327 = vmatpush1.msra.mxu0 %v754
        %3328 = vmatprep.subr.mxu0 %v763
        %3329 = vmatpush1.msra.mxu0 %v762
        %3330 = vmatprep.subr.mxu0 %v771
        %3331 = vmatpush1.msra.mxu0 %v770
        %3332 = vmatprep.subr.mxu0 %v779
        %3333 = vmatpush1.msra.mxu0 %v778
        %3334 = vmatprep.subr.mxu0 %v787
        %3335 = vmatpush1.msra.mxu0 %v786
        %3336 = vmatprep.subr.mxu0 %v795
        %3337 = vmatpush1.msra.mxu0 %v794
        %3338 = vmatprep.subr.mxu0 %v803
        %3339 = vmatpush1.msra.mxu0 %v802
        %3340 = vmatprep.subr.mxu0 %v811
        %3341 = vmatpush1.msra.mxu0 %v810
        %3342 = vmatprep.subr.mxu0 %v819
        %3343 = vmatpush1.msra.mxu0 %v818
        %3344 = vmatprep.subr.mxu0 %v827
        %3345 = vmatpush1.msra.mxu0 %v826
        %3346 = vmatprep.subr.mxu0 %v835
        %3347 = vmatpush1.msra.mxu0 %v834
        %3348 = vmatprep.subr.mxu0 %v843
        %3349 = vmatpush1.msra.mxu0 %v842
        %3350 = vmatprep.subr.mxu0 %v851
        %3351 = vmatpush1.msra.mxu0 %v850
        %3352 = vmatprep.subr.mxu0 %v859
        %3353 = vmatpush1.msra.mxu0 %v858
        %3354 = vmatprep.subr.mxu0 %v867
        %3355 = vmatpush1.msra.mxu0 %v866
        %3356 = vmatprep.subr.mxu0 %v875
        %3357 = vmatpush1.msra.mxu0 %v874
        %3358 = vmatprep.subr.mxu0 %v883
        %3359 = vmatpush1.msra.mxu0 %v882
        %3360 = vmatprep.subr.mxu0 %v891
        %3361 = vmatpush1.msra.mxu0 %v890
        %3362 = vmatprep.subr.mxu0 %v899
        %3363 = vmatpush1.msra.mxu0 %v898
        %3364 = vmatprep.subr.mxu0 %v907
        %3365 = vmatpush1.msra.mxu0 %v906
        %3366 = vmatprep.subr.mxu0 %v915
        %3367 = vmatpush1.msra.mxu0 %v914
        %3368 = vmatprep.subr.mxu0 %v923
        %3369 = vmatpush1.msra.mxu0 %v922
        %3370 = vmatprep.subr.mxu0 %v931
        %3371 = vmatpush1.msra.mxu0 %v930
        %3372 = vmatprep.subr.mxu0 %v939
        %3373 = vmatpush1.msra.mxu0 %v938
        %3374 = vmatprep.subr.mxu0 %v947
        %3375 = vmatpush1.msra.mxu0 %v946
        %3376 = vmatprep.subr.mxu0 %v955
        %3377 = vmatpush1.msra.mxu0 %v954
        %3378 = vmatprep.subr.mxu0 %v963
        %3379 = vmatpush1.msra.mxu0 %v962
        %3380 = vmatprep.subr.mxu0 %v971
        %3381 = vmatpush1.msra.mxu0 %v970
        %3382 = vmatprep.subr.mxu0 %v979
        %3383 = vmatpush1.msra.mxu0 %v978
        %3384 = vmatprep.subr.mxu0 %v987
        %3385 = vmatpush1.msra.mxu0 %v986
        %3386 = vmatprep.subr.mxu0 %v995
        %3387 = vmatpush1.msra.mxu0 %v994
        %3388 = vmatprep.mubr.f32.mxu0 %v465
        %3389 = vmatmul.mubr.f32.gmra.mrb[0].mxu0 %v464
        %v3390 = vpop.f32.mrb[0].mxu0
        %v3391 = vadd.f32 %v3314, %v3390
        %v3392 = vpop.f32.mrb[0].mxu0
        %v3393 = vadd.f32 %v3316, %v3392
        %3394 = vmatprep.mubr.f32.mxu0 %v476
        %3395 = vmatmul.mubr.f32.gmra.mrb[0].mxu0 %v475
        %v3396 = vpop.f32.mrb[0].mxu0
        %v3397 = vadd.f32 %v3320, %v3396
        %v3398 = vpop.f32.mrb[0].mxu0
        %v3399 = vadd.f32 %v3322, %v3398
        %3400 = vdwg.mxu0
        %3401 = vmatprep.subr.mxu0 %v1003
        %3402 = vmatpush1.msra.mxu0 %v1002
        %3403 = vmatprep.subr.mxu0 %v1011
        %3404 = vmatpush1.msra.mxu0 %v1010
        %3405 = vmatprep.subr.mxu0 %v1019
        %3406 = vmatpush1.msra.mxu0 %v1018
        %3407 = vmatprep.subr.mxu0 %v1027
        %3408 = vmatpush1.msra.mxu0 %v1026
        %3409 = vmatprep.subr.mxu0 %v1035
        %3410 = vmatpush1.msra.mxu0 %v1034
        %3411 = vmatprep.subr.mxu0 %v1043
        %3412 = vmatpush1.msra.mxu0 %v1042
        %3413 = vmatprep.subr.mxu0 %v1051
        %3414 = vmatpush1.msra.mxu0 %v1050
        %3415 = vmatprep.subr.mxu0 %v1059
        %3416 = vmatpush1.msra.mxu0 %v1058
        %3417 = vmatprep.subr.mxu0 %v1067
        %3418 = vmatpush1.msra.mxu0 %v1066
        %3419 = vmatprep.subr.mxu0 %v1075
        %3420 = vmatpush1.msra.mxu0 %v1074
        %3421 = vmatprep.subr.mxu0 %v1083
        %3422 = vmatpush1.msra.mxu0 %v1082
        %3423 = vmatprep.subr.mxu0 %v1091
        %3424 = vmatpush1.msra.mxu0 %v1090
        %3425 = vmatprep.subr.mxu0 %v1099
        %3426 = vmatpush1.msra.mxu0 %v1098
        %3427 = vmatprep.subr.mxu0 %v1107
        %3428 = vmatpush1.msra.mxu0 %v1106
        %3429 = vmatprep.subr.mxu0 %v1115
        %3430 = vmatpush1.msra.mxu0 %v1114
        %3431 = vmatprep.subr.mxu0 %v1123
        %3432 = vmatpush1.msra.mxu0 %v1122
        %3433 = vmatprep.subr.mxu0 %v1131
        %3434 = vmatpush1.msra.mxu0 %v1130
        %3435 = vmatprep.subr.mxu0 %v1139
        %3436 = vmatpush1.msra.mxu0 %v1138
        %3437 = vmatprep.subr.mxu0 %v1147
        %3438 = vmatpush1.msra.mxu0 %v1146
        %3439 = vmatprep.subr.mxu0 %v1155
        %3440 = vmatpush1.msra.mxu0 %v1154
        %3441 = vmatprep.subr.mxu0 %v1163
        %3442 = vmatpush1.msra.mxu0 %v1162
        %3443 = vmatprep.subr.mxu0 %v1171
        %3444 = vmatpush1.msra.mxu0 %v1170
        %3445 = vmatprep.subr.mxu0 %v1179
        %3446 = vmatpush1.msra.mxu0 %v1178
        %3447 = vmatprep.subr.mxu0 %v1187
        %3448 = vmatpush1.msra.mxu0 %v1186
        %3449 = vmatprep.subr.mxu0 %v1195
        %3450 = vmatpush1.msra.mxu0 %v1194
        %3451 = vmatprep.subr.mxu0 %v1203
        %3452 = vmatpush1.msra.mxu0 %v1202
        %3453 = vmatprep.subr.mxu0 %v1211
        %3454 = vmatpush1.msra.mxu0 %v1210
        %3455 = vmatprep.subr.mxu0 %v1219
        %3456 = vmatpush1.msra.mxu0 %v1218
        %3457 = vmatprep.subr.mxu0 %v1227
        %3458 = vmatpush1.msra.mxu0 %v1226
        %3459 = vmatprep.subr.mxu0 %v1235
        %3460 = vmatpush1.msra.mxu0 %v1234
        %3461 = vmatprep.subr.mxu0 %v1243
        %3462 = vmatpush1.msra.mxu0 %v1242
        %3463 = vmatprep.subr.mxu0 %v1251
        %3464 = vmatpush1.msra.mxu0 %v1250
        %3465 = vmatprep.mubr.f32.mxu0 %v467
        %3466 = vmatmul.mubr.f32.gmra.mrb[0].mxu0 %v466
        %v3467 = vpop.f32.mrb[0].mxu0
        %v3468 = vadd.f32 %v3391, %v3467
        %v3469 = vpop.f32.mrb[0].mxu0
        %v3470 = vadd.f32 %v3393, %v3469
        %3471 = vmatprep.mubr.f32.mxu0 %v478
        %3472 = vmatmul.mubr.f32.gmra.mrb[0].mxu0 %v477
        %v3473 = vpop.f32.mrb[0].mxu0
        %v3474 = vadd.f32 %v3397, %v3473
        %v3475 = vpop.f32.mrb[0].mxu0
        %v3476 = vadd.f32 %v3399, %v3475
        %3477 = vdwg.mxu0
        %3478 = vmatprep.subr.mxu0 %v1259
        %3479 = vmatpush1.msra.mxu0 %v1258
        %3480 = vmatprep.subr.mxu0 %v1267
        %3481 = vmatpush1.msra.mxu0 %v1266
        %3482 = vmatprep.subr.mxu0 %v1275
        %3483 = vmatpush1.msra.mxu0 %v1274
        %3484 = vmatprep.subr.mxu0 %v1283
        %3485 = vmatpush1.msra.mxu0 %v1282
        %3486 = vmatprep.subr.mxu0 %v1291
        %3487 = vmatpush1.msra.mxu0 %v1290
        %3488 = vmatprep.subr.mxu0 %v1299
        %3489 = vmatpush1.msra.mxu0 %v1298
        %3490 = vmatprep.subr.mxu0 %v1307
        %3491 = vmatpush1.msra.mxu0 %v1306
        %3492 = vmatprep.subr.mxu0 %v1315
        %3493 = vmatpush1.msra.mxu0 %v1314
        %3494 = vmatprep.subr.mxu0 %v1323
        %3495 = vmatpush1.msra.mxu0 %v1322
        %3496 = vmatprep.subr.mxu0 %v1331
        %3497 = vmatpush1.msra.mxu0 %v1330
        %3498 = vmatprep.subr.mxu0 %v1339
        %3499 = vmatpush1.msra.mxu0 %v1338
        %3500 = vmatprep.subr.mxu0 %v1347
        %3501 = vmatpush1.msra.mxu0 %v1346
        %3502 = vmatprep.subr.mxu0 %v1355
        %3503 = vmatpush1.msra.mxu0 %v1354
        %3504 = vmatprep.subr.mxu0 %v1363
        %3505 = vmatpush1.msra.mxu0 %v1362
        %3506 = vmatprep.subr.mxu0 %v1371
        %3507 = vmatpush1.msra.mxu0 %v1370
        %3508 = vmatprep.subr.mxu0 %v1379
        %3509 = vmatpush1.msra.mxu0 %v1378
        %3510 = vmatprep.subr.mxu0 %v1387
        %3511 = vmatpush1.msra.mxu0 %v1386
        %3512 = vmatprep.subr.mxu0 %v1395
        %3513 = vmatpush1.msra.mxu0 %v1394
        %3514 = vmatprep.subr.mxu0 %v1403
        %3515 = vmatpush1.msra.mxu0 %v1402
        %3516 = vmatprep.subr.mxu0 %v1411
        %3517 = vmatpush1.msra.mxu0 %v1410
        %3518 = vmatprep.subr.mxu0 %v1419
        %3519 = vmatpush1.msra.mxu0 %v1418
        %3520 = vmatprep.subr.mxu0 %v1427
        %3521 = vmatpush1.msra.mxu0 %v1426
        %3522 = vmatprep.subr.mxu0 %v1435
        %3523 = vmatpush1.msra.mxu0 %v1434
        %3524 = vmatprep.subr.mxu0 %v1443
        %3525 = vmatpush1.msra.mxu0 %v1442
        %3526 = vmatprep.subr.mxu0 %v1451
        %3527 = vmatpush1.msra.mxu0 %v1450
        %3528 = vmatprep.subr.mxu0 %v1459
        %3529 = vmatpush1.msra.mxu0 %v1458
        %3530 = vmatprep.subr.mxu0 %v1467
        %3531 = vmatpush1.msra.mxu0 %v1466
        %3532 = vmatprep.subr.mxu0 %v1475
        %3533 = vmatpush1.msra.mxu0 %v1474
        %3534 = vmatprep.subr.mxu0 %v1483
        %3535 = vmatpush1.msra.mxu0 %v1482
        %3536 = vmatprep.subr.mxu0 %v1491
        %3537 = vmatpush1.msra.mxu0 %v1490
        %3538 = vmatprep.subr.mxu0 %v1499
        %3539 = vmatpush1.msra.mxu0 %v1498
        %3540 = vmatprep.subr.mxu0 %v1507
        %3541 = vmatpush1.msra.mxu0 %v1506
        %3542 = vmatprep.mubr.f32.mxu0 %v469
        %3543 = vmatmul.mubr.f32.gmra.mrb[0].mxu0 %v468
        %v3544 = vpop.f32.mrb[0].mxu0
        %v3545 = vadd.f32 %v3468, %v3544
        %v3546 = vpop.f32.mrb[0].mxu0
        %v3547 = vadd.f32 %v3470, %v3546
        %3548 = vmatprep.mubr.f32.mxu0 %v480
        %3549 = vmatmul.mubr.f32.gmra.mrb[0].mxu0 %v479
        %v3550 = vpop.f32.mrb[0].mxu0
        %v3551 = vadd.f32 %v3474, %v3550
        %v3552 = vpop.f32.mrb[0].mxu0
        %v3553 = vadd.f32 %v3476, %v3552
        %3554 = vdwg.mxu0
        %3555 = vmatprep.subr.mxu0 %v1515
        %3556 = vmatpush1.msra.mxu0 %v1514
        %3557 = vmatprep.subr.mxu0 %v1523
        %3558 = vmatpush1.msra.mxu0 %v1522
        %3559 = vmatprep.subr.mxu0 %v1531
        %3560 = vmatpush1.msra.mxu0 %v1530
        %3561 = vmatprep.subr.mxu0 %v1539
        %3562 = vmatpush1.msra.mxu0 %v1538
        %3563 = vmatprep.subr.mxu0 %v1547
        %3564 = vmatpush1.msra.mxu0 %v1546
        %3565 = vmatprep.subr.mxu0 %v1555
        %3566 = vmatpush1.msra.mxu0 %v1554
        %3567 = vmatprep.subr.mxu0 %v1563
        %3568 = vmatpush1.msra.mxu0 %v1562
        %3569 = vmatprep.subr.mxu0 %v1571
        %3570 = vmatpush1.msra.mxu0 %v1570
        %3571 = vmatprep.subr.mxu0 %v1579
        %3572 = vmatpush1.msra.mxu0 %v1578
        %3573 = vmatprep.subr.mxu0 %v1587
        %3574 = vmatpush1.msra.mxu0 %v1586
        %3575 = vmatprep.subr.mxu0 %v1595
        %3576 = vmatpush1.msra.mxu0 %v1594
        %3577 = vmatprep.subr.mxu0 %v1603
        %3578 = vmatpush1.msra.mxu0 %v1602
        %3579 = vmatprep.subr.mxu0 %v1611
        %3580 = vmatpush1.msra.mxu0 %v1610
        %3581 = vmatprep.subr.mxu0 %v1619
        %3582 = vmatpush1.msra.mxu0 %v1618
        %3583 = vmatprep.subr.mxu0 %v1627
        %3584 = vmatpush1.msra.mxu0 %v1626
        %3585 = vmatprep.subr.mxu0 %v1635
        %3586 = vmatpush1.msra.mxu0 %v1634
        %3587 = vmatprep.subr.mxu0 %v1643
        %3588 = vmatpush1.msra.mxu0 %v1642
        %3589 = vmatprep.subr.mxu0 %v1651
        %3590 = vmatpush1.msra.mxu0 %v1650
        %3591 = vmatprep.subr.mxu0 %v1659
        %3592 = vmatpush1.msra.mxu0 %v1658
        %3593 = vmatprep.subr.mxu0 %v1667
        %3594 = vmatpush1.msra.mxu0 %v1666
        %3595 = vmatprep.subr.mxu0 %v1675
        %3596 = vmatpush1.msra.mxu0 %v1674
        %3597 = vmatprep.subr.mxu0 %v1683
        %3598 = vmatpush1.msra.mxu0 %v1682
        %3599 = vmatprep.subr.mxu0 %v1691
        %3600 = vmatpush1.msra.mxu0 %v1690
        %3601 = vmatprep.subr.mxu0 %v1699
        %3602 = vmatpush1.msra.mxu0 %v1698
        %3603 = vmatprep.subr.mxu0 %v1707
        %3604 = vmatpush1.msra.mxu0 %v1706
        %3605 = vmatprep.subr.mxu0 %v1715
        %3606 = vmatpush1.msra.mxu0 %v1714
        %3607 = vmatprep.subr.mxu0 %v1723
        %3608 = vmatpush1.msra.mxu0 %v1722
        %3609 = vmatprep.subr.mxu0 %v1731
        %3610 = vmatpush1.msra.mxu0 %v1730
        %3611 = vmatprep.subr.mxu0 %v1739
        %3612 = vmatpush1.msra.mxu0 %v1738
        %3613 = vmatprep.subr.mxu0 %v1747
        %3614 = vmatpush1.msra.mxu0 %v1746
        %3615 = vmatprep.subr.mxu0 %v1755
        %3616 = vmatpush1.msra.mxu0 %v1754
        %3617 = vmatprep.subr.mxu0 %v1763
        %3618 = vmatpush1.msra.mxu0 %v1762
        %3619 = vmatprep.mubr.f32.mxu0 %v471
        %3620 = vmatmul.mubr.f32.gmra.mrb[0].mxu0 %v470
        %v3621 = vpop.f32.mrb[0].mxu0
        %v3622 = vadd.f32 %v3545, %v3621
        %v3623 = vpop.f32.mrb[0].mxu0
        %v3624 = vadd.f32 %v3547, %v3623
        %3625 = vmatprep.mubr.f32.mxu0 %v482
        %3626 = vmatmul.mubr.f32.gmra.mrb[0].mxu0 %v481
        %v3627 = vpop.f32.mrb[0].mxu0
        %v3628 = vadd.f32 %v3551, %v3627
        %v3629 = vpop.f32.mrb[0].mxu0
        %v3630 = vadd.f32 %v3553, %v3629
        %3631 = vdwg.mxu0
        %3632 = vmatprep.subr.mxu0 %v1771
        %3633 = vmatpush1.msra.mxu0 %v1770
        %3634 = vmatprep.subr.mxu0 %v1779
        %3635 = vmatpush1.msra.mxu0 %v1778
        %3636 = vmatprep.subr.mxu0 %v1787
        %3637 = vmatpush1.msra.mxu0 %v1786
        %3638 = vmatprep.subr.mxu0 %v1795
        %3639 = vmatpush1.msra.mxu0 %v1794
        %3640 = vmatprep.subr.mxu0 %v1803
        %3641 = vmatpush1.msra.mxu0 %v1802
        %3642 = vmatprep.subr.mxu0 %v1811
        %3643 = vmatpush1.msra.mxu0 %v1810
        %3644 = vmatprep.subr.mxu0 0.0
        %3645 = vmatpush1.msra.mxu0 0.0
        %3646 = vmatprep.subr.mxu0 0.0
        %3647 = vmatpush1.msra.mxu0 0.0
        %3648 = vmatprep.subr.mxu0 0.0
        %3649 = vmatpush1.msra.mxu0 0.0
        %3650 = vmatprep.subr.mxu0 0.0
        %3651 = vmatpush1.msra.mxu0 0.0
        %3652 = vmatprep.subr.mxu0 0.0
        %3653 = vmatpush1.msra.mxu0 0.0
        %3654 = vmatprep.subr.mxu0 0.0
        %3655 = vmatpush1.msra.mxu0 0.0
        %3656 = vmatprep.subr.mxu0 0.0
        %3657 = vmatpush1.msra.mxu0 0.0
        %3658 = vmatprep.subr.mxu0 0.0
        %3659 = vmatpush1.msra.mxu0 0.0
        %3660 = vmatprep.subr.mxu0 0.0
        %3661 = vmatpush1.msra.mxu0 0.0
        %3662 = vmatprep.subr.mxu0 0.0
        %3663 = vmatpush1.msra.mxu0 0.0
        %3664 = vmatprep.subr.mxu0 0.0
        %3665 = vmatpush1.msra.mxu0 0.0
        %3666 = vmatprep.subr.mxu0 0.0
        %3667 = vmatpush1.msra.mxu0 0.0
        %3668 = vmatprep.subr.mxu0 0.0
        %3669 = vmatpush1.msra.mxu0 0.0
        %3670 = vmatprep.subr.mxu0 0.0
        %3671 = vmatpush1.msra.mxu0 0.0
        %3672 = vmatprep.subr.mxu0 0.0
        %3673 = vmatpush1.msra.mxu0 0.0
        %3674 = vmatprep.subr.mxu0 0.0
        %3675 = vmatpush1.msra.mxu0 0.0
        %3676 = vmatprep.subr.mxu0 0.0
        %3677 = vmatpush1.msra.mxu0 0.0
        %3678 = vmatprep.subr.mxu0 0.0
        %3679 = vmatpush1.msra.mxu0 0.0
        %3680 = vmatprep.subr.mxu0 0.0
        %3681 = vmatpush1.msra.mxu0 0.0
        %3682 = vmatprep.subr.mxu0 0.0
        %3683 = vmatpush1.msra.mxu0 0.0
        %3684 = vmatprep.subr.mxu0 0.0
        %3685 = vmatpush1.msra.mxu0 0.0
        %3686 = vmatprep.subr.mxu0 0.0
        %3687 = vmatpush1.msra.mxu0 0.0
        %3688 = vmatprep.subr.mxu0 0.0
        %3689 = vmatpush1.msra.mxu0 0.0
        %3690 = vmatprep.subr.mxu0 0.0
        %3691 = vmatpush1.msra.mxu0 0.0
        %3692 = vmatprep.subr.mxu0 0.0
        %3693 = vmatpush1.msra.mxu0 0.0
        %3694 = vmatprep.subr.mxu0 0.0
        %3695 = vmatpush1.msra.mxu0 0.0
        %3696 = vmatprep.mubr.f32.mxu0 0.0
        %3697 = vmatmul.mubr.f32.gmra.mrb[0].mxu0 %v1856
        %v3698 = vpop.f32.mrb[0].mxu0
        %v3699 = vadd.f32 %v3622, %v3698
        %v3700 = vpop.f32.mrb[0].mxu0
        %v3701 = vadd.f32 %v3624, %v3700
        %3702 = vmatprep.mubr.f32.mxu0 0.0
        %3703 = vmatmul.mubr.f32.gmra.mrb[0].mxu0 %v1859
        %v3704 = vpop.f32.mrb[0].mxu0
        %v3705 = vadd.f32 %v3628, %v3704
        %v3706 = vpop.f32.mrb[0].mxu0
        %v3707 = vadd.f32 %v3630, %v3706
        %3708 = vdwg.mxu0
        %v3709 = vmax.f32 %v2313, 0.0
        %v3710 = vmax.f32 %v2315, 0.0
        %v3711 = vmax.f32 %v2775, 0.0
        %v3712 = vmax.f32 %v2777, 0.0
        %v3713 = vmax.f32 %v3237, 0.0
        %v3714 = vmax.f32 %v3239, 0.0
        %v3715 = vmax.f32 %v3699, 0.0
        %v3716 = vmax.f32 %v3701, 0.0
        %v3717 = vmax.f32 %v2319, 0.0
        %v3718 = vmax.f32 %v2321, 0.0
        %v3719 = vmax.f32 %v2781, 0.0
        %v3720 = vmax.f32 %v2783, 0.0
        %v3721 = vmax.f32 %v3243, 0.0
        %v3722 = vmax.f32 %v3245, 0.0
        %v3723 = vmax.f32 %v3705, 0.0
        %v3724 = vmax.f32 %v3707, 0.0
        %v3725 = vld [vmem:[#allocation8] sm:$0xff]
        %v3726 = vld [vmem:[#allocation8 + $0x8] sm:$0xff]
        %v3727 = vld [vmem:[#allocation8 + $0x10] sm:$0xff]
        %v3728 = vld [vmem:[#allocation8 + $0x18] sm:$0xff]
        %v3729 = vld [vmem:[#allocation8 + $0x20] sm:$0xff]
        %v3730 = vld [vmem:[#allocation8 + $0x28] sm:$0xff]
        %v3731 = vld [vmem:[#allocation8 + $0x30] sm:$0xff]
        %v3732 = vld [vmem:[#allocation8 + $0x38] sm:$0xff]
        %v3733 = vld [vmem:[#allocation8 + $0x40] sm:$0xff]
        %v3734 = vld [vmem:[#allocation8 + $0x48] sm:$0xff]
        %v3735 = vld [vmem:[#allocation8 + $0x50] sm:$0xff]
        %v3736 = vld [vmem:[#allocation8 + $0x58] sm:$0xff]
        %v3737 = vld [vmem:[#allocation8 + $0x60] sm:$0xff]
        %v3738 = vld [vmem:[#allocation8 + $0x68] sm:$0xff]
        %v3739 = vld [vmem:[#allocation8 + $0x70] sm:$0xff]
        %v3740 = vld [vmem:[#allocation8 + $0x78] sm:$0xff]
        %v3741 = vld [vmem:[#allocation8 + $0x80] sm:$0xff]
        %v3742 = vld [vmem:[#allocation8 + $0x88] sm:$0xff]
        %v3743 = vld [vmem:[#allocation8 + $0x90] sm:$0xff]
        %v3744 = vld [vmem:[#allocation8 + $0x98] sm:$0xff]
        %v3745 = vld [vmem:[#allocation8 + $0xa0] sm:$0xff]
        %v3746 = vld [vmem:[#allocation8 + $0xa8] sm:$0xff]
        %v3747 = vld [vmem:[#allocation8 + $0xb0] sm:$0xff]
        %v3748 = vld [vmem:[#allocation8 + $0xb8] sm:$0xff]
        %v3749 = vld [vmem:[#allocation8 + $0xc0] sm:$0xff]
        %v3750 = vld [vmem:[#allocation8 + $0xc8] sm:$0xff]
        %v3751 = vld [vmem:[#allocation8 + $0xd0] sm:$0xff]
        %v3752 = vld [vmem:[#allocation8 + $0xd8] sm:$0xff]
        %v3753 = vld [vmem:[#allocation8 + $0xe0] sm:$0xff]
        %v3754 = vld [vmem:[#allocation8 + $0xe8] sm:$0xff]
        %v3755 = vld [vmem:[#allocation8 + $0xf0] sm:$0xff]
        %v3756 = vld [vmem:[#allocation8 + $0xf8] sm:$0xff]
        %v3757 = vld [vmem:[#allocation8 + $0x100] sm:$0xff]
        %v3758 = vld [vmem:[#allocation8 + $0x108] sm:$0xff]
        %v3759 = vld [vmem:[#allocation8 + $0x110] sm:$0xff]
        %v3760 = vld [vmem:[#allocation8 + $0x118] sm:$0xff]
        %v3761 = vld [vmem:[#allocation8 + $0x120] sm:$0xff]
        %v3762 = vld [vmem:[#allocation8 + $0x128] sm:$0xff]
        %v3763 = vld [vmem:[#allocation8 + $0x130] sm:$0xff]
        %v3764 = vld [vmem:[#allocation8 + $0x138] sm:$0xff]
        %v3765 = vld [vmem:[#allocation8 + $0x140] sm:$0xff]
        %v3766 = vld [vmem:[#allocation8 + $0x148] sm:$0xff]
        %v3767 = vld [vmem:[#allocation8 + $0x150] sm:$0xff]
        %v3768 = vld [vmem:[#allocation8 + $0x158] sm:$0xff]
        %v3769 = vld [vmem:[#allocation8 + $0x160] sm:$0xff]
        %v3770 = vld [vmem:[#allocation8 + $0x168] sm:$0xff]
        %v3771 = vld [vmem:[#allocation8 + $0x170] sm:$0xff]
        %v3772 = vld [vmem:[#allocation8 + $0x178] sm:$0xff]
        %v3773 = vld [vmem:[#allocation8 + $0x180] sm:$0xff]
        %v3774 = vld [vmem:[#allocation8 + $0x188] sm:$0xff]
        %v3775 = vld [vmem:[#allocation8 + $0x190] sm:$0xff]
        %v3776 = vld [vmem:[#allocation8 + $0x198] sm:$0xff]
        %v3777 = vld [vmem:[#allocation8 + $0x1a0] sm:$0xff]
        %v3778 = vld [vmem:[#allocation8 + $0x1a8] sm:$0xff]
        %v3779 = vld [vmem:[#allocation8 + $0x1b0] sm:$0xff]
        %v3780 = vld [vmem:[#allocation8 + $0x1b8] sm:$0xff]
        %v3781 = vld [vmem:[#allocation8 + $0x1c0] sm:$0xff]
        %v3782 = vld [vmem:[#allocation8 + $0x1c8] sm:$0xff]
        %v3783 = vld [vmem:[#allocation8 + $0x1d0] sm:$0xff]
        %v3784 = vld [vmem:[#allocation8 + $0x1d8] sm:$0xff]
        %v3785 = vld [vmem:[#allocation8 + $0x1e0] sm:$0xff]
        %v3786 = vld [vmem:[#allocation8 + $0x1e8] sm:$0xff]
        %v3787 = vld [vmem:[#allocation8 + $0x1f0] sm:$0xff]
        %v3788 = vld [vmem:[#allocation8 + $0x1f8] sm:$0xff]
        %v3789 = vld [vmem:[#allocation8 + $0x200] sm:$0xff]
        %v3790 = vld [vmem:[#allocation8 + $0x208] sm:$0xff]
        %v3791 = vld [vmem:[#allocation8 + $0x210] sm:$0xff]
        %v3792 = vld [vmem:[#allocation8 + $0x218] sm:$0xff]
        %v3793 = vld [vmem:[#allocation8 + $0x220] sm:$0xff]
        %v3794 = vld [vmem:[#allocation8 + $0x228] sm:$0xff]
        %v3795 = vld [vmem:[#allocation8 + $0x230] sm:$0xff]
        %v3796 = vld [vmem:[#allocation8 + $0x238] sm:$0xff]
        %v3797 = vld [vmem:[#allocation8 + $0x240] sm:$0xff]
        %v3798 = vld [vmem:[#allocation8 + $0x248] sm:$0xff]
        %v3799 = vld [vmem:[#allocation8 + $0x250] sm:$0xff]
        %v3800 = vld [vmem:[#allocation8 + $0x258] sm:$0xff]
        %v3801 = vld [vmem:[#allocation8 + $0x260] sm:$0xff]
        %v3802 = vld [vmem:[#allocation8 + $0x268] sm:$0xff]
        %v3803 = vld [vmem:[#allocation8 + $0x270] sm:$0xff]
        %v3804 = vld [vmem:[#allocation8 + $0x278] sm:$0xff]
        %v3805 = vld [vmem:[#allocation8 + $0x280] sm:$0xff]
        %v3806 = vld [vmem:[#allocation8 + $0x288] sm:$0xff]
        %v3807 = vld [vmem:[#allocation8 + $0x290] sm:$0xff]
        %v3808 = vld [vmem:[#allocation8 + $0x298] sm:$0xff]
        %v3809 = vld [vmem:[#allocation8 + $0x2a0] sm:$0xff]
        %v3810 = vld [vmem:[#allocation8 + $0x2a8] sm:$0xff]
        %v3811 = vld [vmem:[#allocation8 + $0x2b0] sm:$0xff]
        %v3812 = vld [vmem:[#allocation8 + $0x2b8] sm:$0xff]
        %v3813 = vld [vmem:[#allocation8 + $0x2c0] sm:$0xff]
        %v3814 = vld [vmem:[#allocation8 + $0x2c8] sm:$0xff]
        %v3815 = vld [vmem:[#allocation8 + $0x2d0] sm:$0xff]
        %v3816 = vld [vmem:[#allocation8 + $0x2d8] sm:$0xff]
        %v3817 = vld [vmem:[#allocation8 + $0x2e0] sm:$0xff]
        %v3818 = vld [vmem:[#allocation8 + $0x2e8] sm:$0xff]
        %v3819 = vld [vmem:[#allocation8 + $0x2f0] sm:$0xff]
        %v3820 = vld [vmem:[#allocation8 + $0x2f8] sm:$0xff]
        %v3821 = vld [vmem:[#allocation8 + $0x300] sm:$0xff]
        %v3822 = vld [vmem:[#allocation8 + $0x308] sm:$0xff]
        %v3823 = vld [vmem:[#allocation8 + $0x310] sm:$0xff]
        %v3824 = vld [vmem:[#allocation8 + $0x318] sm:$0xff]
        %v3825 = vld [vmem:[#allocation8 + $0x320] sm:$0xff]
        %v3826 = vld [vmem:[#allocation8 + $0x328] sm:$0xff]
        %v3827 = vld [vmem:[#allocation8 + $0x330] sm:$0xff]
        %v3828 = vld [vmem:[#allocation8 + $0x338] sm:$0xff]
        %v3829 = vld [vmem:[#allocation8 + $0x340] sm:$0xff]
        %v3830 = vld [vmem:[#allocation8 + $0x348] sm:$0xff]
        %v3831 = vld [vmem:[#allocation8 + $0x350] sm:$0xff]
        %v3832 = vld [vmem:[#allocation8 + $0x358] sm:$0xff]
        %v3833 = vld [vmem:[#allocation8 + $0x360] sm:$0xff]
        %v3834 = vld [vmem:[#allocation8 + $0x368] sm:$0xff]
        %v3835 = vld [vmem:[#allocation8 + $0x370] sm:$0xff]
        %v3836 = vld [vmem:[#allocation8 + $0x378] sm:$0xff]
        %v3837 = vld [vmem:[#allocation8 + $0x380] sm:$0xff]
        %v3838 = vld [vmem:[#allocation8 + $0x388] sm:$0xff]
        %v3839 = vld [vmem:[#allocation8 + $0x390] sm:$0xff]
        %v3840 = vld [vmem:[#allocation8 + $0x398] sm:$0xff]
        %v3841 = vld [vmem:[#allocation8 + $0x3a0] sm:$0xff]
        %v3842 = vld [vmem:[#allocation8 + $0x3a8] sm:$0xff]
        %v3843 = vld [vmem:[#allocation8 + $0x3b0] sm:$0xff]
        %v3844 = vld [vmem:[#allocation8 + $0x3b8] sm:$0xff]
        %v3845 = vld [vmem:[#allocation8 + $0x3c0] sm:$0xff]
        %v3846 = vld [vmem:[#allocation8 + $0x3c8] sm:$0xff]
        %v3847 = vld [vmem:[#allocation8 + $0x3d0] sm:$0xff]
        %v3848 = vld [vmem:[#allocation8 + $0x3d8] sm:$0xff]
        %v3849 = vld [vmem:[#allocation8 + $0x3e0] sm:$0xff]
        %v3850 = vld [vmem:[#allocation8 + $0x3e8] sm:$0xff]
        %v3851 = vld [vmem:[#allocation8 + $0x3f0] sm:$0xff]
        %v3852 = vld [vmem:[#allocation8 + $0x3f8] sm:$0xff]
        %v3853 = vld [vmem:[#allocation8 + $0x400] sm:$0xff]
        %v3854 = vld [vmem:[#allocation8 + $0x408] sm:$0xff]
        %v3855 = vld [vmem:[#allocation8 + $0x410] sm:$0xff]
        %v3856 = vld [vmem:[#allocation8 + $0x418] sm:$0xff]
        %v3857 = vld [vmem:[#allocation8 + $0x420] sm:$0xff]
        %v3858 = vld [vmem:[#allocation8 + $0x428] sm:$0xff]
        %v3859 = vld [vmem:[#allocation8 + $0x430] sm:$0xff]
        %v3860 = vld [vmem:[#allocation8 + $0x438] sm:$0xff]
        %v3861 = vld [vmem:[#allocation8 + $0x440] sm:$0xff]
        %v3862 = vld [vmem:[#allocation8 + $0x448] sm:$0xff]
        %v3863 = vld [vmem:[#allocation8 + $0x450] sm:$0xff]
        %v3864 = vld [vmem:[#allocation8 + $0x458] sm:$0xff]
        %v3865 = vld [vmem:[#allocation8 + $0x460] sm:$0xff]
        %v3866 = vld [vmem:[#allocation8 + $0x468] sm:$0xff]
        %v3867 = vld [vmem:[#allocation8 + $0x470] sm:$0xff]
        %v3868 = vld [vmem:[#allocation8 + $0x478] sm:$0xff]
        %v3869 = vld [vmem:[#allocation8 + $0x480] sm:$0xff]
        %v3870 = vld [vmem:[#allocation8 + $0x488] sm:$0xff]
        %v3871 = vld [vmem:[#allocation8 + $0x490] sm:$0xff]
        %v3872 = vld [vmem:[#allocation8 + $0x498] sm:$0xff]
        %v3873 = vld [vmem:[#allocation8 + $0x4a0] sm:$0xff]
        %v3874 = vld [vmem:[#allocation8 + $0x4a8] sm:$0xff]
        %v3875 = vld [vmem:[#allocation8 + $0x4b0] sm:$0xff]
        %v3876 = vld [vmem:[#allocation8 + $0x4b8] sm:$0xff]
        %v3877 = vld [vmem:[#allocation8 + $0x4c0] sm:$0xff]
        %v3878 = vld [vmem:[#allocation8 + $0x4c8] sm:$0xff]
        %v3879 = vld [vmem:[#allocation8 + $0x4d0] sm:$0xff]
        %v3880 = vld [vmem:[#allocation8 + $0x4d8] sm:$0xff]
        %v3881 = vld [vmem:[#allocation8 + $0x4e0] sm:$0xff]
        %v3882 = vld [vmem:[#allocation8 + $0x4e8] sm:$0xff]
        %v3883 = vld [vmem:[#allocation8 + $0x4f0] sm:$0xff]
        %v3884 = vld [vmem:[#allocation8 + $0x4f8] sm:$0xff]
        %v3885 = vld [vmem:[#allocation8 + $0x500] sm:$0xff]
        %v3886 = vld [vmem:[#allocation8 + $0x508] sm:$0xff]
        %v3887 = vld [vmem:[#allocation8 + $0x510] sm:$0xff]
        %v3888 = vld [vmem:[#allocation8 + $0x518] sm:$0xff]
        %v3889 = vld [vmem:[#allocation8 + $0x520] sm:$0xff]
        %v3890 = vld [vmem:[#allocation8 + $0x528] sm:$0xff]
        %v3891 = vld [vmem:[#allocation8 + $0x530] sm:$0xff]
        %v3892 = vld [vmem:[#allocation8 + $0x538] sm:$0xff]
        %v3893 = vld [vmem:[#allocation8 + $0x540] sm:$0xff]
        %v3894 = vld [vmem:[#allocation8 + $0x548] sm:$0xff]
        %v3895 = vld [vmem:[#allocation8 + $0x550] sm:$0xff]
        %v3896 = vld [vmem:[#allocation8 + $0x558] sm:$0xff]
        %v3897 = vld [vmem:[#allocation8 + $0x560] sm:$0xff]
        %v3898 = vld [vmem:[#allocation8 + $0x568] sm:$0xff]
        %v3899 = vld [vmem:[#allocation8 + $0x570] sm:$0xff]
        %v3900 = vld [vmem:[#allocation8 + $0x578] sm:$0xff]
        %v3901 = vld [vmem:[#allocation8 + $0x580] sm:$0xff]
        %v3902 = vld [vmem:[#allocation8 + $0x588] sm:$0xff]
        %v3903 = vld [vmem:[#allocation8 + $0x590] sm:$0xff]
        %v3904 = vld [vmem:[#allocation8 + $0x598] sm:$0xff]
        %v3905 = vld [vmem:[#allocation8 + $0x5a0] sm:$0xff]
        %v3906 = vld [vmem:[#allocation8 + $0x5a8] sm:$0xff]
        %v3907 = vld [vmem:[#allocation8 + $0x5b0] sm:$0xff]
        %v3908 = vld [vmem:[#allocation8 + $0x5b8] sm:$0xff]
        %v3909 = vld [vmem:[#allocation8 + $0x5c0] sm:$0xff]
        %v3910 = vld [vmem:[#allocation8 + $0x5c8] sm:$0xff]
        %v3911 = vld [vmem:[#allocation8 + $0x5d0] sm:$0xff]
        %v3912 = vld [vmem:[#allocation8 + $0x5d8] sm:$0xff]
        %v3913 = vld [vmem:[#allocation8 + $0x5e0] sm:$0xff]
        %v3914 = vld [vmem:[#allocation8 + $0x5e8] sm:$0xff]
        %v3915 = vld [vmem:[#allocation8 + $0x5f0] sm:$0xff]
        %v3916 = vld [vmem:[#allocation8 + $0x5f8] sm:$0xff]
        %v3917 = vld [vmem:[#allocation8 + $0x600] sm:$0xff]
        %v3918 = vld [vmem:[#allocation8 + $0x608] sm:$0xff]
        %v3919 = vld [vmem:[#allocation8 + $0x610] sm:$0xff]
        %v3920 = vld [vmem:[#allocation8 + $0x618] sm:$0xff]
        %v3921 = vld [vmem:[#allocation8 + $0x620] sm:$0xff]
        %v3922 = vld [vmem:[#allocation8 + $0x628] sm:$0xff]
        %v3923 = vld [vmem:[#allocation8 + $0x630] sm:$0xff]
        %v3924 = vld [vmem:[#allocation8 + $0x638] sm:$0xff]
        %v3925 = vld [vmem:[#allocation8 + $0x640] sm:$0xff]
        %v3926 = vld [vmem:[#allocation8 + $0x648] sm:$0xff]
        %v3927 = vld [vmem:[#allocation8 + $0x650] sm:$0xff]
        %v3928 = vld [vmem:[#allocation8 + $0x658] sm:$0xff]
        %v3929 = vld [vmem:[#allocation8 + $0x660] sm:$0xff]
        %v3930 = vld [vmem:[#allocation8 + $0x668] sm:$0xff]
        %v3931 = vld [vmem:[#allocation8 + $0x670] sm:$0xff]
        %v3932 = vld [vmem:[#allocation8 + $0x678] sm:$0xff]
        %v3933 = vld [vmem:[#allocation8 + $0x680] sm:$0xff]
        %v3934 = vld [vmem:[#allocation8 + $0x688] sm:$0xff]
        %v3935 = vld [vmem:[#allocation8 + $0x690] sm:$0xff]
        %v3936 = vld [vmem:[#allocation8 + $0x698] sm:$0xff]
        %v3937 = vld [vmem:[#allocation8 + $0x6a0] sm:$0xff]
        %v3938 = vld [vmem:[#allocation8 + $0x6a8] sm:$0xff]
        %v3939 = vld [vmem:[#allocation8 + $0x6b0] sm:$0xff]
        %v3940 = vld [vmem:[#allocation8 + $0x6b8] sm:$0xff]
        %v3941 = vld [vmem:[#allocation8 + $0x6c0] sm:$0xff]
        %v3942 = vld [vmem:[#allocation8 + $0x6c8] sm:$0xff]
        %v3943 = vld [vmem:[#allocation8 + $0x6d0] sm:$0xff]
        %v3944 = vld [vmem:[#allocation8 + $0x6d8] sm:$0xff]
        %v3945 = vld [vmem:[#allocation8 + $0x6e0] sm:$0xff]
        %v3946 = vld [vmem:[#allocation8 + $0x6e8] sm:$0xff]
        %v3947 = vld [vmem:[#allocation8 + $0x6f0] sm:$0xff]
        %v3948 = vld [vmem:[#allocation8 + $0x6f8] sm:$0xff]
        %v3949 = vld [vmem:[#allocation8 + $0x700] sm:$0xff]
        %v3950 = vld [vmem:[#allocation8 + $0x708] sm:$0xff]
        %v3951 = vld [vmem:[#allocation8 + $0x710] sm:$0xff]
        %v3952 = vld [vmem:[#allocation8 + $0x718] sm:$0xff]
        %v3953 = vld [vmem:[#allocation8 + $0x720] sm:$0xff]
        %v3954 = vld [vmem:[#allocation8 + $0x728] sm:$0xff]
        %v3955 = vld [vmem:[#allocation8 + $0x730] sm:$0xff]
        %v3956 = vld [vmem:[#allocation8 + $0x738] sm:$0xff]
        %v3957 = vld [vmem:[#allocation8 + $0x740] sm:$0xff]
        %v3958 = vld [vmem:[#allocation8 + $0x748] sm:$0xff]
        %v3959 = vld [vmem:[#allocation8 + $0x750] sm:$0xff]
        %v3960 = vld [vmem:[#allocation8 + $0x758] sm:$0xff]
        %v3961 = vld [vmem:[#allocation8 + $0x760] sm:$0xff]
        %v3962 = vld [vmem:[#allocation8 + $0x768] sm:$0xff]
        %v3963 = vld [vmem:[#allocation8 + $0x770] sm:$0xff]
        %v3964 = vld [vmem:[#allocation8 + $0x778] sm:$0xff]
        %v3965 = vld [vmem:[#allocation8 + $0x780] sm:$0xff]
        %v3966 = vld [vmem:[#allocation8 + $0x788] sm:$0xff]
        %v3967 = vld [vmem:[#allocation8 + $0x790] sm:$0xff]
        %v3968 = vld [vmem:[#allocation8 + $0x798] sm:$0xff]
        %v3969 = vld [vmem:[#allocation8 + $0x7a0] sm:$0xff]
        %v3970 = vld [vmem:[#allocation8 + $0x7a8] sm:$0xff]
        %v3971 = vld [vmem:[#allocation8 + $0x7b0] sm:$0xff]
        %v3972 = vld [vmem:[#allocation8 + $0x7b8] sm:$0xff]
        %v3973 = vld [vmem:[#allocation8 + $0x7c0] sm:$0xff]
        %v3974 = vld [vmem:[#allocation8 + $0x7c8] sm:$0xff]
        %v3975 = vld [vmem:[#allocation8 + $0x7d0] sm:$0xff]
        %v3976 = vld [vmem:[#allocation8 + $0x7d8] sm:$0xff]
        %v3977 = vld [vmem:[#allocation8 + $0x7e0] sm:$0xff]
        %v3978 = vld [vmem:[#allocation8 + $0x7e8] sm:$0xff]
        %v3979 = vld [vmem:[#allocation8 + $0x7f0] sm:$0xff]
        %v3980 = vld [vmem:[#allocation8 + $0x7f8] sm:$0xff]
        %v3981 = vld [vmem:[#allocation8 + $0x800] sm:$0xff]
        %v3982 = vld [vmem:[#allocation8 + $0x808] sm:$0xff]
        %v3983 = vld [vmem:[#allocation8 + $0x810] sm:$0xff]
        %v3984 = vld [vmem:[#allocation8 + $0x818] sm:$0xff]
        %v3985 = vld [vmem:[#allocation8 + $0x820] sm:$0xff]
        %v3986 = vld [vmem:[#allocation8 + $0x828] sm:$0xff]
        %v3987 = vld [vmem:[#allocation8 + $0x830] sm:$0xff]
        %v3988 = vld [vmem:[#allocation8 + $0x838] sm:$0xff]
        %v3989 = vld [vmem:[#allocation8 + $0x840] sm:$0xff]
        %v3990 = vld [vmem:[#allocation8 + $0x848] sm:$0xff]
        %v3991 = vld [vmem:[#allocation8 + $0x850] sm:$0xff]
        %v3992 = vld [vmem:[#allocation8 + $0x858] sm:$0xff]
        %v3993 = vld [vmem:[#allocation8 + $0x860] sm:$0xff]
        %v3994 = vld [vmem:[#allocation8 + $0x868] sm:$0xff]
        %v3995 = vld [vmem:[#allocation8 + $0x870] sm:$0xff]
        %v3996 = vld [vmem:[#allocation8 + $0x878] sm:$0xff]
        %v3997 = vld [vmem:[#allocation8 + $0x880] sm:$0xff]
        %v3998 = vld [vmem:[#allocation8 + $0x888] sm:$0xff]
        %v3999 = vld [vmem:[#allocation8 + $0x890] sm:$0xff]
        %v4000 = vld [vmem:[#allocation8 + $0x898] sm:$0xff]
        %v4001 = vld [vmem:[#allocation8 + $0x8a0] sm:$0xff]
        %v4002 = vld [vmem:[#allocation8 + $0x8a8] sm:$0xff]
        %v4003 = vld [vmem:[#allocation8 + $0x8b0] sm:$0xff]
        %v4004 = vld [vmem:[#allocation8 + $0x8b8] sm:$0xff]
        %v4005 = vld [vmem:[#allocation8 + $0x8c0] sm:$0xff]
        %v4006 = vld [vmem:[#allocation8 + $0x8c8] sm:$0xff]
        %v4007 = vld [vmem:[#allocation8 + $0x8d0] sm:$0xff]
        %v4008 = vld [vmem:[#allocation8 + $0x8d8] sm:$0xff]
        %v4009 = vld [vmem:[#allocation8 + $0x8e0] sm:$0xff]
        %v4010 = vld [vmem:[#allocation8 + $0x8e8] sm:$0xff]
        %v4011 = vld [vmem:[#allocation8 + $0x8f0] sm:$0xff]
        %v4012 = vld [vmem:[#allocation8 + $0x8f8] sm:$0xff]
        %v4013 = vld [vmem:[#allocation8 + $0x900] sm:$0xff]
        %v4014 = vld [vmem:[#allocation8 + $0x908] sm:$0xff]
        %v4015 = vld [vmem:[#allocation8 + $0x910] sm:$0xff]
        %v4016 = vld [vmem:[#allocation8 + $0x918] sm:$0xff]
        %v4017 = vld [vmem:[#allocation8 + $0x920] sm:$0xff]
        %v4018 = vld [vmem:[#allocation8 + $0x928] sm:$0xff]
        %v4019 = vld [vmem:[#allocation8 + $0x930] sm:$0xff]
        %v4020 = vld [vmem:[#allocation8 + $0x938] sm:$0xff]
        %v4021 = vld [vmem:[#allocation8 + $0x940] sm:$0xff]
        %v4022 = vld [vmem:[#allocation8 + $0x948] sm:$0xff]
        %v4023 = vld [vmem:[#allocation8 + $0x950] sm:$0xff]
        %v4024 = vld [vmem:[#allocation8 + $0x958] sm:$0xff]
        %v4025 = vld [vmem:[#allocation8 + $0x960] sm:$0xff]
        %v4026 = vld [vmem:[#allocation8 + $0x968] sm:$0xff]
        %v4027 = vld [vmem:[#allocation8 + $0x970] sm:$0xff]
        %v4028 = vld [vmem:[#allocation8 + $0x978] sm:$0xff]
        %v4029 = vld [vmem:[#allocation8 + $0x980] sm:$0xff]
        %v4030 = vld [vmem:[#allocation8 + $0x988] sm:$0xff]
        %v4031 = vld [vmem:[#allocation8 + $0x990] sm:$0xff]
        %v4032 = vld [vmem:[#allocation8 + $0x998] sm:$0xff]
        %v4033 = vld [vmem:[#allocation8 + $0x9a0] sm:$0xff]
        %v4034 = vld [vmem:[#allocation8 + $0x9a8] sm:$0xff]
        %v4035 = vld [vmem:[#allocation8 + $0x9b0] sm:$0xff]
        %v4036 = vld [vmem:[#allocation8 + $0x9b8] sm:$0xff]
        %v4037 = vld [vmem:[#allocation8 + $0x9c0] sm:$0xff]
        %v4038 = vld [vmem:[#allocation8 + $0x9c8] sm:$0xff]
        %v4039 = vld [vmem:[#allocation8 + $0x9d0] sm:$0xff]
        %v4040 = vld [vmem:[#allocation8 + $0x9d8] sm:$0xff]
        %v4041 = vld [vmem:[#allocation8 + $0x9e0] sm:$0xff]
        %v4042 = vld [vmem:[#allocation8 + $0x9e8] sm:$0xff]
        %v4043 = vld [vmem:[#allocation8 + $0x9f0] sm:$0xff]
        %v4044 = vld [vmem:[#allocation8 + $0x9f8] sm:$0xff]
        %v4045 = vld [vmem:[#allocation8 + $0xa00] sm:$0xff]
        %v4046 = vld [vmem:[#allocation8 + $0xa08] sm:$0xff]
        %v4047 = vld [vmem:[#allocation8 + $0xa10] sm:$0xff]
        %v4048 = vld [vmem:[#allocation8 + $0xa18] sm:$0xff]
        %v4049 = vld [vmem:[#allocation8 + $0xa20] sm:$0xff]
        %v4050 = vld [vmem:[#allocation8 + $0xa28] sm:$0xff]
        %v4051 = vld [vmem:[#allocation8 + $0xa30] sm:$0xff]
        %v4052 = vld [vmem:[#allocation8 + $0xa38] sm:$0xff]
        %v4053 = vld [vmem:[#allocation8 + $0xa40] sm:$0xff]
        %v4054 = vld [vmem:[#allocation8 + $0xa48] sm:$0xff]
        %v4055 = vld [vmem:[#allocation8 + $0xa50] sm:$0xff]
        %v4056 = vld [vmem:[#allocation8 + $0xa58] sm:$0xff]
        %v4057 = vld [vmem:[#allocation8 + $0xa60] sm:$0xff]
        %v4058 = vld [vmem:[#allocation8 + $0xa68] sm:$0xff]
        %v4059 = vld [vmem:[#allocation8 + $0xa70] sm:$0xff]
        %v4060 = vld [vmem:[#allocation8 + $0xa78] sm:$0xff]
        %v4061 = vld [vmem:[#allocation8 + $0xa80] sm:$0xff]
        %v4062 = vld [vmem:[#allocation8 + $0xa88] sm:$0xff]
        %v4063 = vld [vmem:[#allocation8 + $0xa90] sm:$0xff]
        %v4064 = vld [vmem:[#allocation8 + $0xa98] sm:$0xff]
        %v4065 = vld [vmem:[#allocation8 + $0xaa0] sm:$0xff]
        %v4066 = vld [vmem:[#allocation8 + $0xaa8] sm:$0xff]
        %v4067 = vld [vmem:[#allocation8 + $0xab0] sm:$0xff]
        %v4068 = vld [vmem:[#allocation8 + $0xab8] sm:$0xff]
        %v4069 = vld [vmem:[#allocation8 + $0xac0] sm:$0xff]
        %v4070 = vld [vmem:[#allocation8 + $0xac8] sm:$0xff]
        %v4071 = vld [vmem:[#allocation8 + $0xad0] sm:$0xff]
        %v4072 = vld [vmem:[#allocation8 + $0xad8] sm:$0xff]
        %v4073 = vld [vmem:[#allocation8 + $0xae0] sm:$0xff]
        %v4074 = vld [vmem:[#allocation8 + $0xae8] sm:$0xff]
        %v4075 = vld [vmem:[#allocation8 + $0xaf0] sm:$0xff]
        %v4076 = vld [vmem:[#allocation8 + $0xaf8] sm:$0xff]
        %v4077 = vld [vmem:[#allocation8 + $0xb00] sm:$0xff]
        %v4078 = vld [vmem:[#allocation8 + $0xb08] sm:$0xff]
        %v4079 = vld [vmem:[#allocation8 + $0xb10] sm:$0xff]
        %v4080 = vld [vmem:[#allocation8 + $0xb18] sm:$0xff]
        %v4081 = vld [vmem:[#allocation8 + $0xb20] sm:$0xff]
        %v4082 = vld [vmem:[#allocation8 + $0xb28] sm:$0xff]
        %v4083 = vld [vmem:[#allocation8 + $0xb30] sm:$0xff]
        %v4084 = vld [vmem:[#allocation8 + $0xb38] sm:$0xff]
        %v4085 = vld [vmem:[#allocation8 + $0xb40] sm:$0xff]
        %v4086 = vld [vmem:[#allocation8 + $0xb48] sm:$0xff]
        %v4087 = vld [vmem:[#allocation8 + $0xb50] sm:$0xff]
        %v4088 = vld [vmem:[#allocation8 + $0xb58] sm:$0xff]
        %v4089 = vld [vmem:[#allocation8 + $0xb60] sm:$0xff]
        %v4090 = vld [vmem:[#allocation8 + $0xb68] sm:$0xff]
        %v4091 = vld [vmem:[#allocation8 + $0xb70] sm:$0xff]
        %v4092 = vld [vmem:[#allocation8 + $0xb78] sm:$0xff]
        %v4093 = vld [vmem:[#allocation8 + $0xb80] sm:$0xff]
        %v4094 = vld [vmem:[#allocation8 + $0xb88] sm:$0xff]
        %v4095 = vld [vmem:[#allocation8 + $0xb90] sm:$0xff]
        %v4096 = vld [vmem:[#allocation8 + $0xb98] sm:$0xff]
        %v4097 = vld [vmem:[#allocation8 + $0xba0] sm:$0xff]
        %v4098 = vld [vmem:[#allocation8 + $0xba8] sm:$0xff]
        %v4099 = vld [vmem:[#allocation8 + $0xbb0] sm:$0xff]
        %v4100 = vld [vmem:[#allocation8 + $0xbb8] sm:$0xff]
        %v4101 = vld [vmem:[#allocation8 + $0xbc0] sm:$0xff]
        %v4102 = vld [vmem:[#allocation8 + $0xbc8] sm:$0xff]
        %v4103 = vld [vmem:[#allocation8 + $0xbd0] sm:$0xff]
        %v4104 = vld [vmem:[#allocation8 + $0xbd8] sm:$0xff]
        %v4105 = vld [vmem:[#allocation8 + $0xbe0] sm:$0xff]
        %v4106 = vld [vmem:[#allocation8 + $0xbe8] sm:$0xff]
        %v4107 = vld [vmem:[#allocation8 + $0xbf0] sm:$0xff]
        %v4108 = vld [vmem:[#allocation8 + $0xbf8] sm:$0xff]
        %v4109 = vld [vmem:[#allocation8 + $0xc00] sm:$0xff]
        %v4110 = vld [vmem:[#allocation8 + $0xc08] sm:$0xff]
        %v4111 = vld [vmem:[#allocation8 + $0xc10] sm:$0xff]
        %v4112 = vld [vmem:[#allocation8 + $0xc18] sm:$0xff]
        %v4113 = vld [vmem:[#allocation8 + $0xc20] sm:$0xff]
        %v4114 = vld [vmem:[#allocation8 + $0xc28] sm:$0xff]
        %v4115 = vld [vmem:[#allocation8 + $0xc30] sm:$0xff]
        %v4116 = vld [vmem:[#allocation8 + $0xc38] sm:$0xff]
        %v4117 = vld [vmem:[#allocation8 + $0xc40] sm:$0xff]
        %v4118 = vld [vmem:[#allocation8 + $0xc48] sm:$0xff]
        %v4119 = vld [vmem:[#allocation8 + $0xc50] sm:$0xff]
        %v4120 = vld [vmem:[#allocation8 + $0xc58] sm:$0xff]
        %v4121 = vld [vmem:[#allocation8 + $0xc60] sm:$0xff]
        %v4122 = vld [vmem:[#allocation8 + $0xc68] sm:$0xff]
        %v4123 = vld [vmem:[#allocation8 + $0xc70] sm:$0xff]
        %v4124 = vld [vmem:[#allocation8 + $0xc78] sm:$0xff]
        %v4125 = vld [vmem:[#allocation8 + $0xc80] sm:$0xff]
        %v4126 = vld [vmem:[#allocation8 + $0xc88] sm:$0xff]
        %v4127 = vld [vmem:[#allocation8 + $0xc90] sm:$0xff]
        %v4128 = vld [vmem:[#allocation8 + $0xc98] sm:$0xff]
        %v4129 = vld [vmem:[#allocation8 + $0xca0] sm:$0xff]
        %v4130 = vld [vmem:[#allocation8 + $0xca8] sm:$0xff]
        %v4131 = vld [vmem:[#allocation8 + $0xcb0] sm:$0xff]
        %v4132 = vld [vmem:[#allocation8 + $0xcb8] sm:$0xff]
        %v4133 = vld [vmem:[#allocation8 + $0xcc0] sm:$0xff]
        %v4134 = vld [vmem:[#allocation8 + $0xcc8] sm:$0xff]
        %v4135 = vld [vmem:[#allocation8 + $0xcd0] sm:$0xff]
        %v4136 = vld [vmem:[#allocation8 + $0xcd8] sm:$0xff]
        %v4137 = vld [vmem:[#allocation8 + $0xce0] sm:$0xff]
        %v4138 = vld [vmem:[#allocation8 + $0xce8] sm:$0xff]
        %v4139 = vld [vmem:[#allocation8 + $0xcf0] sm:$0xff]
        %v4140 = vld [vmem:[#allocation8 + $0xcf8] sm:$0xff]
        %v4141 = vld [vmem:[#allocation8 + $0xd00] sm:$0xff]
        %v4142 = vld [vmem:[#allocation8 + $0xd08] sm:$0xff]
        %v4143 = vld [vmem:[#allocation8 + $0xd10] sm:$0xff]
        %v4144 = vld [vmem:[#allocation8 + $0xd18] sm:$0xff]
        %v4145 = vld [vmem:[#allocation8 + $0xd20] sm:$0xff]
        %v4146 = vld [vmem:[#allocation8 + $0xd28] sm:$0xff]
        %v4147 = vld [vmem:[#allocation8 + $0xd30] sm:$0xff]
        %v4148 = vld [vmem:[#allocation8 + $0xd38] sm:$0xff]
        %v4149 = vld [vmem:[#allocation8 + $0xd40] sm:$0xff]
        %v4150 = vld [vmem:[#allocation8 + $0xd48] sm:$0xff]
        %v4151 = vld [vmem:[#allocation8 + $0xd50] sm:$0xff]
        %v4152 = vld [vmem:[#allocation8 + $0xd58] sm:$0xff]
        %v4153 = vld [vmem:[#allocation8 + $0xd60] sm:$0xff]
        %v4154 = vld [vmem:[#allocation8 + $0xd68] sm:$0xff]
        %v4155 = vld [vmem:[#allocation8 + $0xd70] sm:$0xff]
        %v4156 = vld [vmem:[#allocation8 + $0xd78] sm:$0xff]
        %v4157 = vld [vmem:[#allocation8 + $0xd80] sm:$0xff]
        %v4158 = vld [vmem:[#allocation8 + $0xd88] sm:$0xff]
        %v4159 = vld [vmem:[#allocation8 + $0xd90] sm:$0xff]
        %v4160 = vld [vmem:[#allocation8 + $0xd98] sm:$0xff]
        %v4161 = vld [vmem:[#allocation8 + $0xda0] sm:$0xff]
        %v4162 = vld [vmem:[#allocation8 + $0xda8] sm:$0xff]
        %v4163 = vld [vmem:[#allocation8 + $0xdb0] sm:$0xff]
        %v4164 = vld [vmem:[#allocation8 + $0xdb8] sm:$0xff]
        %v4165 = vld [vmem:[#allocation8 + $0xdc0] sm:$0xff]
        %v4166 = vld [vmem:[#allocation8 + $0xdc8] sm:$0xff]
        %v4167 = vld [vmem:[#allocation8 + $0xdd0] sm:$0xff]
        %v4168 = vld [vmem:[#allocation8 + $0xdd8] sm:$0xff]
        %v4169 = vld [vmem:[#allocation8 + $0xde0] sm:$0xff]
        %v4170 = vld [vmem:[#allocation8 + $0xde8] sm:$0xff]
        %v4171 = vld [vmem:[#allocation8 + $0xdf0] sm:$0xff]
        %v4172 = vld [vmem:[#allocation8 + $0xdf8] sm:$0xff]
        %v4173 = vld [vmem:[#allocation8 + $0xe00] sm:$0xff]
        %v4174 = vld [vmem:[#allocation8 + $0xe08] sm:$0xff]
        %v4175 = vld [vmem:[#allocation8 + $0xe10] sm:$0xff]
        %v4176 = vld [vmem:[#allocation8 + $0xe18] sm:$0xff]
        %v4177 = vld [vmem:[#allocation8 + $0xe20] sm:$0xff]
        %v4178 = vld [vmem:[#allocation8 + $0xe28] sm:$0xff]
        %v4179 = vld [vmem:[#allocation8 + $0xe30] sm:$0xff]
        %v4180 = vld [vmem:[#allocation8 + $0xe38] sm:$0xff]
        %v4181 = vld [vmem:[#allocation8 + $0xe40] sm:$0xff]
        %v4182 = vld [vmem:[#allocation8 + $0xe48] sm:$0xff]
        %v4183 = vld [vmem:[#allocation8 + $0xe50] sm:$0xff]
        %v4184 = vld [vmem:[#allocation8 + $0xe58] sm:$0xff]
        %v4185 = vld [vmem:[#allocation8 + $0xe60] sm:$0xff]
        %v4186 = vld [vmem:[#allocation8 + $0xe68] sm:$0xff]
        %v4187 = vld [vmem:[#allocation8 + $0xe70] sm:$0xff]
        %v4188 = vld [vmem:[#allocation8 + $0xe78] sm:$0xff]
        %v4189 = vld [vmem:[#allocation8 + $0xe80] sm:$0xff]
        %v4190 = vld [vmem:[#allocation8 + $0xe88] sm:$0xff]
        %v4191 = vld [vmem:[#allocation8 + $0xe90] sm:$0xff]
        %v4192 = vld [vmem:[#allocation8 + $0xe98] sm:$0xff]
        %v4193 = vld [vmem:[#allocation8 + $0xea0] sm:$0xff]
        %v4194 = vld [vmem:[#allocation8 + $0xea8] sm:$0xff]
        %v4195 = vld [vmem:[#allocation8 + $0xeb0] sm:$0xff]
        %v4196 = vld [vmem:[#allocation8 + $0xeb8] sm:$0xff]
        %v4197 = vld [vmem:[#allocation8 + $0xec0] sm:$0xff]
        %v4198 = vld [vmem:[#allocation8 + $0xec8] sm:$0xff]
        %v4199 = vld [vmem:[#allocation8 + $0xed0] sm:$0xff]
        %v4200 = vld [vmem:[#allocation8 + $0xed8] sm:$0xff]
        %v4201 = vld [vmem:[#allocation8 + $0xee0] sm:$0xff]
        %v4202 = vld [vmem:[#allocation8 + $0xee8] sm:$0xff]
        %v4203 = vld [vmem:[#allocation8 + $0xef0] sm:$0xff]
        %v4204 = vld [vmem:[#allocation8 + $0xef8] sm:$0xff]
        %v4205 = vld [vmem:[#allocation8 + $0xf00] sm:$0xff]
        %v4206 = vld [vmem:[#allocation8 + $0xf08] sm:$0xff]
        %v4207 = vld [vmem:[#allocation8 + $0xf10] sm:$0xff]
        %v4208 = vld [vmem:[#allocation8 + $0xf18] sm:$0xff]
        %v4209 = vld [vmem:[#allocation8 + $0xf20] sm:$0xff]
        %v4210 = vld [vmem:[#allocation8 + $0xf28] sm:$0xff]
        %v4211 = vld [vmem:[#allocation8 + $0xf30] sm:$0xff]
        %v4212 = vld [vmem:[#allocation8 + $0xf38] sm:$0xff]
        %v4213 = vld [vmem:[#allocation8 + $0xf40] sm:$0xff]
        %v4214 = vld [vmem:[#allocation8 + $0xf48] sm:$0xff]
        %v4215 = vld [vmem:[#allocation8 + $0xf50] sm:$0xff]
        %v4216 = vld [vmem:[#allocation8 + $0xf58] sm:$0xff]
        %v4217 = vld [vmem:[#allocation8 + $0xf60] sm:$0xff]
        %v4218 = vld [vmem:[#allocation8 + $0xf68] sm:$0xff]
        %v4219 = vld [vmem:[#allocation8 + $0xf70] sm:$0xff]
        %v4220 = vld [vmem:[#allocation8 + $0xf78] sm:$0xff]
        %v4221 = vld [vmem:[#allocation8 + $0xf80] sm:$0xff]
        %v4222 = vld [vmem:[#allocation8 + $0xf88] sm:$0xff]
        %v4223 = vld [vmem:[#allocation8 + $0xf90] sm:$0xff]
        %v4224 = vld [vmem:[#allocation8 + $0xf98] sm:$0xff]
        %v4225 = vld [vmem:[#allocation8 + $0xfa0] sm:$0xff]
        %v4226 = vld [vmem:[#allocation8 + $0xfa8] sm:$0xff]
        %v4227 = vld [vmem:[#allocation8 + $0xfb0] sm:$0xff]
        %v4228 = vld [vmem:[#allocation8 + $0xfb8] sm:$0xff]
        %v4229 = vld [vmem:[#allocation8 + $0xfc0] sm:$0xff]
        %v4230 = vld [vmem:[#allocation8 + $0xfc8] sm:$0xff]
        %v4231 = vld [vmem:[#allocation8 + $0xfd0] sm:$0xff]
        %v4232 = vld [vmem:[#allocation8 + $0xfd8] sm:$0xff]
        %v4233 = vld [vmem:[#allocation8 + $0xfe0] sm:$0xff]
        %v4234 = vld [vmem:[#allocation8 + $0xfe8] sm:$0xff]
        %v4235 = vld [vmem:[#allocation8 + $0xff0] sm:$0xff]
        %v4236 = vld [vmem:[#allocation8 + $0xff8] sm:$0xff]
        %v4237 = vld [vmem:[#allocation10] sm:$0xf]
        %v4239 = vlaneseq
        %v4240 = vshrl.u32 %v4239, 7
        %v4241 = vsub.s32 0, %v4240
        %v4242 = vrot.slane %v4237, %v4241
        %v4243 = vlaneseq
        %v4244 = vshrl.u32 %v4243, 7
        %v4245 = vsub.s32 1, %v4244
        %v4246 = vrot.slane %v4237, %v4245
        %v4247 = vlaneseq
        %v4248 = vshrl.u32 %v4247, 7
        %v4249 = vsub.s32 2, %v4248
        %v4250 = vrot.slane %v4237, %v4249
        %v4251 = vlaneseq
        %v4252 = vshrl.u32 %v4251, 7
        %v4253 = vsub.s32 3, %v4252
        %v4254 = vrot.slane %v4237, %v4253
        %4259 = vmatprep.subr.mxu0 %v3726
        %4260 = vmatpush1.msra.mxu0 %v3725
        %4261 = vmatprep.subr.mxu0 %v3730
        %4262 = vmatpush1.msra.mxu0 %v3729
        %4263 = vmatprep.subr.mxu0 %v3734
        %4264 = vmatpush1.msra.mxu0 %v3733
        %4265 = vmatprep.subr.mxu0 %v3738
        %4266 = vmatpush1.msra.mxu0 %v3737
        %4267 = vmatprep.subr.mxu0 %v3742
        %4268 = vmatpush1.msra.mxu0 %v3741
        %4269 = vmatprep.subr.mxu0 %v3746
        %4270 = vmatpush1.msra.mxu0 %v3745
        %4271 = vmatprep.subr.mxu0 %v3750
        %4272 = vmatpush1.msra.mxu0 %v3749
        %4273 = vmatprep.subr.mxu0 %v3754
        %4274 = vmatpush1.msra.mxu0 %v3753
        %4275 = vmatprep.subr.mxu0 %v3758
        %4276 = vmatpush1.msra.mxu0 %v3757
        %4277 = vmatprep.subr.mxu0 %v3762
        %4278 = vmatpush1.msra.mxu0 %v3761
        %4279 = vmatprep.subr.mxu0 %v3766
        %4280 = vmatpush1.msra.mxu0 %v3765
        %4281 = vmatprep.subr.mxu0 %v3770
        %4282 = vmatpush1.msra.mxu0 %v3769
        %4283 = vmatprep.subr.mxu0 %v3774
        %4284 = vmatpush1.msra.mxu0 %v3773
        %4285 = vmatprep.subr.mxu0 %v3778
        %4286 = vmatpush1.msra.mxu0 %v3777
        %4287 = vmatprep.subr.mxu0 %v3782
        %4288 = vmatpush1.msra.mxu0 %v3781
        %4289 = vmatprep.subr.mxu0 %v3786
        %4290 = vmatpush1.msra.mxu0 %v3785
        %4291 = vmatprep.subr.mxu0 %v3790
        %4292 = vmatpush1.msra.mxu0 %v3789
        %4293 = vmatprep.subr.mxu0 %v3794
        %4294 = vmatpush1.msra.mxu0 %v3793
        %4295 = vmatprep.subr.mxu0 %v3798
        %4296 = vmatpush1.msra.mxu0 %v3797
        %4297 = vmatprep.subr.mxu0 %v3802
        %4298 = vmatpush1.msra.mxu0 %v3801
        %4299 = vmatprep.subr.mxu0 %v3806
        %4300 = vmatpush1.msra.mxu0 %v3805
        %4301 = vmatprep.subr.mxu0 %v3810
        %4302 = vmatpush1.msra.mxu0 %v3809
        %4303 = vmatprep.subr.mxu0 %v3814
        %4304 = vmatpush1.msra.mxu0 %v3813
        %4305 = vmatprep.subr.mxu0 %v3818
        %4306 = vmatpush1.msra.mxu0 %v3817
        %4307 = vmatprep.subr.mxu0 %v3822
        %4308 = vmatpush1.msra.mxu0 %v3821
        %4309 = vmatprep.subr.mxu0 %v3826
        %4310 = vmatpush1.msra.mxu0 %v3825
        %4311 = vmatprep.subr.mxu0 %v3830
        %4312 = vmatpush1.msra.mxu0 %v3829
        %4313 = vmatprep.subr.mxu0 %v3834
        %4314 = vmatpush1.msra.mxu0 %v3833
        %4315 = vmatprep.subr.mxu0 %v3838
        %4316 = vmatpush1.msra.mxu0 %v3837
        %4317 = vmatprep.subr.mxu0 %v3842
        %4318 = vmatpush1.msra.mxu0 %v3841
        %4319 = vmatprep.subr.mxu0 %v3846
        %4320 = vmatpush1.msra.mxu0 %v3845
        %4321 = vmatprep.subr.mxu0 %v3850
        %4322 = vmatpush1.msra.mxu0 %v3849
        %4323 = vmatprep.mubr.f32.mxu0 %v3710
        %4324 = vmatmul.mubr.f32.gmra.mrb[0].mxu0 %v3709
        %v4325 = vpop.f32.mrb[0].mxu0
        %v4326 = vadd.f32 %v4242, %v4325
        %v4327 = vpop.f32.mrb[0].mxu0
        %v4328 = vadd.f32 %v4246, %v4327
        %4329 = vmatprep.mubr.f32.mxu0 %v3718
        %4330 = vmatmul.mubr.f32.gmra.mrb[0].mxu0 %v3717
        %v4331 = vpop.f32.mrb[0].mxu0
        %v4332 = vadd.f32 %v4242, %v4331
        %v4333 = vpop.f32.mrb[0].mxu0
        %v4334 = vadd.f32 %v4246, %v4333
        %4335 = vdwg.mxu0
        %4336 = vmatprep.subr.mxu0 %v3854
        %4337 = vmatpush1.msra.mxu0 %v3853
        %4338 = vmatprep.subr.mxu0 %v3858
        %4339 = vmatpush1.msra.mxu0 %v3857
        %4340 = vmatprep.subr.mxu0 %v3862
        %4341 = vmatpush1.msra.mxu0 %v3861
        %4342 = vmatprep.subr.mxu0 %v3866
        %4343 = vmatpush1.msra.mxu0 %v3865
        %4344 = vmatprep.subr.mxu0 %v3870
        %4345 = vmatpush1.msra.mxu0 %v3869
        %4346 = vmatprep.subr.mxu0 %v3874
        %4347 = vmatpush1.msra.mxu0 %v3873
        %4348 = vmatprep.subr.mxu0 %v3878
        %4349 = vmatpush1.msra.mxu0 %v3877
        %4350 = vmatprep.subr.mxu0 %v3882
        %4351 = vmatpush1.msra.mxu0 %v3881
        %4352 = vmatprep.subr.mxu0 %v3886
        %4353 = vmatpush1.msra.mxu0 %v3885
        %4354 = vmatprep.subr.mxu0 %v3890
        %4355 = vmatpush1.msra.mxu0 %v3889
        %4356 = vmatprep.subr.mxu0 %v3894
        %4357 = vmatpush1.msra.mxu0 %v3893
        %4358 = vmatprep.subr.mxu0 %v3898
        %4359 = vmatpush1.msra.mxu0 %v3897
        %4360 = vmatprep.subr.mxu0 %v3902
        %4361 = vmatpush1.msra.mxu0 %v3901
        %4362 = vmatprep.subr.mxu0 %v3906
        %4363 = vmatpush1.msra.mxu0 %v3905
        %4364 = vmatprep.subr.mxu0 %v3910
        %4365 = vmatpush1.msra.mxu0 %v3909
        %4366 = vmatprep.subr.mxu0 %v3914
        %4367 = vmatpush1.msra.mxu0 %v3913
        %4368 = vmatprep.subr.mxu0 %v3918
        %4369 = vmatpush1.msra.mxu0 %v3917
        %4370 = vmatprep.subr.mxu0 %v3922
        %4371 = vmatpush1.msra.mxu0 %v3921
        %4372 = vmatprep.subr.mxu0 %v3926
        %4373 = vmatpush1.msra.mxu0 %v3925
        %4374 = vmatprep.subr.mxu0 %v3930
        %4375 = vmatpush1.msra.mxu0 %v3929
        %4376 = vmatprep.subr.mxu0 %v3934
        %4377 = vmatpush1.msra.mxu0 %v3933
        %4378 = vmatprep.subr.mxu0 %v3938
        %4379 = vmatpush1.msra.mxu0 %v3937
        %4380 = vmatprep.subr.mxu0 %v3942
        %4381 = vmatpush1.msra.mxu0 %v3941
        %4382 = vmatprep.subr.mxu0 %v3946
        %4383 = vmatpush1.msra.mxu0 %v3945
        %4384 = vmatprep.subr.mxu0 %v3950
        %4385 = vmatpush1.msra.mxu0 %v3949
        %4386 = vmatprep.subr.mxu0 %v3954
        %4387 = vmatpush1.msra.mxu0 %v3953
        %4388 = vmatprep.subr.mxu0 %v3958
        %4389 = vmatpush1.msra.mxu0 %v3957
        %4390 = vmatprep.subr.mxu0 %v3962
        %4391 = vmatpush1.msra.mxu0 %v3961
        %4392 = vmatprep.subr.mxu0 %v3966
        %4393 = vmatpush1.msra.mxu0 %v3965
        %4394 = vmatprep.subr.mxu0 %v3970
        %4395 = vmatpush1.msra.mxu0 %v3969
        %4396 = vmatprep.subr.mxu0 %v3974
        %4397 = vmatpush1.msra.mxu0 %v3973
        %4398 = vmatprep.subr.mxu0 %v3978
        %4399 = vmatpush1.msra.mxu0 %v3977
        %4400 = vmatprep.mubr.f32.mxu0 %v3712
        %4401 = vmatmul.mubr.f32.gmra.mrb[0].mxu0 %v3711
        %v4402 = vpop.f32.mrb[0].mxu0
        %v4403 = vadd.f32 %v4326, %v4402
        %v4404 = vpop.f32.mrb[0].mxu0
        %v4405 = vadd.f32 %v4328, %v4404
        %4406 = vmatprep.mubr.f32.mxu0 %v3720
        %4407 = vmatmul.mubr.f32.gmra.mrb[0].mxu0 %v3719
        %v4408 = vpop.f32.mrb[0].mxu0
        %v4409 = vadd.f32 %v4332, %v4408
        %v4410 = vpop.f32.mrb[0].mxu0
        %v4411 = vadd.f32 %v4334, %v4410
        %4412 = vdwg.mxu0
        %4413 = vmatprep.subr.mxu0 %v3982
        %4414 = vmatpush1.msra.mxu0 %v3981
        %4415 = vmatprep.subr.mxu0 %v3986
        %4416 = vmatpush1.msra.mxu0 %v3985
        %4417 = vmatprep.subr.mxu0 %v3990
        %4418 = vmatpush1.msra.mxu0 %v3989
        %4419 = vmatprep.subr.mxu0 %v3994
        %4420 = vmatpush1.msra.mxu0 %v3993
        %4421 = vmatprep.subr.mxu0 %v3998
        %4422 = vmatpush1.msra.mxu0 %v3997
        %4423 = vmatprep.subr.mxu0 %v4002
        %4424 = vmatpush1.msra.mxu0 %v4001
        %4425 = vmatprep.subr.mxu0 %v4006
        %4426 = vmatpush1.msra.mxu0 %v4005
        %4427 = vmatprep.subr.mxu0 %v4010
        %4428 = vmatpush1.msra.mxu0 %v4009
        %4429 = vmatprep.subr.mxu0 %v4014
        %4430 = vmatpush1.msra.mxu0 %v4013
        %4431 = vmatprep.subr.mxu0 %v4018
        %4432 = vmatpush1.msra.mxu0 %v4017
        %4433 = vmatprep.subr.mxu0 %v4022
        %4434 = vmatpush1.msra.mxu0 %v4021
        %4435 = vmatprep.subr.mxu0 %v4026
        %4436 = vmatpush1.msra.mxu0 %v4025
        %4437 = vmatprep.subr.mxu0 %v4030
        %4438 = vmatpush1.msra.mxu0 %v4029
        %4439 = vmatprep.subr.mxu0 %v4034
        %4440 = vmatpush1.msra.mxu0 %v4033
        %4441 = vmatprep.subr.mxu0 %v4038
        %4442 = vmatpush1.msra.mxu0 %v4037
        %4443 = vmatprep.subr.mxu0 %v4042
        %4444 = vmatpush1.msra.mxu0 %v4041
        %4445 = vmatprep.subr.mxu0 %v4046
        %4446 = vmatpush1.msra.mxu0 %v4045
        %4447 = vmatprep.subr.mxu0 %v4050
        %4448 = vmatpush1.msra.mxu0 %v4049
        %4449 = vmatprep.subr.mxu0 %v4054
        %4450 = vmatpush1.msra.mxu0 %v4053
        %4451 = vmatprep.subr.mxu0 %v4058
        %4452 = vmatpush1.msra.mxu0 %v4057
        %4453 = vmatprep.subr.mxu0 %v4062
        %4454 = vmatpush1.msra.mxu0 %v4061
        %4455 = vmatprep.subr.mxu0 %v4066
        %4456 = vmatpush1.msra.mxu0 %v4065
        %4457 = vmatprep.subr.mxu0 %v4070
        %4458 = vmatpush1.msra.mxu0 %v4069
        %4459 = vmatprep.subr.mxu0 %v4074
        %4460 = vmatpush1.msra.mxu0 %v4073
        %4461 = vmatprep.subr.mxu0 %v4078
        %4462 = vmatpush1.msra.mxu0 %v4077
        %4463 = vmatprep.subr.mxu0 %v4082
        %4464 = vmatpush1.msra.mxu0 %v4081
        %4465 = vmatprep.subr.mxu0 %v4086
        %4466 = vmatpush1.msra.mxu0 %v4085
        %4467 = vmatprep.subr.mxu0 %v4090
        %4468 = vmatpush1.msra.mxu0 %v4089
        %4469 = vmatprep.subr.mxu0 %v4094
        %4470 = vmatpush1.msra.mxu0 %v4093
        %4471 = vmatprep.subr.mxu0 %v4098
        %4472 = vmatpush1.msra.mxu0 %v4097
        %4473 = vmatprep.subr.mxu0 %v4102
        %4474 = vmatpush1.msra.mxu0 %v4101
        %4475 = vmatprep.subr.mxu0 %v4106
        %4476 = vmatpush1.msra.mxu0 %v4105
        %4477 = vmatprep.mubr.f32.mxu0 %v3714
        %4478 = vmatmul.mubr.f32.gmra.mrb[0].mxu0 %v3713
        %v4479 = vpop.f32.mrb[0].mxu0
        %v4480 = vadd.f32 %v4403, %v4479
        %v4481 = vpop.f32.mrb[0].mxu0
        %v4482 = vadd.f32 %v4405, %v4481
        %4483 = vmatprep.mubr.f32.mxu0 %v3722
        %4484 = vmatmul.mubr.f32.gmra.mrb[0].mxu0 %v3721
        %v4485 = vpop.f32.mrb[0].mxu0
        %v4486 = vadd.f32 %v4409, %v4485
        %v4487 = vpop.f32.mrb[0].mxu0
        %v4488 = vadd.f32 %v4411, %v4487
        %4489 = vdwg.mxu0
        %4490 = vmatprep.subr.mxu0 %v4110
        %4491 = vmatpush1.msra.mxu0 %v4109
        %4492 = vmatprep.subr.mxu0 %v4114
        %4493 = vmatpush1.msra.mxu0 %v4113
        %4494 = vmatprep.subr.mxu0 %v4118
        %4495 = vmatpush1.msra.mxu0 %v4117
        %4496 = vmatprep.subr.mxu0 %v4122
        %4497 = vmatpush1.msra.mxu0 %v4121
        %4498 = vmatprep.subr.mxu0 %v4126
        %4499 = vmatpush1.msra.mxu0 %v4125
        %4500 = vmatprep.subr.mxu0 %v4130
        %4501 = vmatpush1.msra.mxu0 %v4129
        %4502 = vmatprep.subr.mxu0 %v4134
        %4503 = vmatpush1.msra.mxu0 %v4133
        %4504 = vmatprep.subr.mxu0 %v4138
        %4505 = vmatpush1.msra.mxu0 %v4137
        %4506 = vmatprep.subr.mxu0 %v4142
        %4507 = vmatpush1.msra.mxu0 %v4141
        %4508 = vmatprep.subr.mxu0 %v4146
        %4509 = vmatpush1.msra.mxu0 %v4145
        %4510 = vmatprep.subr.mxu0 %v4150
        %4511 = vmatpush1.msra.mxu0 %v4149
        %4512 = vmatprep.subr.mxu0 %v4154
        %4513 = vmatpush1.msra.mxu0 %v4153
        %4514 = vmatprep.subr.mxu0 %v4158
        %4515 = vmatpush1.msra.mxu0 %v4157
        %4516 = vmatprep.subr.mxu0 %v4162
        %4517 = vmatpush1.msra.mxu0 %v4161
        %4518 = vmatprep.subr.mxu0 %v4166
        %4519 = vmatpush1.msra.mxu0 %v4165
        %4520 = vmatprep.subr.mxu0 %v4170
        %4521 = vmatpush1.msra.mxu0 %v4169
        %4522 = vmatprep.subr.mxu0 %v4174
        %4523 = vmatpush1.msra.mxu0 %v4173
        %4524 = vmatprep.subr.mxu0 %v4178
        %4525 = vmatpush1.msra.mxu0 %v4177
        %4526 = vmatprep.subr.mxu0 %v4182
        %4527 = vmatpush1.msra.mxu0 %v4181
        %4528 = vmatprep.subr.mxu0 %v4186
        %4529 = vmatpush1.msra.mxu0 %v4185
        %4530 = vmatprep.subr.mxu0 %v4190
        %4531 = vmatpush1.msra.mxu0 %v4189
        %4532 = vmatprep.subr.mxu0 %v4194
        %4533 = vmatpush1.msra.mxu0 %v4193
        %4534 = vmatprep.subr.mxu0 %v4198
        %4535 = vmatpush1.msra.mxu0 %v4197
        %4536 = vmatprep.subr.mxu0 %v4202
        %4537 = vmatpush1.msra.mxu0 %v4201
        %4538 = vmatprep.subr.mxu0 %v4206
        %4539 = vmatpush1.msra.mxu0 %v4205
        %4540 = vmatprep.subr.mxu0 %v4210
        %4541 = vmatpush1.msra.mxu0 %v4209
        %4542 = vmatprep.subr.mxu0 %v4214
        %4543 = vmatpush1.msra.mxu0 %v4213
        %4544 = vmatprep.subr.mxu0 %v4218
        %4545 = vmatpush1.msra.mxu0 %v4217
        %4546 = vmatprep.subr.mxu0 %v4222
        %4547 = vmatpush1.msra.mxu0 %v4221
        %4548 = vmatprep.subr.mxu0 %v4226
        %4549 = vmatpush1.msra.mxu0 %v4225
        %4550 = vmatprep.subr.mxu0 %v4230
        %4551 = vmatpush1.msra.mxu0 %v4229
        %4552 = vmatprep.subr.mxu0 %v4234
        %4553 = vmatpush1.msra.mxu0 %v4233
        %4554 = vmatprep.mubr.f32.mxu0 %v3716
        %4555 = vmatmul.mubr.f32.gmra.mrb[0].mxu0 %v3715
        %v4556 = vpop.f32.mrb[0].mxu0
        %v4557 = vadd.f32 %v4480, %v4556
        %v4558 = vpop.f32.mrb[0].mxu0
        %v4559 = vadd.f32 %v4482, %v4558
        %4560 = vmatprep.mubr.f32.mxu0 %v3724
        %4561 = vmatmul.mubr.f32.gmra.mrb[0].mxu0 %v3723
        %v4562 = vpop.f32.mrb[0].mxu0
        %v4563 = vadd.f32 %v4486, %v4562
        %v4564 = vpop.f32.mrb[0].mxu0
        %v4565 = vadd.f32 %v4488, %v4564
        %4566 = vdwg.mxu0
        %4567 = vmatprep.subr.mxu0 %v3728
        %4568 = vmatpush1.msra.mxu0 %v3727
        %4569 = vmatprep.subr.mxu0 %v3732
        %4570 = vmatpush1.msra.mxu0 %v3731
        %4571 = vmatprep.subr.mxu0 %v3736
        %4572 = vmatpush1.msra.mxu0 %v3735
        %4573 = vmatprep.subr.mxu0 %v3740
        %4574 = vmatpush1.msra.mxu0 %v3739
        %4575 = vmatprep.subr.mxu0 %v3744
        %4576 = vmatpush1.msra.mxu0 %v3743
        %4577 = vmatprep.subr.mxu0 %v3748
        %4578 = vmatpush1.msra.mxu0 %v3747
        %4579 = vmatprep.subr.mxu0 %v3752
        %4580 = vmatpush1.msra.mxu0 %v3751
        %4581 = vmatprep.subr.mxu0 %v3756
        %4582 = vmatpush1.msra.mxu0 %v3755
        %4583 = vmatprep.subr.mxu0 %v3760
        %4584 = vmatpush1.msra.mxu0 %v3759
        %4585 = vmatprep.subr.mxu0 %v3764
        %4586 = vmatpush1.msra.mxu0 %v3763
        %4587 = vmatprep.subr.mxu0 %v3768
        %4588 = vmatpush1.msra.mxu0 %v3767
        %4589 = vmatprep.subr.mxu0 %v3772
        %4590 = vmatpush1.msra.mxu0 %v3771
        %4591 = vmatprep.subr.mxu0 %v3776
        %4592 = vmatpush1.msra.mxu0 %v3775
        %4593 = vmatprep.subr.mxu0 %v3780
        %4594 = vmatpush1.msra.mxu0 %v3779
        %4595 = vmatprep.subr.mxu0 %v3784
        %4596 = vmatpush1.msra.mxu0 %v3783
        %4597 = vmatprep.subr.mxu0 %v3788
        %4598 = vmatpush1.msra.mxu0 %v3787
        %4599 = vmatprep.subr.mxu0 %v3792
        %4600 = vmatpush1.msra.mxu0 %v3791
        %4601 = vmatprep.subr.mxu0 %v3796
        %4602 = vmatpush1.msra.mxu0 %v3795
        %4603 = vmatprep.subr.mxu0 %v3800
        %4604 = vmatpush1.msra.mxu0 %v3799
        %4605 = vmatprep.subr.mxu0 %v3804
        %4606 = vmatpush1.msra.mxu0 %v3803
        %4607 = vmatprep.subr.mxu0 %v3808
        %4608 = vmatpush1.msra.mxu0 %v3807
        %4609 = vmatprep.subr.mxu0 %v3812
        %4610 = vmatpush1.msra.mxu0 %v3811
        %4611 = vmatprep.subr.mxu0 %v3816
        %4612 = vmatpush1.msra.mxu0 %v3815
        %4613 = vmatprep.subr.mxu0 %v3820
        %4614 = vmatpush1.msra.mxu0 %v3819
        %4615 = vmatprep.subr.mxu0 %v3824
        %4616 = vmatpush1.msra.mxu0 %v3823
        %4617 = vmatprep.subr.mxu0 %v3828
        %4618 = vmatpush1.msra.mxu0 %v3827
        %4619 = vmatprep.subr.mxu0 %v3832
        %4620 = vmatpush1.msra.mxu0 %v3831
        %4621 = vmatprep.subr.mxu0 %v3836
        %4622 = vmatpush1.msra.mxu0 %v3835
        %4623 = vmatprep.subr.mxu0 %v3840
        %4624 = vmatpush1.msra.mxu0 %v3839
        %4625 = vmatprep.subr.mxu0 %v3844
        %4626 = vmatpush1.msra.mxu0 %v3843
        %4627 = vmatprep.subr.mxu0 %v3848
        %4628 = vmatpush1.msra.mxu0 %v3847
        %4629 = vmatprep.subr.mxu0 %v3852
        %4630 = vmatpush1.msra.mxu0 %v3851
        %4631 = vmatprep.mubr.f32.mxu0 %v3710
        %4632 = vmatmul.mubr.f32.gmra.mrb[0].mxu0 %v3709
        %v4633 = vpop.f32.mrb[0].mxu0
        %v4634 = vadd.f32 %v4250, %v4633
        %v4635 = vpop.f32.mrb[0].mxu0
        %v4636 = vadd.f32 %v4254, %v4635
        %4637 = vmatprep.mubr.f32.mxu0 %v3718
        %4638 = vmatmul.mubr.f32.gmra.mrb[0].mxu0 %v3717
        %v4639 = vpop.f32.mrb[0].mxu0
        %v4640 = vadd.f32 %v4250, %v4639
        %v4641 = vpop.f32.mrb[0].mxu0
        %v4642 = vadd.f32 %v4254, %v4641
        %4643 = vdwg.mxu0
        %4644 = vmatprep.subr.mxu0 %v3856
        %4645 = vmatpush1.msra.mxu0 %v3855
        %4646 = vmatprep.subr.mxu0 %v3860
        %4647 = vmatpush1.msra.mxu0 %v3859
        %4648 = vmatprep.subr.mxu0 %v3864
        %4649 = vmatpush1.msra.mxu0 %v3863
        %4650 = vmatprep.subr.mxu0 %v3868
        %4651 = vmatpush1.msra.mxu0 %v3867
        %4652 = vmatprep.subr.mxu0 %v3872
        %4653 = vmatpush1.msra.mxu0 %v3871
        %4654 = vmatprep.subr.mxu0 %v3876
        %4655 = vmatpush1.msra.mxu0 %v3875
        %4656 = vmatprep.subr.mxu0 %v3880
        %4657 = vmatpush1.msra.mxu0 %v3879
        %4658 = vmatprep.subr.mxu0 %v3884
        %4659 = vmatpush1.msra.mxu0 %v3883
        %4660 = vmatprep.subr.mxu0 %v3888
        %4661 = vmatpush1.msra.mxu0 %v3887
        %4662 = vmatprep.subr.mxu0 %v3892
        %4663 = vmatpush1.msra.mxu0 %v3891
        %4664 = vmatprep.subr.mxu0 %v3896
        %4665 = vmatpush1.msra.mxu0 %v3895
        %4666 = vmatprep.subr.mxu0 %v3900
        %4667 = vmatpush1.msra.mxu0 %v3899
        %4668 = vmatprep.subr.mxu0 %v3904
        %4669 = vmatpush1.msra.mxu0 %v3903
        %4670 = vmatprep.subr.mxu0 %v3908
        %4671 = vmatpush1.msra.mxu0 %v3907
        %4672 = vmatprep.subr.mxu0 %v3912
        %4673 = vmatpush1.msra.mxu0 %v3911
        %4674 = vmatprep.subr.mxu0 %v3916
        %4675 = vmatpush1.msra.mxu0 %v3915
        %4676 = vmatprep.subr.mxu0 %v3920
        %4677 = vmatpush1.msra.mxu0 %v3919
        %4678 = vmatprep.subr.mxu0 %v3924
        %4679 = vmatpush1.msra.mxu0 %v3923
        %4680 = vmatprep.subr.mxu0 %v3928
        %4681 = vmatpush1.msra.mxu0 %v3927
        %4682 = vmatprep.subr.mxu0 %v3932
        %4683 = vmatpush1.msra.mxu0 %v3931
        %4684 = vmatprep.subr.mxu0 %v3936
        %4685 = vmatpush1.msra.mxu0 %v3935
        %4686 = vmatprep.subr.mxu0 %v3940
        %4687 = vmatpush1.msra.mxu0 %v3939
        %4688 = vmatprep.subr.mxu0 %v3944
        %4689 = vmatpush1.msra.mxu0 %v3943
        %4690 = vmatprep.subr.mxu0 %v3948
        %4691 = vmatpush1.msra.mxu0 %v3947
        %4692 = vmatprep.subr.mxu0 %v3952
        %4693 = vmatpush1.msra.mxu0 %v3951
        %4694 = vmatprep.subr.mxu0 %v3956
        %4695 = vmatpush1.msra.mxu0 %v3955
        %4696 = vmatprep.subr.mxu0 %v3960
        %4697 = vmatpush1.msra.mxu0 %v3959
        %4698 = vmatprep.subr.mxu0 %v3964
        %4699 = vmatpush1.msra.mxu0 %v3963
        %4700 = vmatprep.subr.mxu0 %v3968
        %4701 = vmatpush1.msra.mxu0 %v3967
        %4702 = vmatprep.subr.mxu0 %v3972
        %4703 = vmatpush1.msra.mxu0 %v3971
        %4704 = vmatprep.subr.mxu0 %v3976
        %4705 = vmatpush1.msra.mxu0 %v3975
        %4706 = vmatprep.subr.mxu0 %v3980
        %4707 = vmatpush1.msra.mxu0 %v3979
        %4708 = vmatprep.mubr.f32.mxu0 %v3712
        %4709 = vmatmul.mubr.f32.gmra.mrb[0].mxu0 %v3711
        %v4710 = vpop.f32.mrb[0].mxu0
        %v4711 = vadd.f32 %v4634, %v4710
        %v4712 = vpop.f32.mrb[0].mxu0
        %v4713 = vadd.f32 %v4636, %v4712
        %4714 = vmatprep.mubr.f32.mxu0 %v3720
        %4715 = vmatmul.mubr.f32.gmra.mrb[0].mxu0 %v3719
        %v4716 = vpop.f32.mrb[0].mxu0
        %v4717 = vadd.f32 %v4640, %v4716
        %v4718 = vpop.f32.mrb[0].mxu0
        %v4719 = vadd.f32 %v4642, %v4718
        %4720 = vdwg.mxu0
        %4721 = vmatprep.subr.mxu0 %v3984
        %4722 = vmatpush1.msra.mxu0 %v3983
        %4723 = vmatprep.subr.mxu0 %v3988
        %4724 = vmatpush1.msra.mxu0 %v3987
        %4725 = vmatprep.subr.mxu0 %v3992
        %4726 = vmatpush1.msra.mxu0 %v3991
        %4727 = vmatprep.subr.mxu0 %v3996
        %4728 = vmatpush1.msra.mxu0 %v3995
        %4729 = vmatprep.subr.mxu0 %v4000
        %4730 = vmatpush1.msra.mxu0 %v3999
        %4731 = vmatprep.subr.mxu0 %v4004
        %4732 = vmatpush1.msra.mxu0 %v4003
        %4733 = vmatprep.subr.mxu0 %v4008
        %4734 = vmatpush1.msra.mxu0 %v4007
        %4735 = vmatprep.subr.mxu0 %v4012
        %4736 = vmatpush1.msra.mxu0 %v4011
        %4737 = vmatprep.subr.mxu0 %v4016
        %4738 = vmatpush1.msra.mxu0 %v4015
        %4739 = vmatprep.subr.mxu0 %v4020
        %4740 = vmatpush1.msra.mxu0 %v4019
        %4741 = vmatprep.subr.mxu0 %v4024
        %4742 = vmatpush1.msra.mxu0 %v4023
        %4743 = vmatprep.subr.mxu0 %v4028
        %4744 = vmatpush1.msra.mxu0 %v4027
        %4745 = vmatprep.subr.mxu0 %v4032
        %4746 = vmatpush1.msra.mxu0 %v4031
        %4747 = vmatprep.subr.mxu0 %v4036
        %4748 = vmatpush1.msra.mxu0 %v4035
        %4749 = vmatprep.subr.mxu0 %v4040
        %4750 = vmatpush1.msra.mxu0 %v4039
        %4751 = vmatprep.subr.mxu0 %v4044
        %4752 = vmatpush1.msra.mxu0 %v4043
        %4753 = vmatprep.subr.mxu0 %v4048
        %4754 = vmatpush1.msra.mxu0 %v4047
        %4755 = vmatprep.subr.mxu0 %v4052
        %4756 = vmatpush1.msra.mxu0 %v4051
        %4757 = vmatprep.subr.mxu0 %v4056
        %4758 = vmatpush1.msra.mxu0 %v4055
        %4759 = vmatprep.subr.mxu0 %v4060
        %4760 = vmatpush1.msra.mxu0 %v4059
        %4761 = vmatprep.subr.mxu0 %v4064
        %4762 = vmatpush1.msra.mxu0 %v4063
        %4763 = vmatprep.subr.mxu0 %v4068
        %4764 = vmatpush1.msra.mxu0 %v4067
        %4765 = vmatprep.subr.mxu0 %v4072
        %4766 = vmatpush1.msra.mxu0 %v4071
        %4767 = vmatprep.subr.mxu0 %v4076
        %4768 = vmatpush1.msra.mxu0 %v4075
        %4769 = vmatprep.subr.mxu0 %v4080
        %4770 = vmatpush1.msra.mxu0 %v4079
        %4771 = vmatprep.subr.mxu0 %v4084
        %4772 = vmatpush1.msra.mxu0 %v4083
        %4773 = vmatprep.subr.mxu0 %v4088
        %4774 = vmatpush1.msra.mxu0 %v4087
        %4775 = vmatprep.subr.mxu0 %v4092
        %4776 = vmatpush1.msra.mxu0 %v4091
        %4777 = vmatprep.subr.mxu0 %v4096
        %4778 = vmatpush1.msra.mxu0 %v4095
        %4779 = vmatprep.subr.mxu0 %v4100
        %4780 = vmatpush1.msra.mxu0 %v4099
        %4781 = vmatprep.subr.mxu0 %v4104
        %4782 = vmatpush1.msra.mxu0 %v4103
        %4783 = vmatprep.subr.mxu0 %v4108
        %4784 = vmatpush1.msra.mxu0 %v4107
        %4785 = vmatprep.mubr.f32.mxu0 %v3714
        %4786 = vmatmul.mubr.f32.gmra.mrb[0].mxu0 %v3713
        %v4787 = vpop.f32.mrb[0].mxu0
        %v4788 = vadd.f32 %v4711, %v4787
        %v4789 = vpop.f32.mrb[0].mxu0
        %v4790 = vadd.f32 %v4713, %v4789
        %4791 = vmatprep.mubr.f32.mxu0 %v3722
        %4792 = vmatmul.mubr.f32.gmra.mrb[0].mxu0 %v3721
        %v4793 = vpop.f32.mrb[0].mxu0
        %v4794 = vadd.f32 %v4717, %v4793
        %v4795 = vpop.f32.mrb[0].mxu0
        %v4796 = vadd.f32 %v4719, %v4795
        %4797 = vdwg.mxu0
        %4798 = vmatprep.subr.mxu0 %v4112
        %4799 = vmatpush1.msra.mxu0 %v4111
        %4800 = vmatprep.subr.mxu0 %v4116
        %4801 = vmatpush1.msra.mxu0 %v4115
        %4802 = vmatprep.subr.mxu0 %v4120
        %4803 = vmatpush1.msra.mxu0 %v4119
        %4804 = vmatprep.subr.mxu0 %v4124
        %4805 = vmatpush1.msra.mxu0 %v4123
        %4806 = vmatprep.subr.mxu0 %v4128
        %4807 = vmatpush1.msra.mxu0 %v4127
        %4808 = vmatprep.subr.mxu0 %v4132
        %4809 = vmatpush1.msra.mxu0 %v4131
        %4810 = vmatprep.subr.mxu0 %v4136
        %4811 = vmatpush1.msra.mxu0 %v4135
        %4812 = vmatprep.subr.mxu0 %v4140
        %4813 = vmatpush1.msra.mxu0 %v4139
        %4814 = vmatprep.subr.mxu0 %v4144
        %4815 = vmatpush1.msra.mxu0 %v4143
        %4816 = vmatprep.subr.mxu0 %v4148
        %4817 = vmatpush1.msra.mxu0 %v4147
        %4818 = vmatprep.subr.mxu0 %v4152
        %4819 = vmatpush1.msra.mxu0 %v4151
        %4820 = vmatprep.subr.mxu0 %v4156
        %4821 = vmatpush1.msra.mxu0 %v4155
        %4822 = vmatprep.subr.mxu0 %v4160
        %4823 = vmatpush1.msra.mxu0 %v4159
        %4824 = vmatprep.subr.mxu0 %v4164
        %4825 = vmatpush1.msra.mxu0 %v4163
        %4826 = vmatprep.subr.mxu0 %v4168
        %4827 = vmatpush1.msra.mxu0 %v4167
        %4828 = vmatprep.subr.mxu0 %v4172
        %4829 = vmatpush1.msra.mxu0 %v4171
        %4830 = vmatprep.subr.mxu0 %v4176
        %4831 = vmatpush1.msra.mxu0 %v4175
        %4832 = vmatprep.subr.mxu0 %v4180
        %4833 = vmatpush1.msra.mxu0 %v4179
        %4834 = vmatprep.subr.mxu0 %v4184
        %4835 = vmatpush1.msra.mxu0 %v4183
        %4836 = vmatprep.subr.mxu0 %v4188
        %4837 = vmatpush1.msra.mxu0 %v4187
        %4838 = vmatprep.subr.mxu0 %v4192
        %4839 = vmatpush1.msra.mxu0 %v4191
        %4840 = vmatprep.subr.mxu0 %v4196
        %4841 = vmatpush1.msra.mxu0 %v4195
        %4842 = vmatprep.subr.mxu0 %v4200
        %4843 = vmatpush1.msra.mxu0 %v4199
        %4844 = vmatprep.subr.mxu0 %v4204
        %4845 = vmatpush1.msra.mxu0 %v4203
        %4846 = vmatprep.subr.mxu0 %v4208
        %4847 = vmatpush1.msra.mxu0 %v4207
        %4848 = vmatprep.subr.mxu0 %v4212
        %4849 = vmatpush1.msra.mxu0 %v4211
        %4850 = vmatprep.subr.mxu0 %v4216
        %4851 = vmatpush1.msra.mxu0 %v4215
        %4852 = vmatprep.subr.mxu0 %v4220
        %4853 = vmatpush1.msra.mxu0 %v4219
        %4854 = vmatprep.subr.mxu0 %v4224
        %4855 = vmatpush1.msra.mxu0 %v4223
        %4856 = vmatprep.subr.mxu0 %v4228
        %4857 = vmatpush1.msra.mxu0 %v4227
        %4858 = vmatprep.subr.mxu0 %v4232
        %4859 = vmatpush1.msra.mxu0 %v4231
        %4860 = vmatprep.subr.mxu0 %v4236
        %4861 = vmatpush1.msra.mxu0 %v4235
        %4862 = vmatprep.mubr.f32.mxu0 %v3716
        %4863 = vmatmul.mubr.f32.gmra.mrb[0].mxu0 %v3715
        %v4864 = vpop.f32.mrb[0].mxu0
        %v4865 = vadd.f32 %v4788, %v4864
        %v4866 = vpop.f32.mrb[0].mxu0
        %v4867 = vadd.f32 %v4790, %v4866
        %4868 = vmatprep.mubr.f32.mxu0 %v3724
        %4869 = vmatmul.mubr.f32.gmra.mrb[0].mxu0 %v3723
        %v4870 = vpop.f32.mrb[0].mxu0
        %v4871 = vadd.f32 %v4794, %v4870
        %v4872 = vpop.f32.mrb[0].mxu0
        %v4873 = vadd.f32 %v4796, %v4872
        %4874 = vdwg.mxu0
        %v4875 = vmax.f32 %v4557, 0.0
        %v4876 = vmax.f32 %v4559, 0.0
        %v4877 = vmax.f32 %v4865, 0.0
        %v4878 = vmax.f32 %v4867, 0.0
        %v4879 = vmax.f32 %v4563, 0.0
        %v4880 = vmax.f32 %v4565, 0.0
        %v4881 = vmax.f32 %v4871, 0.0
        %v4882 = vmax.f32 %v4873, 0.0
        %v4883 = vld [vmem:[#allocation11] sm:$0xff]
        %v4884 = vld [vmem:[#allocation11 + $0x8] sm:$0xff]
        %v4885 = vld [vmem:[#allocation11 + $0x10] sm:$0xff]
        %v4886 = vld [vmem:[#allocation11 + $0x18] sm:$0xff]
        %v4887 = vld [vmem:[#allocation11 + $0x20] sm:$0xff]
        %v4888 = vld [vmem:[#allocation11 + $0x28] sm:$0xff]
        %v4889 = vld [vmem:[#allocation11 + $0x30] sm:$0xff]
        %v4890 = vld [vmem:[#allocation11 + $0x38] sm:$0xff]
        %v4891 = vld [vmem:[#allocation11 + $0x40] sm:$0xff]
        %v4892 = vld [vmem:[#allocation11 + $0x48] sm:$0xff]
        %v4893 = vld [vmem:[#allocation11 + $0x50] sm:$0xff]
        %v4894 = vld [vmem:[#allocation11 + $0x58] sm:$0xff]
        %v4895 = vld [vmem:[#allocation11 + $0x60] sm:$0xff]
        %v4896 = vld [vmem:[#allocation11 + $0x68] sm:$0xff]
        %v4897 = vld [vmem:[#allocation11 + $0x70] sm:$0xff]
        %v4898 = vld [vmem:[#allocation11 + $0x78] sm:$0xff]
        %v4899 = vld [vmem:[#allocation11 + $0x80] sm:$0xff]
        %v4900 = vld [vmem:[#allocation11 + $0x88] sm:$0xff]
        %v4901 = vld [vmem:[#allocation11 + $0x90] sm:$0xff]
        %v4902 = vld [vmem:[#allocation11 + $0x98] sm:$0xff]
        %v4903 = vld [vmem:[#allocation11 + $0xa0] sm:$0xff]
        %v4904 = vld [vmem:[#allocation11 + $0xa8] sm:$0xff]
        %v4905 = vld [vmem:[#allocation11 + $0xb0] sm:$0xff]
        %v4906 = vld [vmem:[#allocation11 + $0xb8] sm:$0xff]
        %v4907 = vld [vmem:[#allocation11 + $0xc0] sm:$0xff]
        %v4908 = vld [vmem:[#allocation11 + $0xc8] sm:$0xff]
        %v4909 = vld [vmem:[#allocation11 + $0xd0] sm:$0xff]
        %v4910 = vld [vmem:[#allocation11 + $0xd8] sm:$0xff]
        %v4911 = vld [vmem:[#allocation11 + $0xe0] sm:$0xff]
        %v4912 = vld [vmem:[#allocation11 + $0xe8] sm:$0xff]
        %v4913 = vld [vmem:[#allocation11 + $0xf0] sm:$0xff]
        %v4914 = vld [vmem:[#allocation11 + $0xf8] sm:$0xff]
        %v4915 = vld [vmem:[#allocation11 + $0x100] sm:$0xff]
        %v4916 = vld [vmem:[#allocation11 + $0x108] sm:$0xff]
        %v4917 = vld [vmem:[#allocation11 + $0x110] sm:$0xff]
        %v4918 = vld [vmem:[#allocation11 + $0x118] sm:$0xff]
        %v4919 = vld [vmem:[#allocation11 + $0x120] sm:$0xff]
        %v4920 = vld [vmem:[#allocation11 + $0x128] sm:$0xff]
        %v4921 = vld [vmem:[#allocation11 + $0x130] sm:$0xff]
        %v4922 = vld [vmem:[#allocation11 + $0x138] sm:$0xff]
        %v4923 = vld [vmem:[#allocation11 + $0x140] sm:$0xff]
        %v4924 = vld [vmem:[#allocation11 + $0x148] sm:$0xff]
        %v4925 = vld [vmem:[#allocation11 + $0x150] sm:$0xff]
        %v4926 = vld [vmem:[#allocation11 + $0x158] sm:$0xff]
        %v4927 = vld [vmem:[#allocation11 + $0x160] sm:$0xff]
        %v4928 = vld [vmem:[#allocation11 + $0x168] sm:$0xff]
        %v4929 = vld [vmem:[#allocation11 + $0x170] sm:$0xff]
        %v4930 = vld [vmem:[#allocation11 + $0x178] sm:$0xff]
        %v4931 = vld [vmem:[#allocation11 + $0x180] sm:$0xff]
        %v4932 = vld [vmem:[#allocation11 + $0x188] sm:$0xff]
        %v4933 = vld [vmem:[#allocation11 + $0x190] sm:$0xff]
        %v4934 = vld [vmem:[#allocation11 + $0x198] sm:$0xff]
        %v4935 = vld [vmem:[#allocation11 + $0x1a0] sm:$0xff]
        %v4936 = vld [vmem:[#allocation11 + $0x1a8] sm:$0xff]
        %v4937 = vld [vmem:[#allocation11 + $0x1b0] sm:$0xff]
        %v4938 = vld [vmem:[#allocation11 + $0x1b8] sm:$0xff]
        %v4939 = vld [vmem:[#allocation11 + $0x1c0] sm:$0xff]
        %v4940 = vld [vmem:[#allocation11 + $0x1c8] sm:$0xff]
        %v4941 = vld [vmem:[#allocation11 + $0x1d0] sm:$0xff]
        %v4942 = vld [vmem:[#allocation11 + $0x1d8] sm:$0xff]
        %v4943 = vld [vmem:[#allocation11 + $0x1e0] sm:$0xff]
        %v4944 = vld [vmem:[#allocation11 + $0x1e8] sm:$0xff]
        %v4945 = vld [vmem:[#allocation11 + $0x1f0] sm:$0xff]
        %v4946 = vld [vmem:[#allocation11 + $0x1f8] sm:$0xff]
        %v4947 = vld [vmem:[#allocation11 + $0x200] sm:$0xff]
        %v4948 = vld [vmem:[#allocation11 + $0x208] sm:$0xff]
        %v4949 = vld [vmem:[#allocation11 + $0x210] sm:$0xff]
        %v4950 = vld [vmem:[#allocation11 + $0x218] sm:$0xff]
        %v4951 = vld [vmem:[#allocation11 + $0x220] sm:$0xff]
        %v4952 = vld [vmem:[#allocation11 + $0x228] sm:$0xff]
        %v4953 = vld [vmem:[#allocation11 + $0x230] sm:$0xff]
        %v4954 = vld [vmem:[#allocation11 + $0x238] sm:$0xff]
        %v4955 = vld [vmem:[#allocation11 + $0x240] sm:$0xff]
        %v4956 = vld [vmem:[#allocation11 + $0x248] sm:$0xff]
        %v4957 = vld [vmem:[#allocation11 + $0x250] sm:$0xff]
        %v4958 = vld [vmem:[#allocation11 + $0x258] sm:$0xff]
        %v4959 = vld [vmem:[#allocation11 + $0x260] sm:$0xff]
        %v4960 = vld [vmem:[#allocation11 + $0x268] sm:$0xff]
        %v4961 = vld [vmem:[#allocation11 + $0x270] sm:$0xff]
        %v4962 = vld [vmem:[#allocation11 + $0x278] sm:$0xff]
        %v4963 = vld [vmem:[#allocation11 + $0x280] sm:$0xff]
        %v4964 = vld [vmem:[#allocation11 + $0x288] sm:$0xff]
        %v4965 = vld [vmem:[#allocation11 + $0x290] sm:$0xff]
        %v4966 = vld [vmem:[#allocation11 + $0x298] sm:$0xff]
        %v4967 = vld [vmem:[#allocation11 + $0x2a0] sm:$0xff]
        %v4968 = vld [vmem:[#allocation11 + $0x2a8] sm:$0xff]
        %v4969 = vld [vmem:[#allocation11 + $0x2b0] sm:$0xff]
        %v4970 = vld [vmem:[#allocation11 + $0x2b8] sm:$0xff]
        %v4971 = vld [vmem:[#allocation11 + $0x2c0] sm:$0xff]
        %v4972 = vld [vmem:[#allocation11 + $0x2c8] sm:$0xff]
        %v4973 = vld [vmem:[#allocation11 + $0x2d0] sm:$0xff]
        %v4974 = vld [vmem:[#allocation11 + $0x2d8] sm:$0xff]
        %v4975 = vld [vmem:[#allocation11 + $0x2e0] sm:$0xff]
        %v4976 = vld [vmem:[#allocation11 + $0x2e8] sm:$0xff]
        %v4977 = vld [vmem:[#allocation11 + $0x2f0] sm:$0xff]
        %v4978 = vld [vmem:[#allocation11 + $0x2f8] sm:$0xff]
        %v4979 = vld [vmem:[#allocation11 + $0x300] sm:$0xff]
        %v4980 = vld [vmem:[#allocation11 + $0x308] sm:$0xff]
        %v4981 = vld [vmem:[#allocation11 + $0x310] sm:$0xff]
        %v4982 = vld [vmem:[#allocation11 + $0x318] sm:$0xff]
        %v4983 = vld [vmem:[#allocation11 + $0x320] sm:$0xff]
        %v4984 = vld [vmem:[#allocation11 + $0x328] sm:$0xff]
        %v4985 = vld [vmem:[#allocation11 + $0x330] sm:$0xff]
        %v4986 = vld [vmem:[#allocation11 + $0x338] sm:$0xff]
        %v4987 = vld [vmem:[#allocation11 + $0x340] sm:$0xff]
        %v4988 = vld [vmem:[#allocation11 + $0x348] sm:$0xff]
        %v4989 = vld [vmem:[#allocation11 + $0x350] sm:$0xff]
        %v4990 = vld [vmem:[#allocation11 + $0x358] sm:$0xff]
        %v4991 = vld [vmem:[#allocation11 + $0x360] sm:$0xff]
        %v4992 = vld [vmem:[#allocation11 + $0x368] sm:$0xff]
        %v4993 = vld [vmem:[#allocation11 + $0x370] sm:$0xff]
        %v4994 = vld [vmem:[#allocation11 + $0x378] sm:$0xff]
        %v4995 = vld [vmem:[#allocation11 + $0x380] sm:$0xff]
        %v4996 = vld [vmem:[#allocation11 + $0x388] sm:$0xff]
        %v4997 = vld [vmem:[#allocation11 + $0x390] sm:$0xff]
        %v4998 = vld [vmem:[#allocation11 + $0x398] sm:$0xff]
        %v4999 = vld [vmem:[#allocation11 + $0x3a0] sm:$0xff]
        %v5000 = vld [vmem:[#allocation11 + $0x3a8] sm:$0xff]
        %v5001 = vld [vmem:[#allocation11 + $0x3b0] sm:$0xff]
        %v5002 = vld [vmem:[#allocation11 + $0x3b8] sm:$0xff]
        %v5003 = vld [vmem:[#allocation11 + $0x3c0] sm:$0xff]
        %v5004 = vld [vmem:[#allocation11 + $0x3c8] sm:$0xff]
        %v5005 = vld [vmem:[#allocation11 + $0x3d0] sm:$0xff]
        %v5006 = vld [vmem:[#allocation11 + $0x3d8] sm:$0xff]
        %v5007 = vld [vmem:[#allocation11 + $0x3e0] sm:$0xff]
        %v5008 = vld [vmem:[#allocation11 + $0x3e8] sm:$0xff]
        %v5009 = vld [vmem:[#allocation11 + $0x3f0] sm:$0xff]
        %v5010 = vld [vmem:[#allocation11 + $0x3f8] sm:$0xff]
        %v5011 = vld [vmem:[#allocation13] sm:$0x3]
        %v5013 = vlaneseq
        %v5014 = vshrl.u32 %v5013, 7
        %v5015 = vsub.s32 0, %v5014
        %v5016 = vrot.slane %v5011, %v5015
        %v5017 = vlaneseq
        %v5018 = vshrl.u32 %v5017, 7
        %v5019 = vsub.s32 1, %v5018
        %v5020 = vrot.slane %v5011, %v5019
        %5023 = vmatprep.subr.mxu0 %v4884
        %5024 = vmatpush1.msra.mxu0 %v4883
        %5025 = vmatprep.subr.mxu0 %v4886
        %5026 = vmatpush1.msra.mxu0 %v4885
        %5027 = vmatprep.subr.mxu0 %v4888
        %5028 = vmatpush1.msra.mxu0 %v4887
        %5029 = vmatprep.subr.mxu0 %v4890
        %5030 = vmatpush1.msra.mxu0 %v4889
        %5031 = vmatprep.subr.mxu0 %v4892
        %5032 = vmatpush1.msra.mxu0 %v4891
        %5033 = vmatprep.subr.mxu0 %v4894
        %5034 = vmatpush1.msra.mxu0 %v4893
        %5035 = vmatprep.subr.mxu0 %v4896
        %5036 = vmatpush1.msra.mxu0 %v4895
        %5037 = vmatprep.subr.mxu0 %v4898
        %5038 = vmatpush1.msra.mxu0 %v4897
        %5039 = vmatprep.subr.mxu0 %v4900
        %5040 = vmatpush1.msra.mxu0 %v4899
        %5041 = vmatprep.subr.mxu0 %v4902
        %5042 = vmatpush1.msra.mxu0 %v4901
        %5043 = vmatprep.subr.mxu0 %v4904
        %5044 = vmatpush1.msra.mxu0 %v4903
        %5045 = vmatprep.subr.mxu0 %v4906
        %5046 = vmatpush1.msra.mxu0 %v4905
        %5047 = vmatprep.subr.mxu0 %v4908
        %5048 = vmatpush1.msra.mxu0 %v4907
        %5049 = vmatprep.subr.mxu0 %v4910
        %5050 = vmatpush1.msra.mxu0 %v4909
        %5051 = vmatprep.subr.mxu0 %v4912
        %5052 = vmatpush1.msra.mxu0 %v4911
        %5053 = vmatprep.subr.mxu0 %v4914
        %5054 = vmatpush1.msra.mxu0 %v4913
        %5055 = vmatprep.subr.mxu0 %v4916
        %5056 = vmatpush1.msra.mxu0 %v4915
        %5057 = vmatprep.subr.mxu0 %v4918
        %5058 = vmatpush1.msra.mxu0 %v4917
        %5059 = vmatprep.subr.mxu0 %v4920
        %5060 = vmatpush1.msra.mxu0 %v4919
        %5061 = vmatprep.subr.mxu0 %v4922
        %5062 = vmatpush1.msra.mxu0 %v4921
        %5063 = vmatprep.subr.mxu0 %v4924
        %5064 = vmatpush1.msra.mxu0 %v4923
        %5065 = vmatprep.subr.mxu0 %v4926
        %5066 = vmatpush1.msra.mxu0 %v4925
        %5067 = vmatprep.subr.mxu0 %v4928
        %5068 = vmatpush1.msra.mxu0 %v4927
        %5069 = vmatprep.subr.mxu0 %v4930
        %5070 = vmatpush1.msra.mxu0 %v4929
        %5071 = vmatprep.subr.mxu0 %v4932
        %5072 = vmatpush1.msra.mxu0 %v4931
        %5073 = vmatprep.subr.mxu0 %v4934
        %5074 = vmatpush1.msra.mxu0 %v4933
        %5075 = vmatprep.subr.mxu0 %v4936
        %5076 = vmatpush1.msra.mxu0 %v4935
        %5077 = vmatprep.subr.mxu0 %v4938
        %5078 = vmatpush1.msra.mxu0 %v4937
        %5079 = vmatprep.subr.mxu0 %v4940
        %5080 = vmatpush1.msra.mxu0 %v4939
        %5081 = vmatprep.subr.mxu0 %v4942
        %5082 = vmatpush1.msra.mxu0 %v4941
        %5083 = vmatprep.subr.mxu0 %v4944
        %5084 = vmatpush1.msra.mxu0 %v4943
        %5085 = vmatprep.subr.mxu0 %v4946
        %5086 = vmatpush1.msra.mxu0 %v4945
        %5087 = vmatprep.mubr.f32.mxu0 %v4876
        %5088 = vmatmul.mubr.f32.gmra.mrb[0].mxu0 %v4875
        %v5089 = vpop.f32.mrb[0].mxu0
        %v5090 = vadd.f32 %v5016, %v5089
        %v5091 = vpop.f32.mrb[0].mxu0
        %v5092 = vadd.f32 %v5020, %v5091
        %5093 = vmatprep.mubr.f32.mxu0 %v4880
        %5094 = vmatmul.mubr.f32.gmra.mrb[0].mxu0 %v4879
        %v5095 = vpop.f32.mrb[0].mxu0
        %v5096 = vadd.f32 %v5016, %v5095
        %v5097 = vpop.f32.mrb[0].mxu0
        %v5098 = vadd.f32 %v5020, %v5097
        %5099 = vdwg.mxu0
        %5100 = vmatprep.subr.mxu0 %v4948
        %5101 = vmatpush1.msra.mxu0 %v4947
        %5102 = vmatprep.subr.mxu0 %v4950
        %5103 = vmatpush1.msra.mxu0 %v4949
        %5104 = vmatprep.subr.mxu0 %v4952
        %5105 = vmatpush1.msra.mxu0 %v4951
        %5106 = vmatprep.subr.mxu0 %v4954
        %5107 = vmatpush1.msra.mxu0 %v4953
        %5108 = vmatprep.subr.mxu0 %v4956
        %5109 = vmatpush1.msra.mxu0 %v4955
        %5110 = vmatprep.subr.mxu0 %v4958
        %5111 = vmatpush1.msra.mxu0 %v4957
        %5112 = vmatprep.subr.mxu0 %v4960
        %5113 = vmatpush1.msra.mxu0 %v4959
        %5114 = vmatprep.subr.mxu0 %v4962
        %5115 = vmatpush1.msra.mxu0 %v4961
        %5116 = vmatprep.subr.mxu0 %v4964
        %5117 = vmatpush1.msra.mxu0 %v4963
        %5118 = vmatprep.subr.mxu0 %v4966
        %5119 = vmatpush1.msra.mxu0 %v4965
        %5120 = vmatprep.subr.mxu0 %v4968
        %5121 = vmatpush1.msra.mxu0 %v4967
        %5122 = vmatprep.subr.mxu0 %v4970
        %5123 = vmatpush1.msra.mxu0 %v4969
        %5124 = vmatprep.subr.mxu0 %v4972
        %5125 = vmatpush1.msra.mxu0 %v4971
        %5126 = vmatprep.subr.mxu0 %v4974
        %5127 = vmatpush1.msra.mxu0 %v4973
        %5128 = vmatprep.subr.mxu0 %v4976
        %5129 = vmatpush1.msra.mxu0 %v4975
        %5130 = vmatprep.subr.mxu0 %v4978
        %5131 = vmatpush1.msra.mxu0 %v4977
        %5132 = vmatprep.subr.mxu0 %v4980
        %5133 = vmatpush1.msra.mxu0 %v4979
        %5134 = vmatprep.subr.mxu0 %v4982
        %5135 = vmatpush1.msra.mxu0 %v4981
        %5136 = vmatprep.subr.mxu0 %v4984
        %5137 = vmatpush1.msra.mxu0 %v4983
        %5138 = vmatprep.subr.mxu0 %v4986
        %5139 = vmatpush1.msra.mxu0 %v4985
        %5140 = vmatprep.subr.mxu0 %v4988
        %5141 = vmatpush1.msra.mxu0 %v4987
        %5142 = vmatprep.subr.mxu0 %v4990
        %5143 = vmatpush1.msra.mxu0 %v4989
        %5144 = vmatprep.subr.mxu0 %v4992
        %5145 = vmatpush1.msra.mxu0 %v4991
        %5146 = vmatprep.subr.mxu0 %v4994
        %5147 = vmatpush1.msra.mxu0 %v4993
        %5148 = vmatprep.subr.mxu0 %v4996
        %5149 = vmatpush1.msra.mxu0 %v4995
        %5150 = vmatprep.subr.mxu0 %v4998
        %5151 = vmatpush1.msra.mxu0 %v4997
        %5152 = vmatprep.subr.mxu0 %v5000
        %5153 = vmatpush1.msra.mxu0 %v4999
        %5154 = vmatprep.subr.mxu0 %v5002
        %5155 = vmatpush1.msra.mxu0 %v5001
        %5156 = vmatprep.subr.mxu0 %v5004
        %5157 = vmatpush1.msra.mxu0 %v5003
        %5158 = vmatprep.subr.mxu0 %v5006
        %5159 = vmatpush1.msra.mxu0 %v5005
        %5160 = vmatprep.subr.mxu0 %v5008
        %5161 = vmatpush1.msra.mxu0 %v5007
        %5162 = vmatprep.subr.mxu0 %v5010
        %5163 = vmatpush1.msra.mxu0 %v5009
        %5164 = vmatprep.mubr.f32.mxu0 %v4878
        %5165 = vmatmul.mubr.f32.gmra.mrb[0].mxu0 %v4877
        %v5166 = vpop.f32.mrb[0].mxu0
        %v5167 = vadd.f32 %v5090, %v5166
        %v5168 = vpop.f32.mrb[0].mxu0
        %v5169 = vadd.f32 %v5092, %v5168
        %5170 = vmatprep.mubr.f32.mxu0 %v4882
        %5171 = vmatmul.mubr.f32.gmra.mrb[0].mxu0 %v4881
        %v5172 = vpop.f32.mrb[0].mxu0
        %v5173 = vadd.f32 %v5096, %v5172
        %v5174 = vpop.f32.mrb[0].mxu0
        %v5175 = vadd.f32 %v5098, %v5174
        %5176 = vdwg.mxu0
        %v5177 = vld [vmem:[#allocation14] sm:$0xff]
        %v5178 = vld [vmem:[#allocation14 + $0x8] sm:$0xff]
        %v5179 = vld [vmem:[#allocation14 + $0x10] sm:$0xff]
        %v5180 = vld [vmem:[#allocation14 + $0x18] sm:$0xff]
        %v5181 = vld [vmem:[#allocation14 + $0x20] sm:$0xff]
        %v5182 = vld [vmem:[#allocation14 + $0x28] sm:$0xff]
        %v5183 = vld [vmem:[#allocation14 + $0x30] sm:$0xff]
        %v5184 = vld [vmem:[#allocation14 + $0x38] sm:$0xff]
        %v5185 = vld [vmem:[#allocation14 + $0x40] sm:$0xff]
        %v5186 = vld [vmem:[#allocation14 + $0x48] sm:$0xff]
        %v5187 = vld [vmem:[#allocation14 + $0x50] sm:$0xff]
        %v5188 = vld [vmem:[#allocation14 + $0x58] sm:$0xff]
        %v5189 = vld [vmem:[#allocation14 + $0x60] sm:$0xff]
        %v5190 = vld [vmem:[#allocation14 + $0x68] sm:$0xff]
        %v5191 = vld [vmem:[#allocation14 + $0x70] sm:$0xff]
        %v5192 = vld [vmem:[#allocation14 + $0x78] sm:$0xff]
        %v5193 = vld [vmem:[#allocation14 + $0x80] sm:$0xff]
        %v5194 = vld [vmem:[#allocation14 + $0x88] sm:$0xff]
        %v5195 = vld [vmem:[#allocation14 + $0x90] sm:$0xff]
        %v5196 = vld [vmem:[#allocation14 + $0x98] sm:$0xff]
        %v5197 = vld [vmem:[#allocation14 + $0xa0] sm:$0xff]
        %v5198 = vld [vmem:[#allocation14 + $0xa8] sm:$0xff]
        %v5199 = vld [vmem:[#allocation14 + $0xb0] sm:$0xff]
        %v5200 = vld [vmem:[#allocation14 + $0xb8] sm:$0xff]
        %v5201 = vld [vmem:[#allocation14 + $0xc0] sm:$0xff]
        %v5202 = vld [vmem:[#allocation14 + $0xc8] sm:$0xff]
        %v5203 = vld [vmem:[#allocation14 + $0xd0] sm:$0xff]
        %v5204 = vld [vmem:[#allocation14 + $0xd8] sm:$0xff]
        %v5205 = vld [vmem:[#allocation14 + $0xe0] sm:$0xff]
        %v5206 = vld [vmem:[#allocation14 + $0xe8] sm:$0xff]
        %v5207 = vld [vmem:[#allocation14 + $0xf0] sm:$0xff]
        %v5208 = vld [vmem:[#allocation14 + $0xf8] sm:$0xff]
        %v5209 = vld [vmem:[#allocation16] sm:$0x1]
        %v5211 = vlaneseq
        %v5212 = vshrl.u32 %v5211, 7
        %v5213 = vsub.s32 0, %v5212
        %v5214 = vrot.slane %v5209, %v5213
        %5216 = vmatprep.subr.mxu0 0.0
        %5217 = vmatpush1.msra.mxu0 %v5177
        %5218 = vmatprep.subr.mxu0 0.0
        %5219 = vmatpush1.msra.mxu0 %v5178
        %5220 = vmatprep.subr.mxu0 0.0
        %5221 = vmatpush1.msra.mxu0 %v5179
        %5222 = vmatprep.subr.mxu0 0.0
        %5223 = vmatpush1.msra.mxu0 %v5180
        %5224 = vmatprep.subr.mxu0 0.0
        %5225 = vmatpush1.msra.mxu0 %v5181
        %5226 = vmatprep.subr.mxu0 0.0
        %5227 = vmatpush1.msra.mxu0 %v5182
        %5228 = vmatprep.subr.mxu0 0.0
        %5229 = vmatpush1.msra.mxu0 %v5183
        %5230 = vmatprep.subr.mxu0 0.0
        %5231 = vmatpush1.msra.mxu0 %v5184
        %5232 = vmatprep.subr.mxu0 0.0
        %5233 = vmatpush1.msra.mxu0 %v5185
        %5234 = vmatprep.subr.mxu0 0.0
        %5235 = vmatpush1.msra.mxu0 %v5186
        %5236 = vmatprep.subr.mxu0 0.0
        %5237 = vmatpush1.msra.mxu0 %v5187
        %5238 = vmatprep.subr.mxu0 0.0
        %5239 = vmatpush1.msra.mxu0 %v5188
        %5240 = vmatprep.subr.mxu0 0.0
        %5241 = vmatpush1.msra.mxu0 %v5189
        %5242 = vmatprep.subr.mxu0 0.0
        %5243 = vmatpush1.msra.mxu0 %v5190
        %5244 = vmatprep.subr.mxu0 0.0
        %5245 = vmatpush1.msra.mxu0 %v5191
        %5246 = vmatprep.subr.mxu0 0.0
        %5247 = vmatpush1.msra.mxu0 %v5192
        %5248 = vmatprep.subr.mxu0 0.0
        %5249 = vmatpush1.msra.mxu0 %v5193
        %5250 = vmatprep.subr.mxu0 0.0
        %5251 = vmatpush1.msra.mxu0 %v5194
        %5252 = vmatprep.subr.mxu0 0.0
        %5253 = vmatpush1.msra.mxu0 %v5195
        %5254 = vmatprep.subr.mxu0 0.0
        %5255 = vmatpush1.msra.mxu0 %v5196
        %5256 = vmatprep.subr.mxu0 0.0
        %5257 = vmatpush1.msra.mxu0 %v5197
        %5258 = vmatprep.subr.mxu0 0.0
        %5259 = vmatpush1.msra.mxu0 %v5198
        %5260 = vmatprep.subr.mxu0 0.0
        %5261 = vmatpush1.msra.mxu0 %v5199
        %5262 = vmatprep.subr.mxu0 0.0
        %5263 = vmatpush1.msra.mxu0 %v5200
        %5264 = vmatprep.subr.mxu0 0.0
        %5265 = vmatpush1.msra.mxu0 %v5201
        %5266 = vmatprep.subr.mxu0 0.0
        %5267 = vmatpush1.msra.mxu0 %v5202
        %5268 = vmatprep.subr.mxu0 0.0
        %5269 = vmatpush1.msra.mxu0 %v5203
        %5270 = vmatprep.subr.mxu0 0.0
        %5271 = vmatpush1.msra.mxu0 %v5204
        %5272 = vmatprep.subr.mxu0 0.0
        %5273 = vmatpush1.msra.mxu0 %v5205
        %5274 = vmatprep.subr.mxu0 0.0
        %5275 = vmatpush1.msra.mxu0 %v5206
        %5276 = vmatprep.subr.mxu0 0.0
        %5277 = vmatpush1.msra.mxu0 %v5207
        %5278 = vmatprep.subr.mxu0 0.0
        %5279 = vmatpush1.msra.mxu0 %v5208
        %5280 = vmatprep.mubr.f32.mxu0 %v5169
        %5281 = vmatmul.mubr.f32.gmra.mrb[0].mxu0 %v5167
        %v5282 = vpop.f32.mrb[0].mxu0
        %v5283 = vadd.f32 %v5214, %v5282
        %v5284 = vpop.f32.mrb[0].mxu0
        %5285 = vmatprep.mubr.f32.mxu0 %v5175
        %5286 = vmatmul.mubr.f32.gmra.mrb[0].mxu0 %v5173
        %v5287 = vpop.f32.mrb[0].mxu0
        %v5288 = vadd.f32 %v5214, %v5287
        %v5289 = vpop.f32.mrb[0].mxu0
        %5290 = vdwg.mxu0
        %5291 = vst [vmem:[%s459] sm:$0xff] %v5283
        %5292 = vst [vmem:[%s459 + $0x8] sm:$0xff] %v5288
        %s5293 = sand.u32 %s232, 1
        %s5294 = scalar_lea.sflag [#allocation4], %s5293
        %s5295 = sand.u32 %s232, 1
        %s5296 = smul.addr %s5295, 16
        %s5297 = scalar_lea.vmem [#allocation17], %s5296
        // Predicated region
        $region93: #{tpu_custom_call.1} parent=55 // pred_check
          %p5298 = pneg %p242
        $region94: #{tpu_custom_call.1} parent=55 // pred_check_branch
          %5300 = sbr.rel (%p5298) target = $region96
        $region95: #{tpu_custom_call.1} parent=55 // pred_region
          %s5301 = smul.u32 2, %s30
          %s5303 = ssub.s32 256, 256
          %5304 = vsyncadd %s5294, %s5303
          %s5305 = smul.addr %s5301, 128
          %s5306 = scalar_lea.hbm %s9, %s5305
          %s5307 = sshll.u32 %s5297, 4
          %s5308 = int_to_ptr.vmem [resolvable:$true] %s5307
          %5313 = dma.vmem_to_hbm [thread:$0]  %s5308, 256, %s5306, %s5294, 128, 128, 8
        $region96: #{tpu_custom_call.1} parent=55 // pred_fallthru
          _
      $region56: #{tpu_custom_call.1} parent=5 // pred_fallthru
        _
      %p5314 = scmp.le.s32.totalorder 2, %s25
      // Predicated region
      $region97: #{tpu_custom_call.1} parent=5 // pred_check
        %p5315 = pneg %p5314
      $region98: #{tpu_custom_call.1} parent=5 // pred_check_branch
        %5317 = sbr.rel (%p5315) target = $region100
      $region99: #{tpu_custom_call.1} parent=5 // pred_region
        %s5318 = ssub.s32 %s25, 2
        // Predicated region
        $region101: #{tpu_custom_call.1} parent=99 // pred_check
          %p5319 = pneg %p248
        $region102: #{tpu_custom_call.1} parent=99 // pred_check_branch
          %5321 = sbr.rel (%p5319) target = $region104
        $region103: #{tpu_custom_call.1} parent=99 // pred_region
          %s5322 = sand.u32 %s233, 1
          %s5323 = scalar_lea.sflag [#allocation4], %s5322
          %s5324 = sand.u32 %s233, 1
          %s5325 = smul.addr %s5324, 16
          %s5326 = scalar_lea.vmem [#allocation17], %s5325
          %5327 = dma.done %s5323, 256
        $region104: #{tpu_custom_call.1} parent=99 // pred_fallthru
          _
      $region100: #{tpu_custom_call.1} parent=5 // pred_fallthru
        _
    $region6: #{tpu_custom_call.1} parent=1 // loop_footer
      %s29 = sadd.s32 1, %s25
    $region7: #{tpu_custom_call.1} parent=1 // loop_footer_branch
      %24 = sbr.rel target = $region3
    $region8: #{tpu_custom_call.1} parent=1 // loop_exit
      _
    %5328 = vsyncpa [#allocation3], 1
    %s5329 = scalar_lea.sflag [#allocation3], 1
    %5330 = vsyncpa %s5329, 1
    %5331 = vsyncpa [#allocation6], 1
    %5332 = vsyncpa [#allocation9], 1
    %5333 = vsyncpa [#allocation12], 1
    %5334 = vsyncpa [#allocation15], 1
    %5335 = vsyncpa [#allocation4], 1
    %s5336 = scalar_lea.sflag [#allocation4], 1
    %5337 = vsyncpa %s5336, 1

</llo_original>
